<compile_context>
chip_gen: v5e
topology: v5e:2x2
jax: 0.10.0
libtpu: 0.0.40
codegen_flags: <defaults>
</compile_context>

<pallas_src>
import math
from functools import partial

import jax
import jax.numpy as jnp
from jax.experimental import pallas as pl
from jax.experimental.pallas import tpu as pltpu


# ----------------------------- helpers -----------------------------

def _round_up(x, m):
    return ((x + m - 1) // m) * m


def _plan_dim(dim, pref, align):
    """Choose (tile, padded_dim) for one grid dimension: tile | padded_dim,
    tile <= max(pref, align). Large dims never fall back to a whole-array block
    (keeps VMEM working sets bounded, esp. on 64 MiB v7x): if no aligned tile in
    [pref/2, pref] divides `dim`, the dim is padded up to a tile multiple instead."""
    if dim <= pref:
        return dim, dim                      # single full-extent block (always legal)
    t = max(align, (pref // align) * align)
    c = t
    floor = max(align, t // 2)
    while c >= floor:
        if dim % c == 0:
            return c, dim
        c -= align
    return t, _round_up(dim, t)


def _pad_axis(a, axis, new_size):
    if a.shape[axis] == new_size:
        return a
    pads = [(0, 0)] * a.ndim
    pads[axis] = (0, new_size - a.shape[axis])
    return jnp.pad(a, pads)


def _erf(x):
    # erf via Abramowitz-Stegun 7.1.26 (|err| <= 1.5e-7); matches torch's exact GELU to ~1e-7.
    z = jnp.abs(x)
    t = 1.0 / (1.0 + 0.3275911 * z)
    poly = t * (0.254829592 + t * (-0.284496736 + t * (1.421413741
                + t * (-1.453152027 + t * 1.061405429))))
    y = 1.0 - poly * jnp.exp(-z * z)
    return jnp.where(x >= 0.0, y, -y)


def _gelu(x):
    return 0.5 * x * (1.0 + _erf(x * 0.7071067811865476))


# ----------------------------- Pallas kernels -----------------------------

def _linear_kernel(x_ref, w_ref, b_ref, o_ref, acc_ref, *, activation):
    # One (tm, tn) output tile, accumulated over the K grid axis (innermost, "arbitrary").
    k = pl.program_id(2)

    @pl.when(k == 0)
    def _():
        acc_ref[...] = jnp.zeros_like(acc_ref)

    acc_ref[...] += jnp.dot(x_ref[...].astype(jnp.bfloat16),
                            w_ref[...].astype(jnp.bfloat16),
                            preferred_element_type=jnp.float32)

    @pl.when(k == pl.num_programs(2) - 1)
    def _():
        y = acc_ref[...] + b_ref[...].astype(jnp.float32)
        if activation == "gelu":
            y = _gelu(y)
        o_ref[...] = y.astype(o_ref.dtype)


def linear(x2d, w, b, activation=None, out_dtype=None,
           tm_pref=256, tn_pref=256, tk_pref=512):
    """y = act(x @ w + b). w stored (in, out). Tiled/pipelined, bf16 MXU, f32 accumulate.
    Dims that don't divide the tile are zero-padded in the wrapper and sliced back."""
    M, K = x2d.shape
    N = w.shape[1]
    out_dtype = x2d.dtype if out_dtype is None else out_dtype

    tm, Mp = _plan_dim(M, tm_pref, 8)
    tn, Np = _plan_dim(N, tn_pref, 128)
    tk, Kp = _plan_dim(K, tk_pref, 128)

    x2d = _pad_axis(_pad_axis(x2d, 0, Mp), 1, Kp)
    w = _pad_axis(_pad_axis(w, 0, Kp), 1, Np)
    b = _pad_axis(b, 0, Np)

    out = pl.pallas_call(
        partial(_linear_kernel, activation=activation),
        out_shape=jax.ShapeDtypeStruct((Mp, Np), out_dtype),
        grid=(Mp // tm, Np // tn, Kp // tk),
        in_specs=[
            pl.BlockSpec((tm, tk), lambda i, j, k: (i, k)),
            pl.BlockSpec((tk, tn), lambda i, j, k: (k, j)),
            pl.BlockSpec((1, tn), lambda i, j, k: (0, j)),
        ],
        out_specs=pl.BlockSpec((tm, tn), lambda i, j, k: (i, j)),
        scratch_shapes=[pltpu.VMEM((tm, tn), jnp.float32)],
        compiler_params=pltpu.CompilerParams(
            dimension_semantics=("parallel", "parallel", "arbitrary")),
    )(x2d, w, b.reshape(1, Np))

    if Mp != M or Np != N:
        out = out[:M, :N]
    return out


def _linear_add_ln_kernel(x_ref, w_ref, b_ref, r_ref, g_ref, bb_ref, o_ref, acc_ref, *, eps):
    # o = LayerNorm(residual + (x @ w + b)); LN over the full (un-tiled) feature dim.
    k = pl.program_id(1)

    @pl.when(k == 0)
    def _():
        acc_ref[...] = jnp.zeros_like(acc_ref)

    acc_ref[...] += jnp.dot(x_ref[...].astype(jnp.bfloat16),
                            w_ref[...].astype(jnp.bfloat16),
                            preferred_element_type=jnp.float32)

    @pl.when(k == pl.num_programs(1) - 1)
    def _():
        y = acc_ref[...] + b_ref[...].astype(jnp.float32) + r_ref[...].astype(jnp.float32)
        mean = jnp.mean(y, axis=-1, keepdims=True)
        var = jnp.mean(jnp.square(y - mean), axis=-1, keepdims=True)
        yn = (y - mean) * jax.lax.rsqrt(var + eps)
        o_ref[...] = (yn * g_ref[...].astype(jnp.float32)
                      + bb_ref[...].astype(jnp.float32)).astype(o_ref.dtype)


def linear_add_ln(x2d, w, b, res2d, gamma, beta, eps=1e-5, tm_pref=128, tk_pref=512):
    """LayerNorm(res + x @ w + b) -> bf16. Feature dim D kept whole (needed for LN);
    M/K tiled and padded to tile multiples. tm_pref=128 keeps the double-buffered
    working set comfortably inside v7x's 32 MiB scoped-VMEM default."""
    M, K = x2d.shape
    D = w.shape[1]
    tm, Mp = _plan_dim(M, tm_pref, 8)
    tk, Kp = _plan_dim(K, tk_pref, 128)

    x2d = _pad_axis(_pad_axis(x2d, 0, Mp), 1, Kp)
    w = _pad_axis(w, 0, Kp)
    res2d = _pad_axis(res2d, 0, Mp)

    out = pl.pallas_call(
        partial(_linear_add_ln_kernel, eps=eps),
        out_shape=jax.ShapeDtypeStruct((Mp, D), jnp.bfloat16),
        grid=(Mp // tm, Kp // tk),
        in_specs=[
            pl.BlockSpec((tm, tk), lambda i, k: (i, k)),
            pl.BlockSpec((tk, D), lambda i, k: (k, 0)),
            pl.BlockSpec((1, D), lambda i, k: (0, 0)),
            pl.BlockSpec((tm, D), lambda i, k: (i, 0)),
            pl.BlockSpec((1, D), lambda i, k: (0, 0)),
            pl.BlockSpec((1, D), lambda i, k: (0, 0)),
        ],
        out_specs=pl.BlockSpec((tm, D), lambda i, k: (i, 0)),
        scratch_shapes=[pltpu.VMEM((tm, D), jnp.float32)],
        compiler_params=pltpu.CompilerParams(
            dimension_semantics=("parallel", "arbitrary")),
    )(x2d, w, b.reshape(1, D), res2d, gamma.reshape(1, D), beta.reshape(1, D))

    if Mp != M:
        out = out[:M]
    return out


def _proj_pe_ln_kernel(x_ref, w_ref, b_ref, pe_ref, g_ref, bb_ref, o_ref, acc_ref, *, eps):
    # o = LayerNorm(x @ w + b + pe[s_tile]); pe indexed per S-tile (no HBM broadcast).
    k = pl.program_id(2)

    @pl.when(k == 0)
    def _():
        acc_ref[...] = jnp.zeros_like(acc_ref)

    acc_ref[...] += jnp.dot(x_ref[...].astype(jnp.bfloat16),
                            w_ref[...].astype(jnp.bfloat16),
                            preferred_element_type=jnp.float32)

    @pl.when(k == pl.num_programs(2) - 1)
    def _():
        y = acc_ref[...] + b_ref[...].astype(jnp.float32) + pe_ref[...].astype(jnp.float32)
        mean = jnp.mean(y, axis=-1, keepdims=True)
        var = jnp.mean(jnp.square(y - mean), axis=-1, keepdims=True)
        yn = (y - mean) * jax.lax.rsqrt(var + eps)
        o_ref[...] = (yn * g_ref[...].astype(jnp.float32)
                      + bb_ref[...].astype(jnp.float32)).astype(o_ref.dtype)


def proj_pe_ln(x3d, w, b, pe, gamma, beta, eps=1e-5, tm_pref=128, tk_pref=512):
    """LayerNorm(x @ w + b + pe): (B, S, E) -> (B, S, D) bf16.  The positional encoding
    (S, D) is selected per S-tile by its BlockSpec instead of broadcasting to (B*S, D)."""
    B, S, E = x3d.shape
    D = w.shape[1]
    tm, Sp = _plan_dim(S, tm_pref, 8)
    tk, Kp = _plan_dim(E, tk_pref, 128)

    x3d = _pad_axis(_pad_axis(x3d, 1, Sp), 2, Kp)
    w = _pad_axis(w, 0, Kp)
    pe = _pad_axis(pe[:S], 0, Sp)

    out = pl.pallas_call(
        partial(_proj_pe_ln_kernel, eps=eps),
        out_shape=jax.ShapeDtypeStruct((B, Sp, D), jnp.bfloat16),
        grid=(B, Sp // tm, Kp // tk),
        in_specs=[
            pl.BlockSpec((None, tm, tk), lambda b, i, k: (b, i, k)),
            pl.BlockSpec((tk, D), lambda b, i, k: (k, 0)),
            pl.BlockSpec((1, D), lambda b, i, k: (0, 0)),
            pl.BlockSpec((tm, D), lambda b, i, k: (i, 0)),      # pe: depends on S-tile only
            pl.BlockSpec((1, D), lambda b, i, k: (0, 0)),
            pl.BlockSpec((1, D), lambda b, i, k: (0, 0)),
        ],
        out_specs=pl.BlockSpec((None, tm, D), lambda b, i, k: (b, i, 0)),
        scratch_shapes=[pltpu.VMEM((tm, D), jnp.float32)],
        compiler_params=pltpu.CompilerParams(
            dimension_semantics=("parallel", "parallel", "arbitrary")),
    )(x3d, w, b.reshape(1, D), pe, gamma.reshape(1, D), beta.reshape(1, D))

    if Sp != S:
        out = out[:, :S]
    return out


def _ffn_ln_kernel(x_ref, w1_ref, b1_ref, w2_ref, b2_ref, g_ref, bb_ref,
                   o_ref, acc_ref, *, eps):
    # o = LayerNorm(x + GELU(x @ w1 + b1) @ w2 + b2); hidden (FF) dim tiled on grid axis 1,
    # the (tm, tf) hidden tile lives only in VMEM/vregs — never written to HBM.
    f = pl.program_id(1)

    @pl.when(f == 0)
    def _():
        acc_ref[...] = jnp.zeros_like(acc_ref)

    h = jnp.dot(x_ref[...].astype(jnp.bfloat16), w1_ref[...].astype(jnp.bfloat16),
                preferred_element_type=jnp.float32) + b1_ref[...].astype(jnp.float32)
    h = _gelu(h)
    acc_ref[...] += jnp.dot(h.astype(jnp.bfloat16), w2_ref[...].astype(jnp.bfloat16),
                            preferred_element_type=jnp.float32)

    @pl.when(f == pl.num_programs(1) - 1)
    def _():
        y = acc_ref[...] + b2_ref[...].astype(jnp.float32) + x_ref[...].astype(jnp.float32)
        mean = jnp.mean(y, axis=-1, keepdims=True)
        var = jnp.mean(jnp.square(y - mean), axis=-1, keepdims=True)
        yn = (y - mean) * jax.lax.rsqrt(var + eps)
        o_ref[...] = (yn * g_ref[...].astype(jnp.float32)
                      + bb_ref[...].astype(jnp.float32)).astype(o_ref.dtype)


def ffn_ln(x2d, w1, b1, w2, b2, gamma, beta, eps=1e-5, tm_pref=128, tf_pref=512):
    """LayerNorm(x + GELU(x @ w1 + b1) @ w2 + b2) -> bf16, fully fused FFN block."""
    M, D = x2d.shape
    FF = w1.shape[1]
    tm, Mp = _plan_dim(M, tm_pref, 8)
    tf, FFp = _plan_dim(FF, tf_pref, 128)

    x2d = _pad_axis(x2d, 0, Mp)
    w1 = _pad_axis(w1, 1, FFp)
    b1 = _pad_axis(b1, 0, FFp)
    w2 = _pad_axis(w2, 0, FFp)

    out = pl.pallas_call(
        partial(_ffn_ln_kernel, eps=eps),
        out_shape=jax.ShapeDtypeStruct((Mp, D), jnp.bfloat16),
        grid=(Mp // tm, FFp // tf),
        in_specs=[
            pl.BlockSpec((tm, D), lambda i, f: (i, 0)),    # x (also the residual)
            pl.BlockSpec((D, tf), lambda i, f: (0, f)),    # w1 column tile
            pl.BlockSpec((1, tf), lambda i, f: (0, f)),
            pl.BlockSpec((tf, D), lambda i, f: (f, 0)),    # w2 row tile
            pl.BlockSpec((1, D), lambda i, f: (0, 0)),
            pl.BlockSpec((1, D), lambda i, f: (0, 0)),
            pl.BlockSpec((1, D), lambda i, f: (0, 0)),
        ],
        out_specs=pl.BlockSpec((tm, D), lambda i, f: (i, 0)),
        scratch_shapes=[pltpu.VMEM((tm, D), jnp.float32)],
        compiler_params=pltpu.CompilerParams(
            dimension_semantics=("parallel", "arbitrary")),
    )(x2d, w1, b1.reshape(1, FFp), w2, b2.reshape(1, D),
      gamma.reshape(1, D), beta.reshape(1, D))

    if Mp != M:
        out = out[:M]
    return out


def _attention_kernel(q_ref, k_ref, v_ref, o_ref, *, n_head, scale):
    # q_ref: (tq, D), k_ref/v_ref: (S, D), o_ref: (tq, D). Heads packed along D.
    # Per-head slices are read-only; the output is assembled once and written with a
    # single full-width lane-dense store (no per-head masked vst).
    tq, D = q_ref.shape
    Dh = D // n_head
    ohs = []
    for h in range(n_head):
        lo, hi = h * Dh, (h + 1) * Dh
        qh = q_ref[:, lo:hi].astype(jnp.bfloat16)          # (tq, Dh)
        kh = k_ref[:, lo:hi].astype(jnp.bfloat16)          # (S, Dh)
        vh = v_ref[:, lo:hi].astype(jnp.bfloat16)          # (S, Dh)
        s = jax.lax.dot_general(qh, kh, (((1,), (1,)), ((), ())),
                                preferred_element_type=jnp.float32) * scale  # (tq, S)
        s = s - jnp.max(s, axis=-1, keepdims=True)
        p = jnp.exp(s)
        p = p * pl.reciprocal(jnp.sum(p, axis=-1, keepdims=True), approx=True)
        ohs.append(jnp.dot(p.astype(jnp.bfloat16), vh,
                           preferred_element_type=jnp.float32))              # (tq, Dh)
    o_ref[...] = jnp.concatenate(ohs, axis=-1).astype(o_ref.dtype)


def multihead_attention(q, k, v, n_head, tq_pref=128):
    """q, k, v: (B, S, D) -> (B, S, D); softmax(QK^T / sqrt(Dh)) V per head."""
    # TODO(synk): flash-style KV tiling (online softmax) for very long sequences; full-S
    # K/V per batch is fine at protein lengths and keeps VMEM residency modest at tq=128.
    # TODO(synk): no src_key_padding_mask support (the reference forward does not pass one).
    B, S, D = q.shape
    Dh = D // n_head
    scale = 1.0 / math.sqrt(Dh)
    tq, Sq = _plan_dim(S, tq_pref, 8)
    q = _pad_axis(q, 1, Sq)   # only queries are padded; K/V stay un-padded (softmax unharmed)

    out = pl.pallas_call(
        partial(_attention_kernel, n_head=n_head, scale=scale),
        out_shape=jax.ShapeDtypeStruct((B, Sq, D), q.dtype),
        grid=(B, Sq // tq),
        in_specs=[pl.BlockSpec((None, tq, D), lambda b, i: (b, i, 0)),
                  pl.BlockSpec((None, S, D), lambda b, i: (b, 0, 0)),
                  pl.BlockSpec((None, S, D), lambda b, i: (b, 0, 0))],
        out_specs=pl.BlockSpec((None, tq, D), lambda b, i: (b, i, 0)),
        compiler_params=pltpu.CompilerParams(
            dimension_semantics=("parallel", "parallel")),
    )(q, k, v)

    if Sq != S:
        out = out[:, :S]
    return out


# ----------------------------- model glue (plain JAX) -----------------------------

def make_positional_encoding(d_model, max_len):
    position = jnp.arange(max_len, dtype=jnp.float32)[:, None]
    div_term = jnp.exp(jnp.arange(0, d_model, 2, dtype=jnp.float32)
                       * (-math.log(10000.0) / d_model))
    pe = jnp.zeros((max_len, d_model), dtype=jnp.float32)
    pe = pe.at[:, 0::2].set(jnp.sin(position * div_term))
    pe = pe.at[:, 1::2].set(jnp.cos(position * div_term))
    return pe


def init_params(key, cfg):
    D = cfg["d_model"]
    E = cfg["esm_embedding_dim"]
    FF = 4 * D
    O = cfg["o_dim"]
    Op = _round_up(O, 128)   # lane-dense head output, pre-padded once (sliced back in forward)
    L = cfg["n_layer"]

    def dense(k, fan_in, fan_out):
        kw, kb = jax.random.split(k)
        w = 0.02 * jax.random.normal(kw, (fan_in, fan_out), jnp.float32)
        b = 0.02 * jax.random.normal(kb, (fan_out,), jnp.float32)
        return w.astype(jnp.bfloat16), b           # weights bf16 (MXU), biases f32

    keys = jax.random.split(key, 4 + L)
    params = {}
    params["proj_w"], params["proj_b"] = dense(keys[0], E, D)
    params["pe"] = make_positional_encoding(D, cfg["max_len"] + 2)
    params["ln_in_g"] = jnp.ones((D,), jnp.float32)
    params["ln_in_b"] = jnp.zeros((D,), jnp.float32)

    layers = []
    for l in range(L):
        lk = jax.random.split(keys[4 + l], 4)
        layer = {}
        # fused in_proj: [q | k | v] concatenated along the output dim -> one matmul per layer
        layer["w_qkv"], layer["b_qkv"] = dense(lk[0], D, 3 * D)
        layer["out_proj_w"], layer["out_proj_b"] = dense(lk[1], D, D)
        layer["ff1_w"], layer["ff1_b"] = dense(lk[2], D, FF)
        layer["ff2_w"], layer["ff2_b"] = dense(lk[3], FF, D)
        layer["ln1_g"] = jnp.ones((D,), jnp.float32)
        layer["ln1_b"] = jnp.zeros((D,), jnp.float32)
        layer["ln2_g"] = jnp.ones((D,), jnp.float32)
        layer["ln2_b"] = jnp.zeros((D,), jnp.float32)
        layers.append(layer)
    params["layers"] = layers

    params["out1_w"], params["out1_b"] = dense(keys[1], D, D)
    w2, b2 = dense(keys[2], D, O)
    params["out2_w"] = _pad_axis(w2, 1, Op)
    params["out2_b"] = _pad_axis(b2, 0, Op)
    return params


def disprot_forward(params, esm_embeddings, cfg):
    B, S, E = esm_embeddings.shape
    D = cfg["d_model"]
    H = cfg["n_head"]

    # embedding_projection + positional encoding + input_norm (single fused kernel).
    # Dropout (PositionalEncoding p=0, dropout_in p=0.1, encoder/head dropouts) is identity
    # at inference. Activation stream is bf16 from here on; LN/accumulate math stays f32.
    x = proj_pe_ln(esm_embeddings, params["proj_w"], params["proj_b"],
                   params["pe"], params["ln_in_g"], params["ln_in_b"])    # (B, S, D) bf16
    x = x.reshape(B * S, D)

    # TransformerEncoder, post-norm layers.
    for layer in params["layers"]:
        # --- self-attention block ---
        qkv = linear(x, layer["w_qkv"], layer["b_qkv"], out_dtype=jnp.bfloat16)
        qkv = qkv.reshape(B, S, 3 * D)
        q, k, v = qkv[..., :D], qkv[..., D:2 * D], qkv[..., 2 * D:]
        attn = multihead_attention(q, k, v, H).reshape(B * S, D)          # bf16
        # out_proj + residual + norm1, fused.
        x = linear_add_ln(attn, layer["out_proj_w"], layer["out_proj_b"],
                          x, layer["ln1_g"], layer["ln1_b"])              # bf16

        # --- feed-forward block: ff1 + GELU + ff2 + residual + norm2, fully fused ---
        x = ffn_ln(x, layer["ff1_w"], layer["ff1_b"],
                   layer["ff2_w"], layer["ff2_b"],
                   layer["ln2_g"], layer["ln2_b"])                        # bf16

    # output head: Linear -> GELU -> Dropout(identity) -> Linear (o_dim pre-padded to 128)
    y = linear(x, params["out1_w"], params["out1_b"],
               activation="gelu", out_dtype=jnp.bfloat16)
    y = linear(y, params["out2_w"], params["out2_b"], out_dtype=jnp.float32)
    return y.reshape(B, S, -1)[:, :, :cfg["o_dim"]]


# ----------------------------- demo -----------------------------

if __name__ == "__main__":
    cfg = dict(d_model=32, n_head=4, n_layer=2, esm_embedding_dim=48, max_len=30, o_dim=2)
    B, S = 2, 8

    key = jax.random.PRNGKey(0)
    pkey, xkey = jax.random.split(key)
    params = init_params(pkey, cfg)
    esm = jax.random.normal(xkey, (B, S, cfg["esm_embedding_dim"]), dtype=jnp.float32)

    fwd = jax.jit(partial(disprot_forward, cfg=cfg))
    out = fwd(params, esm)
    jax.block_until_ready(out)
    assert out.shape == (B, S, cfg["o_dim"]) and out.dtype == jnp.float32
    print("KERNEL_OK")
</pallas_src>

<mosaic_0001>
module attributes {stable_mosaic.version = 11 : i64} {
  func.func @_linear_kernel(%arg0: i32, %arg1: i32, %arg2: i32, %arg3: memref<16x32xbf16, #tpu.memory_space<vmem>>, %arg4: memref<32x96xbf16, #tpu.memory_space<vmem>>, %arg5: memref<1x96xf32, #tpu.memory_space<vmem>>, %arg6: memref<16x96xbf16, #tpu.memory_space<vmem>>, %arg7: memref<16x96xf32, #tpu.memory_space<vmem>>) attributes {dimension_semantics = [#tpu.dimension_semantics<parallel>, #tpu.dimension_semantics<parallel>, #tpu.dimension_semantics<arbitrary>], iteration_bounds = array<i64: 1, 1, 1>, scalar_prefetch = 0 : i64, scratch_operands = 1 : i64, tpu.core_type = #tpu.core_type<tc>, window_params = [{transform_indices = @transform_0, window_bounds = array<i64: 16, 32>}, {transform_indices = @transform_1, window_bounds = array<i64: 32, 96>}, {transform_indices = @transform_2, window_bounds = array<i64: 1, 96>}, {transform_indices = @transform_3, window_bounds = array<i64: 16, 96>}]} {
    %c0_i32 = arith.constant 0 : i32
    %0 = arith.cmpi eq, %arg2, %c0_i32 : i32
    %1 = arith.extui %0 : i1 to i32
    %c0_i32_0 = arith.constant 0 : i32
    %2 = arith.cmpi ne, %1, %c0_i32_0 : i32
    scf.if %2 {
      %cst_10 = arith.constant 0.000000e+00 : f32
      %12 = vector.broadcast %cst_10 : f32 to vector<16x96xf32>
      %c0_11 = arith.constant 0 : index
      %c0_12 = arith.constant 0 : index
      %13 = vector.load %arg7[%c0_11, %c0_12] : memref<16x96xf32, #tpu.memory_space<vmem>>, vector<16x96xf32>
      tpu.vector_store %arg7[%c0_11, %c0_12], %12 {strides = array<i32>} : memref<16x96xf32, #tpu.memory_space<vmem>>, vector<16x96xf32>,
    } else {
    }
    %c0 = arith.constant 0 : index
    %c0_1 = arith.constant 0 : index
    %3 = vector.load %arg7[%c0, %c0_1] : memref<16x96xf32, #tpu.memory_space<vmem>>, vector<16x96xf32>
    %c0_2 = arith.constant 0 : index
    %c0_3 = arith.constant 0 : index
    %4 = vector.load %arg3[%c0_2, %c0_3] : memref<16x32xbf16, #tpu.memory_space<vmem>>, vector<16x32xbf16>
    %c0_4 = arith.constant 0 : index
    %c0_5 = arith.constant 0 : index
    %5 = vector.load %arg4[%c0_4, %c0_5] : memref<32x96xbf16, #tpu.memory_space<vmem>>, vector<32x96xbf16>
    %cst = arith.constant dense<0.000000e+00> : vector<16x96xf32>
    %6 = tpu.matmul %4, %5, %cst {dimension_numbers = #tpu.dot_dimension_numbers<[1], [0], [0], [1], [0, 0, 1, 1], [], []>} : vector<16x32xbf16>, vector<32x96xbf16>, vector<16x96xf32> -> vector<16x96xf32>
    %7 = arith.addf %3, %6 : vector<16x96xf32>
    %c0_6 = arith.constant 0 : index
    %c0_7 = arith.constant 0 : index
    %8 = vector.load %arg7[%c0_6, %c0_7] : memref<16x96xf32, #tpu.memory_space<vmem>>, vector<16x96xf32>
    tpu.vector_store %arg7[%c0_6, %c0_7], %7 {strides = array<i32>} : memref<16x96xf32, #tpu.memory_space<vmem>>, vector<16x96xf32>,
    %c0_i32_8 = arith.constant 0 : i32
    %9 = arith.cmpi eq, %arg2, %c0_i32_8 : i32
    %10 = arith.extui %9 : i1 to i32
    %c0_i32_9 = arith.constant 0 : i32
    %11 = arith.cmpi ne, %10, %c0_i32_9 : i32
    scf.if %11 {
      %c0_10 = arith.constant 0 : index
      %c0_11 = arith.constant 0 : index
      %12 = vector.load %arg7[%c0_10, %c0_11] : memref<16x96xf32, #tpu.memory_space<vmem>>, vector<16x96xf32>
      %c0_12 = arith.constant 0 : index
      %c0_13 = arith.constant 0 : index
      %13 = vector.load %arg5[%c0_12, %c0_13] : memref<1x96xf32, #tpu.memory_space<vmem>>, vector<1x96xf32>
      %14 = vector.broadcast %13 : vector<1x96xf32> to vector<16x96xf32>
      %15 = arith.addf %12, %14 : vector<16x96xf32>
      %16 = arith.truncf %15 : vector<16x96xf32> to vector<16x96xbf16>
      %c0_14 = arith.constant 0 : index
      %c0_15 = arith.constant 0 : index
      %17 = vector.load %arg6[%c0_14, %c0_15] : memref<16x96xbf16, #tpu.memory_space<vmem>>, vector<16x96xbf16>
      tpu.vector_store %arg6[%c0_14, %c0_15], %16 {strides = array<i32>} : memref<16x96xbf16, #tpu.memory_space<vmem>>, vector<16x96xbf16>,
    } else {
    }
    return
  }
  func.func @transform_0(%arg0: i32, %arg1: i32, %arg2: i32) -> (i32, i32) {
    %c0_i32 = arith.constant 0 : i32
    return %arg0, %arg2 : i32, i32
  }
  func.func @transform_1(%arg0: i32, %arg1: i32, %arg2: i32) -> (i32, i32) {
    %c0_i32 = arith.constant 0 : i32
    return %arg2, %arg1 : i32, i32
  }
  func.func @transform_2(%arg0: i32, %arg1: i32, %arg2: i32) -> (i32, i32) {
    %c0_i32 = arith.constant 0 : i32
    %c0_i32_0 = arith.constant 0 : i32
    return %c0_i32, %arg1 : i32, i32
  }
  func.func @transform_3(%arg0: i32, %arg1: i32, %arg2: i32) -> (i32, i32) {
    %c0_i32 = arith.constant 0 : i32
    return %arg0, %arg1 : i32, i32
  }
}

module attributes {stable_mosaic.version = 11 : i64} {
  func.func @_proj_pe_ln_kernel(%arg0: i32, %arg1: i32, %arg2: i32, %arg3: memref<1x8x48xf32, #tpu.memory_space<vmem>>, %arg4: memref<48x32xbf16, #tpu.memory_space<vmem>>, %arg5: memref<1x32xf32, #tpu.memory_space<vmem>>, %arg6: memref<8x32xf32, #tpu.memory_space<vmem>>, %arg7: memref<1x32xf32, #tpu.memory_space<vmem>>, %arg8: memref<1x32xf32, #tpu.memory_space<vmem>>, %arg9: memref<1x8x32xbf16, #tpu.memory_space<vmem>>, %arg10: memref<8x32xf32, #tpu.memory_space<vmem>>) attributes {dimension_semantics = [#tpu.dimension_semantics<parallel>, #tpu.dimension_semantics<parallel>, #tpu.dimension_semantics<arbitrary>], iteration_bounds = array<i64: 2, 1, 1>, scalar_prefetch = 0 : i64, scratch_operands = 1 : i64, tpu.core_type = #tpu.core_type<tc>, window_params = [{transform_indices = @transform_0, window_bounds = array<i64: 1, 8, 48>}, {transform_indices = @transform_1, window_bounds = array<i64: 48, 32>}, {pipeline_mode = #tpu.pipeline_mode<synchronous>, transform_indices = @transform_2, window_bounds = array<i64: 1, 32>}, {transform_indices = @transform_3, window_bounds = array<i64: 8, 32>}, {pipeline_mode = #tpu.pipeline_mode<synchronous>, transform_indices = @transform_4, window_bounds = array<i64: 1, 32>}, {pipeline_mode = #tpu.pipeline_mode<synchronous>, transform_indices = @transform_5, window_bounds = array<i64: 1, 32>}, {transform_indices = @transform_6, window_bounds = array<i64: 1, 8, 32>}]} {
    %c0_i32 = arith.constant 0 : i32
    %0 = arith.cmpi eq, %arg2, %c0_i32 : i32
    %1 = arith.extui %0 : i1 to i32
    %c0_i32_0 = arith.constant 0 : i32
    %2 = arith.cmpi ne, %1, %c0_i32_0 : i32
    scf.if %2 {
      %cst_11 = arith.constant 0.000000e+00 : f32
      %14 = vector.broadcast %cst_11 : f32 to vector<8x32xf32>
      %c0_12 = arith.constant 0 : index
      %c0_13 = arith.constant 0 : index
      %15 = vector.load %arg10[%c0_12, %c0_13] : memref<8x32xf32, #tpu.memory_space<vmem>>, vector<8x32xf32>
      tpu.vector_store %arg10[%c0_12, %c0_13], %14 {strides = array<i32>} : memref<8x32xf32, #tpu.memory_space<vmem>>, vector<8x32xf32>,
    } else {
    }
    %c0 = arith.constant 0 : index
    %c0_1 = arith.constant 0 : index
    %3 = vector.load %arg10[%c0, %c0_1] : memref<8x32xf32, #tpu.memory_space<vmem>>, vector<8x32xf32>
    %c0_2 = arith.constant 0 : index
    %c0_3 = arith.constant 0 : index
    %c0_4 = arith.constant 0 : index
    %4 = vector.load %arg3[%c0_2, %c0_3, %c0_4] : memref<1x8x48xf32, #tpu.memory_space<vmem>>, vector<1x8x48xf32>
    %5 = vector.shape_cast %4 : vector<1x8x48xf32> to vector<8x48xf32>
    %6 = arith.truncf %5 : vector<8x48xf32> to vector<8x48xbf16>
    %c0_5 = arith.constant 0 : index
    %c0_6 = arith.constant 0 : index
    %7 = vector.load %arg4[%c0_5, %c0_6] : memref<48x32xbf16, #tpu.memory_space<vmem>>, vector<48x32xbf16>
    %cst = arith.constant dense<0.000000e+00> : vector<8x32xf32>
    %8 = tpu.matmul %6, %7, %cst {dimension_numbers = #tpu.dot_dimension_numbers<[1], [0], [0], [1], [0, 0, 1, 1], [], []>} : vector<8x48xbf16>, vector<48x32xbf16>, vector<8x32xf32> -> vector<8x32xf32>
    %9 = arith.addf %3, %8 : vector<8x32xf32>
    %c0_7 = arith.constant 0 : index
    %c0_8 = arith.constant 0 : index
    %10 = vector.load %arg10[%c0_7, %c0_8] : memref<8x32xf32, #tpu.memory_space<vmem>>, vector<8x32xf32>
    tpu.vector_store %arg10[%c0_7, %c0_8], %9 {strides = array<i32>} : memref<8x32xf32, #tpu.memory_space<vmem>>, vector<8x32xf32>,
    %c0_i32_9 = arith.constant 0 : i32
    %11 = arith.cmpi eq, %arg2, %c0_i32_9 : i32
    %12 = arith.extui %11 : i1 to i32
    %c0_i32_10 = arith.constant 0 : i32
    %13 = arith.cmpi ne, %12, %c0_i32_10 : i32
    scf.if %13 {
      %c0_11 = arith.constant 0 : index
      %c0_12 = arith.constant 0 : index
      %14 = vector.load %arg10[%c0_11, %c0_12] : memref<8x32xf32, #tpu.memory_space<vmem>>, vector<8x32xf32>
      %c0_13 = arith.constant 0 : index
      %c0_14 = arith.constant 0 : index
      %15 = vector.load %arg5[%c0_13, %c0_14] : memref<1x32xf32, #tpu.memory_space<vmem>>, vector<1x32xf32>
      %16 = vector.broadcast %15 : vector<1x32xf32> to vector<8x32xf32>
      %17 = arith.addf %14, %16 : vector<8x32xf32>
      %c0_15 = arith.constant 0 : index
      %c0_16 = arith.constant 0 : index
      %18 = vector.load %arg6[%c0_15, %c0_16] : memref<8x32xf32, #tpu.memory_space<vmem>>, vector<8x32xf32>
      %19 = arith.addf %17, %18 : vector<8x32xf32>
      %cst_17 = arith.constant dense<0.000000e+00> : vector<8xf32>
      %20 = vector.multi_reduction <add>, %19, %cst_17 [1] : vector<8x32xf32> to vector<8xf32>
      %21 = vector.shape_cast %20 : vector<8xf32> to vector<8x1xf32>
      %cst_18 = arith.constant 3.200000e+01 : f32
      %22 = vector.broadcast %cst_18 : f32 to vector<8x1xf32>
      %23 = arith.divf %21, %22 : vector<8x1xf32>
      %24 = vector.broadcast %23 : vector<8x1xf32> to vector<8x32xf32>
      %25 = arith.subf %19, %24 : vector<8x32xf32>
      %26 = arith.mulf %25, %25 : vector<8x32xf32>
      %cst_19 = arith.constant dense<0.000000e+00> : vector<8xf32>
      %27 = vector.multi_reduction <add>, %26, %cst_19 [1] : vector<8x32xf32> to vector<8xf32>
      %28 = vector.shape_cast %27 : vector<8xf32> to vector<8x1xf32>
      %cst_20 = arith.constant 3.200000e+01 : f32
      %29 = vector.broadcast %cst_20 : f32 to vector<8x1xf32>
      %30 = arith.divf %28, %29 : vector<8x1xf32>
      %31 = vector.broadcast %23 : vector<8x1xf32> to vector<8x32xf32>
      %32 = arith.subf %19, %31 : vector<8x32xf32>
      %cst_21 = arith.constant 9.99999974E-6 : f32
      %33 = vector.broadcast %cst_21 : f32 to vector<8x1xf32>
      %34 = arith.addf %30, %33 : vector<8x1xf32>
      %35 = math.rsqrt %34 : vector<8x1xf32>
      %36 = vector.broadcast %35 : vector<8x1xf32> to vector<8x32xf32>
      %37 = arith.mulf %32, %36 : vector<8x32xf32>
      %c0_22 = arith.constant 0 : index
      %c0_23 = arith.constant 0 : index
      %38 = vector.load %arg7[%c0_22, %c0_23] : memref<1x32xf32, #tpu.memory_space<vmem>>, vector<1x32xf32>
      %39 = vector.broadcast %38 : vector<1x32xf32> to vector<8x32xf32>
      %40 = arith.mulf %37, %39 : vector<8x32xf32>
      %c0_24 = arith.constant 0 : index
      %c0_25 = arith.constant 0 : index
      %41 = vector.load %arg8[%c0_24, %c0_25] : memref<1x32xf32, #tpu.memory_space<vmem>>, vector<1x32xf32>
      %42 = vector.broadcast %41 : vector<1x32xf32> to vector<8x32xf32>
      %43 = arith.addf %40, %42 : vector<8x32xf32>
      %44 = arith.truncf %43 : vector<8x32xf32> to vector<8x32xbf16>
      %c0_26 = arith.constant 0 : index
      %c0_27 = arith.constant 0 : index
      %c0_28 = arith.constant 0 : index
      %45 = vector.load %arg9[%c0_26, %c0_27, %c0_28] : memref<1x8x32xbf16, #tpu.memory_space<vmem>>, vector<1x8x32xbf16>
      %46 = vector.shape_cast %45 : vector<1x8x32xbf16> to vector<8x32xbf16>
      %47 = vector.shape_cast %44 : vector<8x32xbf16> to vector<1x8x32xbf16>
      tpu.vector_store %arg9[%c0_26, %c0_27, %c0_28], %47 {strides = array<i32>} : memref<1x8x32xbf16, #tpu.memory_space<vmem>>, vector<1x8x32xbf16>,
    } else {
    }
    return
  }
  func.func @transform_0(%arg0: i32, %arg1: i32, %arg2: i32) -> (i32, i32, i32) {
    %c0_i32 = arith.constant 0 : i32
    return %arg0, %arg1, %arg2 : i32, i32, i32
  }
  func.func @transform_1(%arg0: i32, %arg1: i32, %arg2: i32) -> (i32, i32) {
    %c0_i32 = arith.constant 0 : i32
    %c0_i32_0 = arith.constant 0 : i32
    return %arg2, %c0_i32 : i32, i32
  }
  func.func @transform_2(%arg0: i32, %arg1: i32, %arg2: i32) -> (i32, i32) {
    %c0_i32 = arith.constant 0 : i32
    %c0_i32_0 = arith.constant 0 : i32
    %c0_i32_1 = arith.constant 0 : i32
    return %c0_i32, %c0_i32_0 : i32, i32
  }
  func.func @transform_3(%arg0: i32, %arg1: i32, %arg2: i32) -> (i32, i32) {
    %c0_i32 = arith.constant 0 : i32
    %c0_i32_0 = arith.constant 0 : i32
    return %arg1, %c0_i32 : i32, i32
  }
  func.func @transform_4(%arg0: i32, %arg1: i32, %arg2: i32) -> (i32, i32) {
    %c0_i32 = arith.constant 0 : i32
    %c0_i32_0 = arith.constant 0 : i32
    %c0_i32_1 = arith.constant 0 : i32
    return %c0_i32, %c0_i32_0 : i32, i32
  }
  func.func @transform_5(%arg0: i32, %arg1: i32, %arg2: i32) -> (i32, i32) {
    %c0_i32 = arith.constant 0 : i32
    %c0_i32_0 = arith.constant 0 : i32
    %c0_i32_1 = arith.constant 0 : i32
    return %c0_i32, %c0_i32_0 : i32, i32
  }
  func.func @transform_6(%arg0: i32, %arg1: i32, %arg2: i32) -> (i32, i32, i32) {
    %c0_i32 = arith.constant 0 : i32
    %c0_i32_0 = arith.constant 0 : i32
    return %arg0, %arg1, %c0_i32 : i32, i32, i32
  }
}

module attributes {stable_mosaic.version = 11 : i64} {
  func.func @_attention_kernel(%arg0: i32, %arg1: i32, %arg2: memref<1x8x32xbf16, #tpu.memory_space<vmem>>, %arg3: memref<1x8x32xbf16, #tpu.memory_space<vmem>>, %arg4: memref<1x8x32xbf16, #tpu.memory_space<vmem>>, %arg5: memref<1x8x32xbf16, #tpu.memory_space<vmem>>) attributes {dimension_semantics = [#tpu.dimension_semantics<parallel>, #tpu.dimension_semantics<parallel>], iteration_bounds = array<i64: 2, 1>, scalar_prefetch = 0 : i64, scratch_operands = 0 : i64, tpu.core_type = #tpu.core_type<tc>, window_params = [{transform_indices = @transform_0, window_bounds = array<i64: 1, 8, 32>}, {transform_indices = @transform_1, window_bounds = array<i64: 1, 8, 32>}, {transform_indices = @transform_2, window_bounds = array<i64: 1, 8, 32>}, {transform_indices = @transform_3, window_bounds = array<i64: 1, 8, 32>}]} {
    %c0 = arith.constant 0 : index
    %c0_0 = arith.constant 0 : index
    %c0_1 = arith.constant 0 : index
    %0 = vector.load %arg2[%c0, %c0_0, %c0_1] : memref<1x8x32xbf16, #tpu.memory_space<vmem>>, vector<1x8x8xbf16>
    %1 = vector.shape_cast %0 : vector<1x8x8xbf16> to vector<8x8xbf16>
    %c0_2 = arith.constant 0 : index
    %c0_3 = arith.constant 0 : index
    %c0_4 = arith.constant 0 : index
    %2 = vector.load %arg3[%c0_2, %c0_3, %c0_4] : memref<1x8x32xbf16, #tpu.memory_space<vmem>>, vector<1x8x8xbf16>
    %3 = vector.shape_cast %2 : vector<1x8x8xbf16> to vector<8x8xbf16>
    %c0_5 = arith.constant 0 : index
    %c0_6 = arith.constant 0 : index
    %c0_7 = arith.constant 0 : index
    %4 = vector.load %arg4[%c0_5, %c0_6, %c0_7] : memref<1x8x32xbf16, #tpu.memory_space<vmem>>, vector<1x8x8xbf16>
    %5 = vector.shape_cast %4 : vector<1x8x8xbf16> to vector<8x8xbf16>
    %cst = arith.constant dense<0.000000e+00> : vector<8x8xf32>
    %6 = tpu.matmul %1, %3, %cst {dimension_numbers = #tpu.dot_dimension_numbers<[1], [1], [0], [0], [0, 0, 1, 0], [], []>} : vector<8x8xbf16>, vector<8x8xbf16>, vector<8x8xf32> -> vector<8x8xf32>
    %cst_8 = arith.constant 0.353553385 : f32
    %7 = vector.broadcast %cst_8 : f32 to vector<8x8xf32>
    %8 = arith.mulf %6, %7 : vector<8x8xf32>
    %cst_9 = arith.constant dense<0xFF800000> : vector<8xf32>
    %9 = vector.multi_reduction <maximumf>, %8, %cst_9 [1] : vector<8x8xf32> to vector<8xf32>
    %10 = vector.shape_cast %9 : vector<8xf32> to vector<8x1xf32>
    %11 = vector.broadcast %10 : vector<8x1xf32> to vector<8x8xf32>
    %12 = arith.subf %8, %11 : vector<8x8xf32>
    %13 = math.exp %12 : vector<8x8xf32>
    %cst_10 = arith.constant dense<0.000000e+00> : vector<8xf32>
    %14 = vector.multi_reduction <add>, %13, %cst_10 [1] : vector<8x8xf32> to vector<8xf32>
    %15 = vector.shape_cast %14 : vector<8xf32> to vector<8x1xf32>
    %16 = tpu.reciprocal %15 {approx = true} : vector<8x1xf32> -> vector<8x1xf32>
    %17 = vector.broadcast %16 : vector<8x1xf32> to vector<8x8xf32>
    %18 = arith.mulf %13, %17 : vector<8x8xf32>
    %19 = arith.truncf %18 : vector<8x8xf32> to vector<8x8xbf16>
    %cst_11 = arith.constant dense<0.000000e+00> : vector<8x8xf32>
    %20 = tpu.matmul %19, %5, %cst_11 {dimension_numbers = #tpu.dot_dimension_numbers<[1], [0], [0], [1], [0, 0, 1, 1], [], []>} : vector<8x8xbf16>, vector<8x8xbf16>, vector<8x8xf32> -> vector<8x8xf32>
    %c0_12 = arith.constant 0 : index
    %c0_13 = arith.constant 0 : index
    %c8 = arith.constant 8 : index
    %21 = vector.load %arg2[%c0_12, %c0_13, %c8] : memref<1x8x32xbf16, #tpu.memory_space<vmem>>, vector<1x8x8xbf16>
    %22 = vector.shape_cast %21 : vector<1x8x8xbf16> to vector<8x8xbf16>
    %c0_14 = arith.constant 0 : index
    %c0_15 = arith.constant 0 : index
    %c8_16 = arith.constant 8 : index
    %23 = vector.load %arg3[%c0_14, %c0_15, %c8_16] : memref<1x8x32xbf16, #tpu.memory_space<vmem>>, vector<1x8x8xbf16>
    %24 = vector.shape_cast %23 : vector<1x8x8xbf16> to vector<8x8xbf16>
    %c0_17 = arith.constant 0 : index
    %c0_18 = arith.constant 0 : index
    %c8_19 = arith.constant 8 : index
    %25 = vector.load %arg4[%c0_17, %c0_18, %c8_19] : memref<1x8x32xbf16, #tpu.memory_space<vmem>>, vector<1x8x8xbf16>
    %26 = vector.shape_cast %25 : vector<1x8x8xbf16> to vector<8x8xbf16>
    %cst_20 = arith.constant dense<0.000000e+00> : vector<8x8xf32>
    %27 = tpu.matmul %22, %24, %cst_20 {dimension_numbers = #tpu.dot_dimension_numbers<[1], [1], [0], [0], [0, 0, 1, 0], [], []>} : vector<8x8xbf16>, vector<8x8xbf16>, vector<8x8xf32> -> vector<8x8xf32>
    %cst_21 = arith.constant 0.353553385 : f32
    %28 = vector.broadcast %cst_21 : f32 to vector<8x8xf32>
    %29 = arith.mulf %27, %28 : vector<8x8xf32>
    %cst_22 = arith.constant dense<0xFF800000> : vector<8xf32>
    %30 = vector.multi_reduction <maximumf>, %29, %cst_22 [1] : vector<8x8xf32> to vector<8xf32>
    %31 = vector.shape_cast %30 : vector<8xf32> to vector<8x1xf32>
    %32 = vector.broadcast %31 : vector<8x1xf32> to vector<8x8xf32>
    %33 = arith.subf %29, %32 : vector<8x8xf32>
    %34 = math.exp %33 : vector<8x8xf32>
    %cst_23 = arith.constant dense<0.000000e+00> : vector<8xf32>
    %35 = vector.multi_reduction <add>, %34, %cst_23 [1] : vector<8x8xf32> to vector<8xf32>
    %36 = vector.shape_cast %35 : vector<8xf32> to vector<8x1xf32>
    %37 = tpu.reciprocal %36 {approx = true} : vector<8x1xf32> -> vector<8x1xf32>
    %38 = vector.broadcast %37 : vector<8x1xf32> to vector<8x8xf32>
    %39 = arith.mulf %34, %38 : vector<8x8xf32>
    %40 = arith.truncf %39 : vector<8x8xf32> to vector<8x8xbf16>
    %cst_24 = arith.constant dense<0.000000e+00> : vector<8x8xf32>
    %41 = tpu.matmul %40, %26, %cst_24 {dimension_numbers = #tpu.dot_dimension_numbers<[1], [0], [0], [1], [0, 0, 1, 1], [], []>} : vector<8x8xbf16>, vector<8x8xbf16>, vector<8x8xf32> -> vector<8x8xf32>
    %c0_25 = arith.constant 0 : index
    %c0_26 = arith.constant 0 : index
    %c16 = arith.constant 16 : index
    %42 = vector.load %arg2[%c0_25, %c0_26, %c16] : memref<1x8x32xbf16, #tpu.memory_space<vmem>>, vector<1x8x8xbf16>
    %43 = vector.shape_cast %42 : vector<1x8x8xbf16> to vector<8x8xbf16>
    %c0_27 = arith.constant 0 : index
    %c0_28 = arith.constant 0 : index
    %c16_29 = arith.constant 16 : index
    %44 = vector.load %arg3[%c0_27, %c0_28, %c16_29] : memref<1x8x32xbf16, #tpu.memory_space<vmem>>, vector<1x8x8xbf16>
    %45 = vector.shape_cast %44 : vector<1x8x8xbf16> to vector<8x8xbf16>
    %c0_30 = arith.constant 0 : index
    %c0_31 = arith.constant 0 : index
    %c16_32 = arith.constant 16 : index
    %46 = vector.load %arg4[%c0_30, %c0_31, %c16_32] : memref<1x8x32xbf16, #tpu.memory_space<vmem>>, vector<1x8x8xbf16>
    %47 = vector.shape_cast %46 : vector<1x8x8xbf16> to vector<8x8xbf16>
    %cst_33 = arith.constant dense<0.000000e+00> : vector<8x8xf32>
    %48 = tpu.matmul %43, %45, %cst_33 {dimension_numbers = #tpu.dot_dimension_numbers<[1], [1], [0], [0], [0, 0, 1, 0], [], []>} : vector<8x8xbf16>, vector<8x8xbf16>, vector<8x8xf32> -> vector<8x8xf32>
    %cst_34 = arith.constant 0.353553385 : f32
    %49 = vector.broadcast %cst_34 : f32 to vector<8x8xf32>
    %50 = arith.mulf %48, %49 : vector<8x8xf32>
    %cst_35 = arith.constant dense<0xFF800000> : vector<8xf32>
    %51 = vector.multi_reduction <maximumf>, %50, %cst_35 [1] : vector<8x8xf32> to vector<8xf32>
    %52 = vector.shape_cast %51 : vector<8xf32> to vector<8x1xf32>
    %53 = vector.broadcast %52 : vector<8x1xf32> to vector<8x8xf32>
    %54 = arith.subf %50, %53 : vector<8x8xf32>
    %55 = math.exp %54 : vector<8x8xf32>
    %cst_36 = arith.constant dense<0.000000e+00> : vector<8xf32>
    %56 = vector.multi_reduction <add>, %55, %cst_36 [1] : vector<8x8xf32> to vector<8xf32>
    %57 = vector.shape_cast %56 : vector<8xf32> to vector<8x1xf32>
    %58 = tpu.reciprocal %57 {approx = true} : vector<8x1xf32> -> vector<8x1xf32>
    %59 = vector.broadcast %58 : vector<8x1xf32> to vector<8x8xf32>
    %60 = arith.mulf %55, %59 : vector<8x8xf32>
    %61 = arith.truncf %60 : vector<8x8xf32> to vector<8x8xbf16>
    %cst_37 = arith.constant dense<0.000000e+00> : vector<8x8xf32>
    %62 = tpu.matmul %61, %47, %cst_37 {dimension_numbers = #tpu.dot_dimension_numbers<[1], [0], [0], [1], [0, 0, 1, 1], [], []>} : vector<8x8xbf16>, vector<8x8xbf16>, vector<8x8xf32> -> vector<8x8xf32>
    %c0_38 = arith.constant 0 : index
    %c0_39 = arith.constant 0 : index
    %c24 = arith.constant 24 : index
    %63 = vector.load %arg2[%c0_38, %c0_39, %c24] : memref<1x8x32xbf16, #tpu.memory_space<vmem>>, vector<1x8x8xbf16>
    %64 = vector.shape_cast %63 : vector<1x8x8xbf16> to vector<8x8xbf16>
    %c0_40 = arith.constant 0 : index
    %c0_41 = arith.constant 0 : index
    %c24_42 = arith.constant 24 : index
    %65 = vector.load %arg3[%c0_40, %c0_41, %c24_42] : memref<1x8x32xbf16, #tpu.memory_space<vmem>>, vector<1x8x8xbf16>
    %66 = vector.shape_cast %65 : vector<1x8x8xbf16> to vector<8x8xbf16>
    %c0_43 = arith.constant 0 : index
    %c0_44 = arith.constant 0 : index
    %c24_45 = arith.constant 24 : index
    %67 = vector.load %arg4[%c0_43, %c0_44, %c24_45] : memref<1x8x32xbf16, #tpu.memory_space<vmem>>, vector<1x8x8xbf16>
    %68 = vector.shape_cast %67 : vector<1x8x8xbf16> to vector<8x8xbf16>
    %cst_46 = arith.constant dense<0.000000e+00> : vector<8x8xf32>
    %69 = tpu.matmul %64, %66, %cst_46 {dimension_numbers = #tpu.dot_dimension_numbers<[1], [1], [0], [0], [0, 0, 1, 0], [], []>} : vector<8x8xbf16>, vector<8x8xbf16>, vector<8x8xf32> -> vector<8x8xf32>
    %cst_47 = arith.constant 0.353553385 : f32
    %70 = vector.broadcast %cst_47 : f32 to vector<8x8xf32>
    %71 = arith.mulf %69, %70 : vector<8x8xf32>
    %cst_48 = arith.constant dense<0xFF800000> : vector<8xf32>
    %72 = vector.multi_reduction <maximumf>, %71, %cst_48 [1] : vector<8x8xf32> to vector<8xf32>
    %73 = vector.shape_cast %72 : vector<8xf32> to vector<8x1xf32>
    %74 = vector.broadcast %73 : vector<8x1xf32> to vector<8x8xf32>
    %75 = arith.subf %71, %74 : vector<8x8xf32>
    %76 = math.exp %75 : vector<8x8xf32>
    %cst_49 = arith.constant dense<0.000000e+00> : vector<8xf32>
    %77 = vector.multi_reduction <add>, %76, %cst_49 [1] : vector<8x8xf32> to vector<8xf32>
    %78 = vector.shape_cast %77 : vector<8xf32> to vector<8x1xf32>
    %79 = tpu.reciprocal %78 {approx = true} : vector<8x1xf32> -> vector<8x1xf32>
    %80 = vector.broadcast %79 : vector<8x1xf32> to vector<8x8xf32>
    %81 = arith.mulf %76, %80 : vector<8x8xf32>
    %82 = arith.truncf %81 : vector<8x8xf32> to vector<8x8xbf16>
    %cst_50 = arith.constant dense<0.000000e+00> : vector<8x8xf32>
    %83 = tpu.matmul %82, %68, %cst_50 {dimension_numbers = #tpu.dot_dimension_numbers<[1], [0], [0], [1], [0, 0, 1, 1], [], []>} : vector<8x8xbf16>, vector<8x8xbf16>, vector<8x8xf32> -> vector<8x8xf32>
    %84 = tpu.concatenate %20, %41, %62, %83 in 1 : vector<8x8xf32>, vector<8x8xf32>, vector<8x8xf32>, vector<8x8xf32> -> vector<8x32xf32>
    %85 = arith.truncf %84 : vector<8x32xf32> to vector<8x32xbf16>
    %c0_51 = arith.constant 0 : index
    %c0_52 = arith.constant 0 : index
    %c0_53 = arith.constant 0 : index
    %86 = vector.load %arg5[%c0_51, %c0_52, %c0_53] : memref<1x8x32xbf16, #tpu.memory_space<vmem>>, vector<1x8x32xbf16>
    %87 = vector.shape_cast %86 : vector<1x8x32xbf16> to vector<8x32xbf16>
    %88 = vector.shape_cast %85 : vector<8x32xbf16> to vector<1x8x32xbf16>
    tpu.vector_store %arg5[%c0_51, %c0_52, %c0_53], %88 {strides = array<i32>} : memref<1x8x32xbf16, #tpu.memory_space<vmem>>, vector<1x8x32xbf16>,
    return
  }
  func.func @transform_0(%arg0: i32, %arg1: i32) -> (i32, i32, i32) {
    %c0_i32 = arith.constant 0 : i32
    %c0_i32_0 = arith.constant 0 : i32
    return %arg0, %arg1, %c0_i32 : i32, i32, i32
  }
  func.func @transform_1(%arg0: i32, %arg1: i32) -> (i32, i32, i32) {
    %c0_i32 = arith.constant 0 : i32
    %c0_i32_0 = arith.constant 0 : i32
    %c0_i32_1 = arith.constant 0 : i32
    return %arg0, %c0_i32, %c0_i32_0 : i32, i32, i32
  }
  func.func @transform_2(%arg0: i32, %arg1: i32) -> (i32, i32, i32) {
    %c0_i32 = arith.constant 0 : i32
    %c0_i32_0 = arith.constant 0 : i32
    %c0_i32_1 = arith.constant 0 : i32
    return %arg0, %c0_i32, %c0_i32_0 : i32, i32, i32
  }
  func.func @transform_3(%arg0: i32, %arg1: i32) -> (i32, i32, i32) {
    %c0_i32 = arith.constant 0 : i32
    %c0_i32_0 = arith.constant 0 : i32
    return %arg0, %arg1, %c0_i32 : i32, i32, i32
  }
}

module attributes {stable_mosaic.version = 11 : i64} {
  func.func @_linear_add_ln_kernel(%arg0: i32, %arg1: i32, %arg2: memref<16x32xbf16, #tpu.memory_space<vmem>>, %arg3: memref<32x32xbf16, #tpu.memory_space<vmem>>, %arg4: memref<1x32xf32, #tpu.memory_space<vmem>>, %arg5: memref<16x32xbf16, #tpu.memory_space<vmem>>, %arg6: memref<1x32xf32, #tpu.memory_space<vmem>>, %arg7: memref<1x32xf32, #tpu.memory_space<vmem>>, %arg8: memref<16x32xbf16, #tpu.memory_space<vmem>>, %arg9: memref<16x32xf32, #tpu.memory_space<vmem>>) attributes {dimension_semantics = [#tpu.dimension_semantics<parallel>, #tpu.dimension_semantics<arbitrary>], iteration_bounds = array<i64: 1, 1>, scalar_prefetch = 0 : i64, scratch_operands = 1 : i64, tpu.core_type = #tpu.core_type<tc>, window_params = [{transform_indices = @transform_0, window_bounds = array<i64: 16, 32>}, {transform_indices = @transform_1, window_bounds = array<i64: 32, 32>}, {pipeline_mode = #tpu.pipeline_mode<synchronous>, transform_indices = @transform_2, window_bounds = array<i64: 1, 32>}, {transform_indices = @transform_3, window_bounds = array<i64: 16, 32>}, {pipeline_mode = #tpu.pipeline_mode<synchronous>, transform_indices = @transform_4, window_bounds = array<i64: 1, 32>}, {pipeline_mode = #tpu.pipeline_mode<synchronous>, transform_indices = @transform_5, window_bounds = array<i64: 1, 32>}, {transform_indices = @transform_6, window_bounds = array<i64: 16, 32>}]} {
    %c0_i32 = arith.constant 0 : i32
    %0 = arith.cmpi eq, %arg1, %c0_i32 : i32
    %1 = arith.extui %0 : i1 to i32
    %c0_i32_0 = arith.constant 0 : i32
    %2 = arith.cmpi ne, %1, %c0_i32_0 : i32
    scf.if %2 {
      %cst_10 = arith.constant 0.000000e+00 : f32
      %12 = vector.broadcast %cst_10 : f32 to vector<16x32xf32>
      %c0_11 = arith.constant 0 : index
      %c0_12 = arith.constant 0 : index
      %13 = vector.load %arg9[%c0_11, %c0_12] : memref<16x32xf32, #tpu.memory_space<vmem>>, vector<16x32xf32>
      tpu.vector_store %arg9[%c0_11, %c0_12], %12 {strides = array<i32>} : memref<16x32xf32, #tpu.memory_space<vmem>>, vector<16x32xf32>,
    } else {
    }
    %c0 = arith.constant 0 : index
    %c0_1 = arith.constant 0 : index
    %3 = vector.load %arg9[%c0, %c0_1] : memref<16x32xf32, #tpu.memory_space<vmem>>, vector<16x32xf32>
    %c0_2 = arith.constant 0 : index
    %c0_3 = arith.constant 0 : index
    %4 = vector.load %arg2[%c0_2, %c0_3] : memref<16x32xbf16, #tpu.memory_space<vmem>>, vector<16x32xbf16>
    %c0_4 = arith.constant 0 : index
    %c0_5 = arith.constant 0 : index
    %5 = vector.load %arg3[%c0_4, %c0_5] : memref<32x32xbf16, #tpu.memory_space<vmem>>, vector<32x32xbf16>
    %cst = arith.constant dense<0.000000e+00> : vector<16x32xf32>
    %6 = tpu.matmul %4, %5, %cst {dimension_numbers = #tpu.dot_dimension_numbers<[1], [0], [0], [1], [0, 0, 1, 1], [], []>} : vector<16x32xbf16>, vector<32x32xbf16>, vector<16x32xf32> -> vector<16x32xf32>
    %7 = arith.addf %3, %6 : vector<16x32xf32>
    %c0_6 = arith.constant 0 : index
    %c0_7 = arith.constant 0 : index
    %8 = vector.load %arg9[%c0_6, %c0_7] : memref<16x32xf32, #tpu.memory_space<vmem>>, vector<16x32xf32>
    tpu.vector_store %arg9[%c0_6, %c0_7], %7 {strides = array<i32>} : memref<16x32xf32, #tpu.memory_space<vmem>>, vector<16x32xf32>,
    %c0_i32_8 = arith.constant 0 : i32
    %9 = arith.cmpi eq, %arg1, %c0_i32_8 : i32
    %10 = arith.extui %9 : i1 to i32
    %c0_i32_9 = arith.constant 0 : i32
    %11 = arith.cmpi ne, %10, %c0_i32_9 : i32
    scf.if %11 {
      %c0_10 = arith.constant 0 : index
      %c0_11 = arith.constant 0 : index
      %12 = vector.load %arg9[%c0_10, %c0_11] : memref<16x32xf32, #tpu.memory_space<vmem>>, vector<16x32xf32>
      %c0_12 = arith.constant 0 : index
      %c0_13 = arith.constant 0 : index
      %13 = vector.load %arg4[%c0_12, %c0_13] : memref<1x32xf32, #tpu.memory_space<vmem>>, vector<1x32xf32>
      %14 = vector.broadcast %13 : vector<1x32xf32> to vector<16x32xf32>
      %15 = arith.addf %12, %14 : vector<16x32xf32>
      %c0_14 = arith.constant 0 : index
      %c0_15 = arith.constant 0 : index
      %16 = vector.load %arg5[%c0_14, %c0_15] : memref<16x32xbf16, #tpu.memory_space<vmem>>, vector<16x32xbf16>
      %17 = arith.extf %16 : vector<16x32xbf16> to vector<16x32xf32>
      %18 = arith.addf %15, %17 : vector<16x32xf32>
      %cst_16 = arith.constant dense<0.000000e+00> : vector<16xf32>
      %19 = vector.multi_reduction <add>, %18, %cst_16 [1] : vector<16x32xf32> to vector<16xf32>
      %20 = vector.shape_cast %19 : vector<16xf32> to vector<16x1xf32>
      %cst_17 = arith.constant 3.200000e+01 : f32
      %21 = vector.broadcast %cst_17 : f32 to vector<16x1xf32>
      %22 = arith.divf %20, %21 : vector<16x1xf32>
      %23 = vector.broadcast %22 : vector<16x1xf32> to vector<16x32xf32>
      %24 = arith.subf %18, %23 : vector<16x32xf32>
      %25 = arith.mulf %24, %24 : vector<16x32xf32>
      %cst_18 = arith.constant dense<0.000000e+00> : vector<16xf32>
      %26 = vector.multi_reduction <add>, %25, %cst_18 [1] : vector<16x32xf32> to vector<16xf32>
      %27 = vector.shape_cast %26 : vector<16xf32> to vector<16x1xf32>
      %cst_19 = arith.constant 3.200000e+01 : f32
      %28 = vector.broadcast %cst_19 : f32 to vector<16x1xf32>
      %29 = arith.divf %27, %28 : vector<16x1xf32>
      %30 = vector.broadcast %22 : vector<16x1xf32> to vector<16x32xf32>
      %31 = arith.subf %18, %30 : vector<16x32xf32>
      %cst_20 = arith.constant 9.99999974E-6 : f32
      %32 = vector.broadcast %cst_20 : f32 to vector<16x1xf32>
      %33 = arith.addf %29, %32 : vector<16x1xf32>
      %34 = math.rsqrt %33 : vector<16x1xf32>
      %35 = vector.broadcast %34 : vector<16x1xf32> to vector<16x32xf32>
      %36 = arith.mulf %31, %35 : vector<16x32xf32>
      %c0_21 = arith.constant 0 : index
      %c0_22 = arith.constant 0 : index
      %37 = vector.load %arg6[%c0_21, %c0_22] : memref<1x32xf32, #tpu.memory_space<vmem>>, vector<1x32xf32>
      %38 = vector.broadcast %37 : vector<1x32xf32> to vector<16x32xf32>
      %39 = arith.mulf %36, %38 : vector<16x32xf32>
      %c0_23 = arith.constant 0 : index
      %c0_24 = arith.constant 0 : index
      %40 = vector.load %arg7[%c0_23, %c0_24] : memref<1x32xf32, #tpu.memory_space<vmem>>, vector<1x32xf32>
      %41 = vector.broadcast %40 : vector<1x32xf32> to vector<16x32xf32>
      %42 = arith.addf %39, %41 : vector<16x32xf32>
      %43 = arith.truncf %42 : vector<16x32xf32> to vector<16x32xbf16>
      %c0_25 = arith.constant 0 : index
      %c0_26 = arith.constant 0 : index
      %44 = vector.load %arg8[%c0_25, %c0_26] : memref<16x32xbf16, #tpu.memory_space<vmem>>, vector<16x32xbf16>
      tpu.vector_store %arg8[%c0_25, %c0_26], %43 {strides = array<i32>} : memref<16x32xbf16, #tpu.memory_space<vmem>>, vector<16x32xbf16>,
    } else {
    }
    return
  }
  func.func @transform_0(%arg0: i32, %arg1: i32) -> (i32, i32) {
    %c0_i32 = arith.constant 0 : i32
    return %arg0, %arg1 : i32, i32
  }
  func.func @transform_1(%arg0: i32, %arg1: i32) -> (i32, i32) {
    %c0_i32 = arith.constant 0 : i32
    %c0_i32_0 = arith.constant 0 : i32
    return %arg1, %c0_i32 : i32, i32
  }
  func.func @transform_2(%arg0: i32, %arg1: i32) -> (i32, i32) {
    %c0_i32 = arith.constant 0 : i32
    %c0_i32_0 = arith.constant 0 : i32
    %c0_i32_1 = arith.constant 0 : i32
    return %c0_i32, %c0_i32_0 : i32, i32
  }
  func.func @transform_3(%arg0: i32, %arg1: i32) -> (i32, i32) {
    %c0_i32 = arith.constant 0 : i32
    %c0_i32_0 = arith.constant 0 : i32
    return %arg0, %c0_i32 : i32, i32
  }
  func.func @transform_4(%arg0: i32, %arg1: i32) -> (i32, i32) {
    %c0_i32 = arith.constant 0 : i32
    %c0_i32_0 = arith.constant 0 : i32
    %c0_i32_1 = arith.constant 0 : i32
    return %c0_i32, %c0_i32_0 : i32, i32
  }
  func.func @transform_5(%arg0: i32, %arg1: i32) -> (i32, i32) {
    %c0_i32 = arith.constant 0 : i32
    %c0_i32_0 = arith.constant 0 : i32
    %c0_i32_1 = arith.constant 0 : i32
    return %c0_i32, %c0_i32_0 : i32, i32
  }
  func.func @transform_6(%arg0: i32, %arg1: i32) -> (i32, i32) {
    %c0_i32 = arith.constant 0 : i32
    %c0_i32_0 = arith.constant 0 : i32
    return %arg0, %c0_i32 : i32, i32
  }
}

module attributes {stable_mosaic.version = 11 : i64} {
  func.func @_linear_kernel(%arg0: i32, %arg1: i32, %arg2: i32, %arg3: memref<16x32xbf16, #tpu.memory_space<vmem>>, %arg4: memref<32x128xbf16, #tpu.memory_space<vmem>>, %arg5: memref<1x128xf32, #tpu.memory_space<vmem>>, %arg6: memref<16x128xf32, #tpu.memory_space<vmem>>, %arg7: memref<16x128xf32, #tpu.memory_space<vmem>>) attributes {dimension_semantics = [#tpu.dimension_semantics<parallel>, #tpu.dimension_semantics<parallel>, #tpu.dimension_semantics<arbitrary>], iteration_bounds = array<i64: 1, 1, 1>, scalar_prefetch = 0 : i64, scratch_operands = 1 : i64, tpu.core_type = #tpu.core_type<tc>, window_params = [{transform_indices = @transform_0, window_bounds = array<i64: 16, 32>}, {transform_indices = @transform_1, window_bounds = array<i64: 32, 128>}, {transform_indices = @transform_2, window_bounds = array<i64: 1, 128>}, {transform_indices = @transform_3, window_bounds = array<i64: 16, 128>}]} {
    %c0_i32 = arith.constant 0 : i32
    %0 = arith.cmpi eq, %arg2, %c0_i32 : i32
    %1 = arith.extui %0 : i1 to i32
    %c0_i32_0 = arith.constant 0 : i32
    %2 = arith.cmpi ne, %1, %c0_i32_0 : i32
    scf.if %2 {
      %cst_10 = arith.constant 0.000000e+00 : f32
      %12 = vector.broadcast %cst_10 : f32 to vector<16x128xf32>
      %c0_11 = arith.constant 0 : index
      %c0_12 = arith.constant 0 : index
      %13 = vector.load %arg7[%c0_11, %c0_12] : memref<16x128xf32, #tpu.memory_space<vmem>>, vector<16x128xf32>
      tpu.vector_store %arg7[%c0_11, %c0_12], %12 {strides = array<i32>} : memref<16x128xf32, #tpu.memory_space<vmem>>, vector<16x128xf32>,
    } else {
    }
    %c0 = arith.constant 0 : index
    %c0_1 = arith.constant 0 : index
    %3 = vector.load %arg7[%c0, %c0_1] : memref<16x128xf32, #tpu.memory_space<vmem>>, vector<16x128xf32>
    %c0_2 = arith.constant 0 : index
    %c0_3 = arith.constant 0 : index
    %4 = vector.load %arg3[%c0_2, %c0_3] : memref<16x32xbf16, #tpu.memory_space<vmem>>, vector<16x32xbf16>
    %c0_4 = arith.constant 0 : index
    %c0_5 = arith.constant 0 : index
    %5 = vector.load %arg4[%c0_4, %c0_5] : memref<32x128xbf16, #tpu.memory_space<vmem>>, vector<32x128xbf16>
    %cst = arith.constant dense<0.000000e+00> : vector<16x128xf32>
    %6 = tpu.matmul %4, %5, %cst {dimension_numbers = #tpu.dot_dimension_numbers<[1], [0], [0], [1], [0, 0, 1, 1], [], []>} : vector<16x32xbf16>, vector<32x128xbf16>, vector<16x128xf32> -> vector<16x128xf32>
    %7 = arith.addf %3, %6 : vector<16x128xf32>
    %c0_6 = arith.constant 0 : index
    %c0_7 = arith.constant 0 : index
    %8 = vector.load %arg7[%c0_6, %c0_7] : memref<16x128xf32, #tpu.memory_space<vmem>>, vector<16x128xf32>
    tpu.vector_store %arg7[%c0_6, %c0_7], %7 {strides = array<i32>} : memref<16x128xf32, #tpu.memory_space<vmem>>, vector<16x128xf32>,
    %c0_i32_8 = arith.constant 0 : i32
    %9 = arith.cmpi eq, %arg2, %c0_i32_8 : i32
    %10 = arith.extui %9 : i1 to i32
    %c0_i32_9 = arith.constant 0 : i32
    %11 = arith.cmpi ne, %10, %c0_i32_9 : i32
    scf.if %11 {
      %c0_10 = arith.constant 0 : index
      %c0_11 = arith.constant 0 : index
      %12 = vector.load %arg7[%c0_10, %c0_11] : memref<16x128xf32, #tpu.memory_space<vmem>>, vector<16x128xf32>
      %c0_12 = arith.constant 0 : index
      %c0_13 = arith.constant 0 : index
      %13 = vector.load %arg5[%c0_12, %c0_13] : memref<1x128xf32, #tpu.memory_space<vmem>>, vector<1x128xf32>
      %14 = vector.broadcast %13 : vector<1x128xf32> to vector<16x128xf32>
      %15 = arith.addf %12, %14 : vector<16x128xf32>
      %c0_14 = arith.constant 0 : index
      %c0_15 = arith.constant 0 : index
      %16 = vector.load %arg6[%c0_14, %c0_15] : memref<16x128xf32, #tpu.memory_space<vmem>>, vector<16x128xf32>
      tpu.vector_store %arg6[%c0_14, %c0_15], %15 {strides = array<i32>} : memref<16x128xf32, #tpu.memory_space<vmem>>, vector<16x128xf32>,
    } else {
    }
    return
  }
  func.func @transform_0(%arg0: i32, %arg1: i32, %arg2: i32) -> (i32, i32) {
    %c0_i32 = arith.constant 0 : i32
    return %arg0, %arg2 : i32, i32
  }
  func.func @transform_1(%arg0: i32, %arg1: i32, %arg2: i32) -> (i32, i32) {
    %c0_i32 = arith.constant 0 : i32
    return %arg2, %arg1 : i32, i32
  }
  func.func @transform_2(%arg0: i32, %arg1: i32, %arg2: i32) -> (i32, i32) {
    %c0_i32 = arith.constant 0 : i32
    %c0_i32_0 = arith.constant 0 : i32
    return %c0_i32, %arg1 : i32, i32
  }
  func.func @transform_3(%arg0: i32, %arg1: i32, %arg2: i32) -> (i32, i32) {
    %c0_i32 = arith.constant 0 : i32
    return %arg0, %arg1 : i32, i32
  }
}

module attributes {stable_mosaic.version = 11 : i64} {
  func.func @_ffn_ln_kernel(%arg0: i32, %arg1: i32, %arg2: memref<16x32xbf16, #tpu.memory_space<vmem>>, %arg3: memref<32x128xbf16, #tpu.memory_space<vmem>>, %arg4: memref<1x128xf32, #tpu.memory_space<vmem>>, %arg5: memref<128x32xbf16, #tpu.memory_space<vmem>>, %arg6: memref<1x32xf32, #tpu.memory_space<vmem>>, %arg7: memref<1x32xf32, #tpu.memory_space<vmem>>, %arg8: memref<1x32xf32, #tpu.memory_space<vmem>>, %arg9: memref<16x32xbf16, #tpu.memory_space<vmem>>, %arg10: memref<16x32xf32, #tpu.memory_space<vmem>>) attributes {dimension_semantics = [#tpu.dimension_semantics<parallel>, #tpu.dimension_semantics<arbitrary>], iteration_bounds = array<i64: 1, 1>, scalar_prefetch = 0 : i64, scratch_operands = 1 : i64, tpu.core_type = #tpu.core_type<tc>, window_params = [{transform_indices = @transform_0, window_bounds = array<i64: 16, 32>}, {transform_indices = @transform_1, window_bounds = array<i64: 32, 128>}, {transform_indices = @transform_2, window_bounds = array<i64: 1, 128>}, {transform_indices = @transform_3, window_bounds = array<i64: 128, 32>}, {pipeline_mode = #tpu.pipeline_mode<synchronous>, transform_indices = @transform_4, window_bounds = array<i64: 1, 32>}, {pipeline_mode = #tpu.pipeline_mode<synchronous>, transform_indices = @transform_5, window_bounds = array<i64: 1, 32>}, {pipeline_mode = #tpu.pipeline_mode<synchronous>, transform_indices = @transform_6, window_bounds = array<i64: 1, 32>}, {transform_indices = @transform_7, window_bounds = array<i64: 16, 32>}]} {
    %c0_i32 = arith.constant 0 : i32
    %0 = arith.cmpi eq, %arg1, %c0_i32 : i32
    %1 = arith.extui %0 : i1 to i32
    %c0_i32_0 = arith.constant 0 : i32
    %2 = arith.cmpi ne, %1, %c0_i32_0 : i32
    scf.if %2 {
      %cst_30 = arith.constant 0.000000e+00 : f32
      %58 = vector.broadcast %cst_30 : f32 to vector<16x32xf32>
      %c0_31 = arith.constant 0 : index
      %c0_32 = arith.constant 0 : index
      %59 = vector.load %arg10[%c0_31, %c0_32] : memref<16x32xf32, #tpu.memory_space<vmem>>, vector<16x32xf32>
      tpu.vector_store %arg10[%c0_31, %c0_32], %58 {strides = array<i32>} : memref<16x32xf32, #tpu.memory_space<vmem>>, vector<16x32xf32>,
    } else {
    }
    %c0 = arith.constant 0 : index
    %c0_1 = arith.constant 0 : index
    %3 = vector.load %arg2[%c0, %c0_1] : memref<16x32xbf16, #tpu.memory_space<vmem>>, vector<16x32xbf16>
    %c0_2 = arith.constant 0 : index
    %c0_3 = arith.constant 0 : index
    %4 = vector.load %arg3[%c0_2, %c0_3] : memref<32x128xbf16, #tpu.memory_space<vmem>>, vector<32x128xbf16>
    %cst = arith.constant dense<0.000000e+00> : vector<16x128xf32>
    %5 = tpu.matmul %3, %4, %cst {dimension_numbers = #tpu.dot_dimension_numbers<[1], [0], [0], [1], [0, 0, 1, 1], [], []>} : vector<16x32xbf16>, vector<32x128xbf16>, vector<16x128xf32> -> vector<16x128xf32>
    %c0_4 = arith.constant 0 : index
    %c0_5 = arith.constant 0 : index
    %6 = vector.load %arg4[%c0_4, %c0_5] : memref<1x128xf32, #tpu.memory_space<vmem>>, vector<1x128xf32>
    %7 = vector.broadcast %6 : vector<1x128xf32> to vector<16x128xf32>
    %8 = arith.addf %5, %7 : vector<16x128xf32>
    %cst_6 = arith.constant 5.000000e-01 : f32
    %9 = vector.broadcast %cst_6 : f32 to vector<16x128xf32>
    %10 = arith.mulf %9, %8 : vector<16x128xf32>
    %cst_7 = arith.constant 0.707106769 : f32
    %11 = vector.broadcast %cst_7 : f32 to vector<16x128xf32>
    %12 = arith.mulf %8, %11 : vector<16x128xf32>
    %13 = math.absf %12 : vector<16x128xf32>
    %cst_8 = arith.constant 0.327591091 : f32
    %14 = vector.broadcast %cst_8 : f32 to vector<16x128xf32>
    %15 = arith.mulf %14, %13 : vector<16x128xf32>
    %cst_9 = arith.constant 1.000000e+00 : f32
    %16 = vector.broadcast %cst_9 : f32 to vector<16x128xf32>
    %17 = arith.addf %16, %15 : vector<16x128xf32>
    %cst_10 = arith.constant 1.000000e+00 : f32
    %18 = vector.broadcast %cst_10 : f32 to vector<16x128xf32>
    %19 = arith.divf %18, %17 : vector<16x128xf32>
    %cst_11 = arith.constant 1.06140542 : f32
    %20 = vector.broadcast %cst_11 : f32 to vector<16x128xf32>
    %21 = arith.mulf %19, %20 : vector<16x128xf32>
    %cst_12 = arith.constant -1.45315206 : f32
    %22 = vector.broadcast %cst_12 : f32 to vector<16x128xf32>
    %23 = arith.addf %22, %21 : vector<16x128xf32>
    %24 = arith.mulf %19, %23 : vector<16x128xf32>
    %cst_13 = arith.constant 1.42141378 : f32
    %25 = vector.broadcast %cst_13 : f32 to vector<16x128xf32>
    %26 = arith.addf %25, %24 : vector<16x128xf32>
    %27 = arith.mulf %19, %26 : vector<16x128xf32>
    %cst_14 = arith.constant -0.284496725 : f32
    %28 = vector.broadcast %cst_14 : f32 to vector<16x128xf32>
    %29 = arith.addf %28, %27 : vector<16x128xf32>
    %30 = arith.mulf %19, %29 : vector<16x128xf32>
    %cst_15 = arith.constant 0.254829586 : f32
    %31 = vector.broadcast %cst_15 : f32 to vector<16x128xf32>
    %32 = arith.addf %31, %30 : vector<16x128xf32>
    %33 = arith.mulf %19, %32 : vector<16x128xf32>
    %cst_16 = arith.constant 0.000000e+00 : f32
    %34 = vector.broadcast %cst_16 : f32 to vector<16x128xf32>
    %35 = arith.subf %34, %13 : vector<16x128xf32>
    %36 = arith.mulf %35, %13 : vector<16x128xf32>
    %37 = math.exp %36 : vector<16x128xf32>
    %38 = arith.mulf %33, %37 : vector<16x128xf32>
    %cst_17 = arith.constant 1.000000e+00 : f32
    %39 = vector.broadcast %cst_17 : f32 to vector<16x128xf32>
    %40 = arith.subf %39, %38 : vector<16x128xf32>
    %cst_18 = arith.constant 0.000000e+00 : f32
    %41 = vector.broadcast %cst_18 : f32 to vector<16x128xf32>
    %42 = arith.cmpf oge, %12, %41 : vector<16x128xf32>
    %cst_19 = arith.constant 0.000000e+00 : f32
    %43 = vector.broadcast %cst_19 : f32 to vector<16x128xf32>
    %44 = arith.subf %43, %40 : vector<16x128xf32>
    %45 = arith.select %42, %40, %44 : vector<16x128xi1>, vector<16x128xf32>
    %cst_20 = arith.constant 1.000000e+00 : f32
    %46 = vector.broadcast %cst_20 : f32 to vector<16x128xf32>
    %47 = arith.addf %46, %45 : vector<16x128xf32>
    %48 = arith.mulf %10, %47 : vector<16x128xf32>
    %c0_21 = arith.constant 0 : index
    %c0_22 = arith.constant 0 : index
    %49 = vector.load %arg10[%c0_21, %c0_22] : memref<16x32xf32, #tpu.memory_space<vmem>>, vector<16x32xf32>
    %50 = arith.truncf %48 : vector<16x128xf32> to vector<16x128xbf16>
    %c0_23 = arith.constant 0 : index
    %c0_24 = arith.constant 0 : index
    %51 = vector.load %arg5[%c0_23, %c0_24] : memref<128x32xbf16, #tpu.memory_space<vmem>>, vector<128x32xbf16>
    %cst_25 = arith.constant dense<0.000000e+00> : vector<16x32xf32>
    %52 = tpu.matmul %50, %51, %cst_25 {dimension_numbers = #tpu.dot_dimension_numbers<[1], [0], [0], [1], [0, 0, 1, 1], [], []>} : vector<16x128xbf16>, vector<128x32xbf16>, vector<16x32xf32> -> vector<16x32xf32>
    %53 = arith.addf %49, %52 : vector<16x32xf32>
    %c0_26 = arith.constant 0 : index
    %c0_27 = arith.constant 0 : index
    %54 = vector.load %arg10[%c0_26, %c0_27] : memref<16x32xf32, #tpu.memory_space<vmem>>, vector<16x32xf32>
    tpu.vector_store %arg10[%c0_26, %c0_27], %53 {strides = array<i32>} : memref<16x32xf32, #tpu.memory_space<vmem>>, vector<16x32xf32>,
    %c0_i32_28 = arith.constant 0 : i32
    %55 = arith.cmpi eq, %arg1, %c0_i32_28 : i32
    %56 = arith.extui %55 : i1 to i32
    %c0_i32_29 = arith.constant 0 : i32
    %57 = arith.cmpi ne, %56, %c0_i32_29 : i32
    scf.if %57 {
      %c0_30 = arith.constant 0 : index
      %c0_31 = arith.constant 0 : index
      %58 = vector.load %arg10[%c0_30, %c0_31] : memref<16x32xf32, #tpu.memory_space<vmem>>, vector<16x32xf32>
      %c0_32 = arith.constant 0 : index
      %c0_33 = arith.constant 0 : index
      %59 = vector.load %arg6[%c0_32, %c0_33] : memref<1x32xf32, #tpu.memory_space<vmem>>, vector<1x32xf32>
      %60 = vector.broadcast %59 : vector<1x32xf32> to vector<16x32xf32>
      %61 = arith.addf %58, %60 : vector<16x32xf32>
      %c0_34 = arith.constant 0 : index
      %c0_35 = arith.constant 0 : index
      %62 = vector.load %arg2[%c0_34, %c0_35] : memref<16x32xbf16, #tpu.memory_space<vmem>>, vector<16x32xbf16>
      %63 = arith.extf %62 : vector<16x32xbf16> to vector<16x32xf32>
      %64 = arith.addf %61, %63 : vector<16x32xf32>
      %cst_36 = arith.constant dense<0.000000e+00> : vector<16xf32>
      %65 = vector.multi_reduction <add>, %64, %cst_36 [1] : vector<16x32xf32> to vector<16xf32>
      %66 = vector.shape_cast %65 : vector<16xf32> to vector<16x1xf32>
      %cst_37 = arith.constant 3.200000e+01 : f32
      %67 = vector.broadcast %cst_37 : f32 to vector<16x1xf32>
      %68 = arith.divf %66, %67 : vector<16x1xf32>
      %69 = vector.broadcast %68 : vector<16x1xf32> to vector<16x32xf32>
      %70 = arith.subf %64, %69 : vector<16x32xf32>
      %71 = arith.mulf %70, %70 : vector<16x32xf32>
      %cst_38 = arith.constant dense<0.000000e+00> : vector<16xf32>
      %72 = vector.multi_reduction <add>, %71, %cst_38 [1] : vector<16x32xf32> to vector<16xf32>
      %73 = vector.shape_cast %72 : vector<16xf32> to vector<16x1xf32>
      %cst_39 = arith.constant 3.200000e+01 : f32
      %74 = vector.broadcast %cst_39 : f32 to vector<16x1xf32>
      %75 = arith.divf %73, %74 : vector<16x1xf32>
      %76 = vector.broadcast %68 : vector<16x1xf32> to vector<16x32xf32>
      %77 = arith.subf %64, %76 : vector<16x32xf32>
      %cst_40 = arith.constant 9.99999974E-6 : f32
      %78 = vector.broadcast %cst_40 : f32 to vector<16x1xf32>
      %79 = arith.addf %75, %78 : vector<16x1xf32>
      %80 = math.rsqrt %79 : vector<16x1xf32>
      %81 = vector.broadcast %80 : vector<16x1xf32> to vector<16x32xf32>
      %82 = arith.mulf %77, %81 : vector<16x32xf32>
      %c0_41 = arith.constant 0 : index
      %c0_42 = arith.constant 0 : index
      %83 = vector.load %arg7[%c0_41, %c0_42] : memref<1x32xf32, #tpu.memory_space<vmem>>, vector<1x32xf32>
      %84 = vector.broadcast %83 : vector<1x32xf32> to vector<16x32xf32>
      %85 = arith.mulf %82, %84 : vector<16x32xf32>
      %c0_43 = arith.constant 0 : index
      %c0_44 = arith.constant 0 : index
      %86 = vector.load %arg8[%c0_43, %c0_44] : memref<1x32xf32, #tpu.memory_space<vmem>>, vector<1x32xf32>
      %87 = vector.broadcast %86 : vector<1x32xf32> to vector<16x32xf32>
      %88 = arith.addf %85, %87 : vector<16x32xf32>
      %89 = arith.truncf %88 : vector<16x32xf32> to vector<16x32xbf16>
      %c0_45 = arith.constant 0 : index
      %c0_46 = arith.constant 0 : index
      %90 = vector.load %arg9[%c0_45, %c0_46] : memref<16x32xbf16, #tpu.memory_space<vmem>>, vector<16x32xbf16>
      tpu.vector_store %arg9[%c0_45, %c0_46], %89 {strides = array<i32>} : memref<16x32xbf16, #tpu.memory_space<vmem>>, vector<16x32xbf16>,
    } else {
    }
    return
  }
  func.func @transform_0(%arg0: i32, %arg1: i32) -> (i32, i32) {
    %c0_i32 = arith.constant 0 : i32
    %c0_i32_0 = arith.constant 0 : i32
    return %arg0, %c0_i32 : i32, i32
  }
  func.func @transform_1(%arg0: i32, %arg1: i32) -> (i32, i32) {
    %c0_i32 = arith.constant 0 : i32
    %c0_i32_0 = arith.constant 0 : i32
    return %c0_i32, %arg1 : i32, i32
  }
  func.func @transform_2(%arg0: i32, %arg1: i32) -> (i32, i32) {
    %c0_i32 = arith.constant 0 : i32
    %c0_i32_0 = arith.constant 0 : i32
    return %c0_i32, %arg1 : i32, i32
  }
  func.func @transform_3(%arg0: i32, %arg1: i32) -> (i32, i32) {
    %c0_i32 = arith.constant 0 : i32
    %c0_i32_0 = arith.constant 0 : i32
    return %arg1, %c0_i32 : i32, i32
  }
  func.func @transform_4(%arg0: i32, %arg1: i32) -> (i32, i32) {
    %c0_i32 = arith.constant 0 : i32
    %c0_i32_0 = arith.constant 0 : i32
    %c0_i32_1 = arith.constant 0 : i32
    return %c0_i32, %c0_i32_0 : i32, i32
  }
  func.func @transform_5(%arg0: i32, %arg1: i32) -> (i32, i32) {
    %c0_i32 = arith.constant 0 : i32
    %c0_i32_0 = arith.constant 0 : i32
    %c0_i32_1 = arith.constant 0 : i32
    return %c0_i32, %c0_i32_0 : i32, i32
  }
  func.func @transform_6(%arg0: i32, %arg1: i32) -> (i32, i32) {
    %c0_i32 = arith.constant 0 : i32
    %c0_i32_0 = arith.constant 0 : i32
    %c0_i32_1 = arith.constant 0 : i32
    return %c0_i32, %c0_i32_0 : i32, i32
  }
  func.func @transform_7(%arg0: i32, %arg1: i32) -> (i32, i32) {
    %c0_i32 = arith.constant 0 : i32
    %c0_i32_0 = arith.constant 0 : i32
    return %arg0, %c0_i32 : i32, i32
  }
}

module attributes {stable_mosaic.version = 11 : i64} {
  func.func @_linear_kernel(%arg0: i32, %arg1: i32, %arg2: i32, %arg3: memref<16x32xbf16, #tpu.memory_space<vmem>>, %arg4: memref<32x32xbf16, #tpu.memory_space<vmem>>, %arg5: memref<1x32xf32, #tpu.memory_space<vmem>>, %arg6: memref<16x32xbf16, #tpu.memory_space<vmem>>, %arg7: memref<16x32xf32, #tpu.memory_space<vmem>>) attributes {dimension_semantics = [#tpu.dimension_semantics<parallel>, #tpu.dimension_semantics<parallel>, #tpu.dimension_semantics<arbitrary>], iteration_bounds = array<i64: 1, 1, 1>, scalar_prefetch = 0 : i64, scratch_operands = 1 : i64, tpu.core_type = #tpu.core_type<tc>, window_params = [{transform_indices = @transform_0, window_bounds = array<i64: 16, 32>}, {transform_indices = @transform_1, window_bounds = array<i64: 32, 32>}, {transform_indices = @transform_2, window_bounds = array<i64: 1, 32>}, {transform_indices = @transform_3, window_bounds = array<i64: 16, 32>}]} {
    %c0_i32 = arith.constant 0 : i32
    %0 = arith.cmpi eq, %arg2, %c0_i32 : i32
    %1 = arith.extui %0 : i1 to i32
    %c0_i32_0 = arith.constant 0 : i32
    %2 = arith.cmpi ne, %1, %c0_i32_0 : i32
    scf.if %2 {
      %cst_10 = arith.constant 0.000000e+00 : f32
      %12 = vector.broadcast %cst_10 : f32 to vector<16x32xf32>
      %c0_11 = arith.constant 0 : index
      %c0_12 = arith.constant 0 : index
      %13 = vector.load %arg7[%c0_11, %c0_12] : memref<16x32xf32, #tpu.memory_space<vmem>>, vector<16x32xf32>
      tpu.vector_store %arg7[%c0_11, %c0_12], %12 {strides = array<i32>} : memref<16x32xf32, #tpu.memory_space<vmem>>, vector<16x32xf32>,
    } else {
    }
    %c0 = arith.constant 0 : index
    %c0_1 = arith.constant 0 : index
    %3 = vector.load %arg7[%c0, %c0_1] : memref<16x32xf32, #tpu.memory_space<vmem>>, vector<16x32xf32>
    %c0_2 = arith.constant 0 : index
    %c0_3 = arith.constant 0 : index
    %4 = vector.load %arg3[%c0_2, %c0_3] : memref<16x32xbf16, #tpu.memory_space<vmem>>, vector<16x32xbf16>
    %c0_4 = arith.constant 0 : index
    %c0_5 = arith.constant 0 : index
    %5 = vector.load %arg4[%c0_4, %c0_5] : memref<32x32xbf16, #tpu.memory_space<vmem>>, vector<32x32xbf16>
    %cst = arith.constant dense<0.000000e+00> : vector<16x32xf32>
    %6 = tpu.matmul %4, %5, %cst {dimension_numbers = #tpu.dot_dimension_numbers<[1], [0], [0], [1], [0, 0, 1, 1], [], []>} : vector<16x32xbf16>, vector<32x32xbf16>, vector<16x32xf32> -> vector<16x32xf32>
    %7 = arith.addf %3, %6 : vector<16x32xf32>
    %c0_6 = arith.constant 0 : index
    %c0_7 = arith.constant 0 : index
    %8 = vector.load %arg7[%c0_6, %c0_7] : memref<16x32xf32, #tpu.memory_space<vmem>>, vector<16x32xf32>
    tpu.vector_store %arg7[%c0_6, %c0_7], %7 {strides = array<i32>} : memref<16x32xf32, #tpu.memory_space<vmem>>, vector<16x32xf32>,
    %c0_i32_8 = arith.constant 0 : i32
    %9 = arith.cmpi eq, %arg2, %c0_i32_8 : i32
    %10 = arith.extui %9 : i1 to i32
    %c0_i32_9 = arith.constant 0 : i32
    %11 = arith.cmpi ne, %10, %c0_i32_9 : i32
    scf.if %11 {
      %c0_10 = arith.constant 0 : index
      %c0_11 = arith.constant 0 : index
      %12 = vector.load %arg7[%c0_10, %c0_11] : memref<16x32xf32, #tpu.memory_space<vmem>>, vector<16x32xf32>
      %c0_12 = arith.constant 0 : index
      %c0_13 = arith.constant 0 : index
      %13 = vector.load %arg5[%c0_12, %c0_13] : memref<1x32xf32, #tpu.memory_space<vmem>>, vector<1x32xf32>
      %14 = vector.broadcast %13 : vector<1x32xf32> to vector<16x32xf32>
      %15 = arith.addf %12, %14 : vector<16x32xf32>
      %cst_14 = arith.constant 5.000000e-01 : f32
      %16 = vector.broadcast %cst_14 : f32 to vector<16x32xf32>
      %17 = arith.mulf %16, %15 : vector<16x32xf32>
      %cst_15 = arith.constant 0.707106769 : f32
      %18 = vector.broadcast %cst_15 : f32 to vector<16x32xf32>
      %19 = arith.mulf %15, %18 : vector<16x32xf32>
      %20 = math.absf %19 : vector<16x32xf32>
      %cst_16 = arith.constant 0.327591091 : f32
      %21 = vector.broadcast %cst_16 : f32 to vector<16x32xf32>
      %22 = arith.mulf %21, %20 : vector<16x32xf32>
      %cst_17 = arith.constant 1.000000e+00 : f32
      %23 = vector.broadcast %cst_17 : f32 to vector<16x32xf32>
      %24 = arith.addf %23, %22 : vector<16x32xf32>
      %cst_18 = arith.constant 1.000000e+00 : f32
      %25 = vector.broadcast %cst_18 : f32 to vector<16x32xf32>
      %26 = arith.divf %25, %24 : vector<16x32xf32>
      %cst_19 = arith.constant 1.06140542 : f32
      %27 = vector.broadcast %cst_19 : f32 to vector<16x32xf32>
      %28 = arith.mulf %26, %27 : vector<16x32xf32>
      %cst_20 = arith.constant -1.45315206 : f32
      %29 = vector.broadcast %cst_20 : f32 to vector<16x32xf32>
      %30 = arith.addf %29, %28 : vector<16x32xf32>
      %31 = arith.mulf %26, %30 : vector<16x32xf32>
      %cst_21 = arith.constant 1.42141378 : f32
      %32 = vector.broadcast %cst_21 : f32 to vector<16x32xf32>
      %33 = arith.addf %32, %31 : vector<16x32xf32>
      %34 = arith.mulf %26, %33 : vector<16x32xf32>
      %cst_22 = arith.constant -0.284496725 : f32
      %35 = vector.broadcast %cst_22 : f32 to vector<16x32xf32>
      %36 = arith.addf %35, %34 : vector<16x32xf32>
      %37 = arith.mulf %26, %36 : vector<16x32xf32>
      %cst_23 = arith.constant 0.254829586 : f32
      %38 = vector.broadcast %cst_23 : f32 to vector<16x32xf32>
      %39 = arith.addf %38, %37 : vector<16x32xf32>
      %40 = arith.mulf %26, %39 : vector<16x32xf32>
      %cst_24 = arith.constant 0.000000e+00 : f32
      %41 = vector.broadcast %cst_24 : f32 to vector<16x32xf32>
      %42 = arith.subf %41, %20 : vector<16x32xf32>
      %43 = arith.mulf %42, %20 : vector<16x32xf32>
      %44 = math.exp %43 : vector<16x32xf32>
      %45 = arith.mulf %40, %44 : vector<16x32xf32>
      %cst_25 = arith.constant 1.000000e+00 : f32
      %46 = vector.broadcast %cst_25 : f32 to vector<16x32xf32>
      %47 = arith.subf %46, %45 : vector<16x32xf32>
      %cst_26 = arith.constant 0.000000e+00 : f32
      %48 = vector.broadcast %cst_26 : f32 to vector<16x32xf32>
      %49 = arith.cmpf oge, %19, %48 : vector<16x32xf32>
      %cst_27 = arith.constant 0.000000e+00 : f32
      %50 = vector.broadcast %cst_27 : f32 to vector<16x32xf32>
      %51 = arith.subf %50, %47 : vector<16x32xf32>
      %52 = arith.select %49, %47, %51 : vector<16x32xi1>, vector<16x32xf32>
      %cst_28 = arith.constant 1.000000e+00 : f32
      %53 = vector.broadcast %cst_28 : f32 to vector<16x32xf32>
      %54 = arith.addf %53, %52 : vector<16x32xf32>
      %55 = arith.mulf %17, %54 : vector<16x32xf32>
      %56 = arith.truncf %55 : vector<16x32xf32> to vector<16x32xbf16>
      %c0_29 = arith.constant 0 : index
      %c0_30 = arith.constant 0 : index
      %57 = vector.load %arg6[%c0_29, %c0_30] : memref<16x32xbf16, #tpu.memory_space<vmem>>, vector<16x32xbf16>
      tpu.vector_store %arg6[%c0_29, %c0_30], %56 {strides = array<i32>} : memref<16x32xbf16, #tpu.memory_space<vmem>>, vector<16x32xbf16>,
    } else {
    }
    return
  }
  func.func @transform_0(%arg0: i32, %arg1: i32, %arg2: i32) -> (i32, i32) {
    %c0_i32 = arith.constant 0 : i32
    return %arg0, %arg2 : i32, i32
  }
  func.func @transform_1(%arg0: i32, %arg1: i32, %arg2: i32) -> (i32, i32) {
    %c0_i32 = arith.constant 0 : i32
    return %arg2, %arg1 : i32, i32
  }
  func.func @transform_2(%arg0: i32, %arg1: i32, %arg2: i32) -> (i32, i32) {
    %c0_i32 = arith.constant 0 : i32
    %c0_i32_0 = arith.constant 0 : i32
    return %c0_i32, %arg1 : i32, i32
  }
  func.func @transform_3(%arg0: i32, %arg1: i32, %arg2: i32) -> (i32, i32) {
    %c0_i32 = arith.constant 0 : i32
    return %arg0, %arg1 : i32, i32
  }
}

</mosaic_0001>

<llo_original>
// kernel: disprot_forward.11
$region0: #{disprot_forward.11}
  #allocation0 [shape = 'u32[]', space=smem, size = 0x4, offset = 0x4, fixed_abs, tag = 'smem constant byte address 0x4 - core index']
  #allocation1 [shape = 'u32[72,128]{1,0:T(1,128)}', space=vmem, size = 0x9000, scoped, tag = 'internal scratch']
  #allocation2 [shape = 'f32[8,32]{1,0:T(8,128)}', space=vmem, size = 0x1000, scoped, tag = 'scratch operand']
  %s0 = inlined_call_operand.vmem [shape: f32[2,8,48], index: 0, kind: input, shape index: {}]
  %s1 = inlined_call_operand.vmem [shape: bf16[48,32], index: 1, kind: input, shape index: {}]
  %s2 = inlined_call_operand.vmem [shape: f32[1,32], index: 2, kind: input, shape index: {}]
  %s3 = inlined_call_operand.vmem [shape: f32[8,32], index: 3, kind: input, shape index: {}]
  %s4 = inlined_call_operand.vmem [shape: f32[1,32], index: 4, kind: input, shape index: {}]
  %s5 = inlined_call_operand.vmem [shape: f32[1,32], index: 5, kind: input, shape index: {}]
  %s6 = inlined_call_operand.vmem [shape: bf16[2,8,32], index: 6, kind: output, shape index: {}]
  %s7 = sld [smem:[#allocation0]]
  $region65: #{disprot_forward.11} parent=0
    _
  %s9 = ssub.s32 1, %s7
  %s10 = scalar_select 0, %s9, %s7
  loop: start=0, step=1, limit=4
  $region2: #{disprot_forward.11} parent=0 // loop_pre_header
    _
  $region3: #{disprot_forward.11} parent=0 // loop_header
    %s12 = sphi 0, %s16
    %p13 = scmp.ge.s32.totalorder %s12, 4
    %s19 = sphi 0, %s38
    %s20 = sphi 0, %s34
    %s21 = sphi 0, %s30
    %s22 = sphi 0, %s19
    %s23 = sphi 0, %s20
    %s24 = sphi 0, %s21
    %s25 = sphi 0, %s22
    %s26 = sphi 0, %s23
    %s27 = sphi 0, %s24
    %s45 = sphi 0, %s47
    %s48 = sphi 0, %s45
    %s49 = sphi 0, %s48
    %s65 = sphi 0, %s49
    %s71 = sphi 0, %s73
    %s74 = sphi 0, %s71
    %s75 = sphi 0, %s74
    %s91 = sphi 0, %s75
    %s95 = sphi 0, %s95
    %s97 = sphi 0, %s95
    %s98 = sphi 0, %s97
    %s112 = sphi 0, %s98
    %s118 = sphi 0, %s120
    %s121 = sphi 0, %s118
    %s122 = sphi 0, %s121
    %s138 = sphi 0, %s122
    %s142 = sphi 0, %s142
    %s144 = sphi 0, %s142
    %s145 = sphi 0, %s144
    %s159 = sphi 0, %s145
    %s163 = sphi 0, %s163
    %s165 = sphi 0, %s163
    %s166 = sphi 0, %s165
    %s180 = sphi 0, %s166
    %s188 = sphi 0, %s190
    %s191 = sphi 0, %s188
    %s192 = sphi 0, %s191
    %s208 = sphi 0, %s192
  $region4: #{disprot_forward.11} parent=0 // loop_header_branch
    %15 = sbr.rel (%p13) target = $region8
  $region5: #{disprot_forward.11} parent=0 // loop_body
    %s17 = ssub.s32 %s12, 1
    %s18 = ssub.s32 %s12, 2
    %s28 = sadd.s32 1, %s21
    %p29 = scmp.ge.s32.totalorder %s28, 1
    %s30 = scalar_select %p29, 0, %s28
    %s31 = sadd.s32 1, %s20
    %s32 = scalar_select %p29, %s31, %s20
    %p33 = scmp.ge.s32.totalorder %s32, 1
    %s34 = scalar_select %p33, 0, %s32
    %s35 = sadd.s32 1, %s19
    %s36 = scalar_select %p33, %s35, %s19
    %p37 = scmp.ge.s32.totalorder %s36, 2
    %s38 = scalar_select %p37, 0, %s36
    %s39 = ssub.s32 %s19, %s38
    %s40 = ssub.s32 %s20, %s34
    %s41 = sor.u32 %s39, %s40
    %s42 = ssub.s32 %s21, %s30
    %s43 = sor.u32 %s41, %s42
    %p44 = scmp.eq.s32.totalorder %s43, 0
    %s46 = sadd.s32 %s45, 1
    %s47 = scalar_select %p44, %s45, %s46
    %p50 = pneg %p44
    %p51 = scmp.eq.s32.totalorder %s12, 1
    %p52 = por %p50, %p51
    %p53 = scmp.ne.s32.totalorder %s45, %s48
    %p54 = scmp.eq.s32.totalorder %s12, 0
    %p55 = por %p53, %p54
    %p56 = scmp.ne.s32.totalorder %s45, %s48
    %p57 = scmp.eq.s32.totalorder %s17, 1
    %p58 = por %p56, %p57
    %p59 = scmp.ne.s32.totalorder %s48, %s49
    %p60 = scmp.eq.s32.totalorder %s17, 0
    %p61 = por %p59, %p60
    %p62 = scmp.ne.s32.totalorder %s48, %s49
    %p63 = scmp.eq.s32.totalorder %s18, 1
    %p64 = por %p62, %p63
    %p66 = scmp.ne.s32.totalorder %s49, %s65
    %p67 = scmp.eq.s32.totalorder %s18, 0
    %p68 = por %p66, %p67
    %s69 = ssub.s32 %s21, %s30
    %p70 = scmp.eq.s32.totalorder %s69, 0
    %s72 = sadd.s32 %s71, 1
    %s73 = scalar_select %p70, %s71, %s72
    %p76 = pneg %p70
    %p77 = scmp.eq.s32.totalorder %s12, 1
    %p78 = por %p76, %p77
    %p79 = scmp.ne.s32.totalorder %s71, %s74
    %p80 = scmp.eq.s32.totalorder %s12, 0
    %p81 = por %p79, %p80
    %p82 = scmp.ne.s32.totalorder %s71, %s74
    %p83 = scmp.eq.s32.totalorder %s17, 1
    %p84 = por %p82, %p83
    %p85 = scmp.ne.s32.totalorder %s74, %s75
    %p86 = scmp.eq.s32.totalorder %s17, 0
    %p87 = por %p85, %p86
    %p88 = scmp.ne.s32.totalorder %s74, %s75
    %p89 = scmp.eq.s32.totalorder %s18, 1
    %p90 = por %p88, %p89
    %p92 = scmp.ne.s32.totalorder %s75, %s91
    %p93 = scmp.eq.s32.totalorder %s18, 0
    %p94 = por %p92, %p93
    %s96 = sadd.s32 %s95, 1
    %p99 = scmp.eq.s32.totalorder %s12, 1
    %p100 = scmp.ne.s32.totalorder %s95, %s97
    %p101 = scmp.eq.s32.totalorder %s12, 0
    %p102 = por %p100, %p101
    %p103 = scmp.ne.s32.totalorder %s95, %s97
    %p104 = scmp.eq.s32.totalorder %s17, 1
    %p105 = por %p103, %p104
    %p106 = scmp.ne.s32.totalorder %s97, %s98
    %p107 = scmp.eq.s32.totalorder %s17, 0
    %p108 = por %p106, %p107
    %p109 = scmp.ne.s32.totalorder %s97, %s98
    %p110 = scmp.eq.s32.totalorder %s18, 1
    %p111 = por %p109, %p110
    %p113 = scmp.ne.s32.totalorder %s98, %s112
    %p114 = scmp.eq.s32.totalorder %s18, 0
    %p115 = por %p113, %p114
    %s116 = ssub.s32 %s20, %s34
    %p117 = scmp.eq.s32.totalorder %s116, 0
    %s119 = sadd.s32 %s118, 1
    %s120 = scalar_select %p117, %s118, %s119
    %p123 = pneg %p117
    %p124 = scmp.eq.s32.totalorder %s12, 1
    %p125 = por %p123, %p124
    %p126 = scmp.ne.s32.totalorder %s118, %s121
    %p127 = scmp.eq.s32.totalorder %s12, 0
    %p128 = por %p126, %p127
    %p129 = scmp.ne.s32.totalorder %s118, %s121
    %p130 = scmp.eq.s32.totalorder %s17, 1
    %p131 = por %p129, %p130
    %p132 = scmp.ne.s32.totalorder %s121, %s122
    %p133 = scmp.eq.s32.totalorder %s17, 0
    %p134 = por %p132, %p133
    %p135 = scmp.ne.s32.totalorder %s121, %s122
    %p136 = scmp.eq.s32.totalorder %s18, 1
    %p137 = por %p135, %p136
    %p139 = scmp.ne.s32.totalorder %s122, %s138
    %p140 = scmp.eq.s32.totalorder %s18, 0
    %p141 = por %p139, %p140
    %s143 = sadd.s32 %s142, 1
    %p146 = scmp.eq.s32.totalorder %s12, 1
    %p147 = scmp.ne.s32.totalorder %s142, %s144
    %p148 = scmp.eq.s32.totalorder %s12, 0
    %p149 = por %p147, %p148
    %p150 = scmp.ne.s32.totalorder %s142, %s144
    %p151 = scmp.eq.s32.totalorder %s17, 1
    %p152 = por %p150, %p151
    %p153 = scmp.ne.s32.totalorder %s144, %s145
    %p154 = scmp.eq.s32.totalorder %s17, 0
    %p155 = por %p153, %p154
    %p156 = scmp.ne.s32.totalorder %s144, %s145
    %p157 = scmp.eq.s32.totalorder %s18, 1
    %p158 = por %p156, %p157
    %p160 = scmp.ne.s32.totalorder %s145, %s159
    %p161 = scmp.eq.s32.totalorder %s18, 0
    %p162 = por %p160, %p161
    %s164 = sadd.s32 %s163, 1
    %p167 = scmp.eq.s32.totalorder %s12, 1
    %p168 = scmp.ne.s32.totalorder %s163, %s165
    %p169 = scmp.eq.s32.totalorder %s12, 0
    %p170 = por %p168, %p169
    %p171 = scmp.ne.s32.totalorder %s163, %s165
    %p172 = scmp.eq.s32.totalorder %s17, 1
    %p173 = por %p171, %p172
    %p174 = scmp.ne.s32.totalorder %s165, %s166
    %p175 = scmp.eq.s32.totalorder %s17, 0
    %p176 = por %p174, %p175
    %p177 = scmp.ne.s32.totalorder %s165, %s166
    %p178 = scmp.eq.s32.totalorder %s18, 1
    %p179 = por %p177, %p178
    %p181 = scmp.ne.s32.totalorder %s166, %s180
    %p182 = scmp.eq.s32.totalorder %s18, 0
    %p183 = por %p181, %p182
    %s184 = ssub.s32 %s19, %s38
    %s185 = ssub.s32 %s20, %s34
    %s186 = sor.u32 %s184, %s185
    %p187 = scmp.eq.s32.totalorder %s186, 0
    %s189 = sadd.s32 %s188, 1
    %s190 = scalar_select %p187, %s188, %s189
    %p193 = pneg %p187
    %p194 = scmp.eq.s32.totalorder %s12, 1
    %p195 = por %p193, %p194
    %p196 = scmp.ne.s32.totalorder %s188, %s191
    %p197 = scmp.eq.s32.totalorder %s12, 0
    %p198 = por %p196, %p197
    %p199 = scmp.ne.s32.totalorder %s188, %s191
    %p200 = scmp.eq.s32.totalorder %s17, 1
    %p201 = por %p199, %p200
    %p202 = scmp.ne.s32.totalorder %s191, %s192
    %p203 = scmp.eq.s32.totalorder %s17, 0
    %p204 = por %p202, %p203
    %p205 = scmp.ne.s32.totalorder %s191, %s192
    %p206 = scmp.eq.s32.totalorder %s18, 1
    %p207 = por %p205, %p206
    %p209 = scmp.ne.s32.totalorder %s192, %s208
    %p210 = scmp.eq.s32.totalorder %s18, 0
    %p211 = por %p209, %p210
    %p212 = scmp.le.s32.totalorder 1, %s12
    %p213 = scmp.lt.s32.totalorder %s12, 3
    %p214 = pnand %p212, %p213
    %p215 = pneg %p214
    // Predicated region
    $region9: #{disprot_forward.11} parent=5 // pred_check
      _
    $region10: #{disprot_forward.11} parent=5 // pred_check_branch
      %217 = sbr.rel (%p214) target = $region12
    $region11: #{disprot_forward.11} parent=5 // pred_region
      %s218 = ssub.s32 %s12, 1
      // Predicated region
      $region13: #{disprot_forward.11} parent=11 // pred_check
        %p219 = pneg %p87
      $region14: #{disprot_forward.11} parent=11 // pred_check_branch
        %221 = sbr.rel (%p219) target = $region16
      $region15: #{disprot_forward.11} parent=11 // pred_region
        %s222 = smul.u32 6, %s24
        %p223 = scmp.lt.s32.totalorder %s222, 5
        %s224 = scalar_select %p223, %s222, 5
        %s225 = smul.addr %s224, 4
        %s226 = scalar_lea.vmem %s1, %s225
        %s227 = smul.u32 6, %s24
      $region16: #{disprot_forward.11} parent=11 // pred_fallthru
        _
      // Predicated region
      $region17: #{disprot_forward.11} parent=11 // pred_check
        %p228 = pneg %p108
      $region18: #{disprot_forward.11} parent=11 // pred_check_branch
        %230 = sbr.rel (%p228) target = $region20
      $region19: #{disprot_forward.11} parent=11 // pred_region
        _
      $region20: #{disprot_forward.11} parent=11 // pred_fallthru
        _
      // Predicated region
      $region21: #{disprot_forward.11} parent=11 // pred_check
        %p231 = pneg %p134
      $region22: #{disprot_forward.11} parent=11 // pred_check_branch
        %233 = sbr.rel (%p231) target = $region24
      $region23: #{disprot_forward.11} parent=11 // pred_region
        %p234 = scmp.lt.s32.totalorder %s23, 0
        %s235 = scalar_select %p234, %s23, 0
        %s236 = smul.addr %s235, 8
        %s237 = scalar_lea.vmem %s3, %s236
      $region24: #{disprot_forward.11} parent=11 // pred_fallthru
        _
      // Predicated region
      $region25: #{disprot_forward.11} parent=11 // pred_check
        %p238 = pneg %p155
      $region26: #{disprot_forward.11} parent=11 // pred_check_branch
        %240 = sbr.rel (%p238) target = $region28
      $region27: #{disprot_forward.11} parent=11 // pred_region
        _
      $region28: #{disprot_forward.11} parent=11 // pred_fallthru
        _
      // Predicated region
      $region29: #{disprot_forward.11} parent=11 // pred_check
        %p241 = pneg %p176
      $region30: #{disprot_forward.11} parent=11 // pred_check_branch
        %243 = sbr.rel (%p241) target = $region32
      $region31: #{disprot_forward.11} parent=11 // pred_region
        _
      $region32: #{disprot_forward.11} parent=11 // pred_fallthru
        _
    $region12: #{disprot_forward.11} parent=5 // pred_fallthru
      _
    %p244 = scmp.lt.s32.totalorder %s12, 2
    // Predicated region
    $region33: #{disprot_forward.11} parent=5 // pred_check
      %p245 = pneg %p244
    $region34: #{disprot_forward.11} parent=5 // pred_check_branch
      %247 = sbr.rel (%p245) target = $region36
    $region35: #{disprot_forward.11} parent=5 // pred_region
      // Predicated region
      $region37: #{disprot_forward.11} parent=35 // pred_check
        %p248 = pneg %p55
      $region38: #{disprot_forward.11} parent=35 // pred_check_branch
        %250 = sbr.rel (%p248) target = $region40
      $region39: #{disprot_forward.11} parent=35 // pred_region
        %p251 = scmp.lt.s32.totalorder %s19, 1
        %s252 = scalar_select %p251, %s19, 1
        %p253 = scmp.lt.s32.totalorder %s20, 0
        %s254 = scalar_select %p253, %s20, 0
        %p255 = scmp.lt.s32.totalorder %s21, 0
        %s256 = scalar_select %p255, %s21, 0
        %s257 = sadd.s32 %s256, %s254
        %s258 = sadd.s32 %s257, %s252
        %s259 = smul.addr %s258, 8
        %s260 = scalar_lea.vmem %s0, %s259
      $region40: #{disprot_forward.11} parent=35 // pred_fallthru
        _
    $region36: #{disprot_forward.11} parent=5 // pred_fallthru
      _
    %p261 = scmp.le.s32.totalorder 1, %s12
    %p262 = scmp.lt.s32.totalorder %s12, 3
    %p263 = pnand %p261, %p262
    %p264 = pneg %p263
    // Predicated region
    $region41: #{disprot_forward.11} parent=5 // pred_check
      _
    $region42: #{disprot_forward.11} parent=5 // pred_check_branch
      %266 = sbr.rel (%p263) target = $region44
    $region43: #{disprot_forward.11} parent=5 // pred_region
      %s267 = ssub.s32 %s12, 1
      %p268 = scmp.lt.s32.totalorder %s22, 1
      %s269 = scalar_select %p268, %s22, 1
      %p270 = scmp.lt.s32.totalorder %s23, 0
      %s271 = scalar_select %p270, %s23, 0
      %p272 = scmp.lt.s32.totalorder %s24, 0
      %s273 = scalar_select %p272, %s24, 0
      %s274 = sadd.s32 %s273, %s271
      %s275 = sadd.s32 %s274, %s269
      %s276 = smul.addr %s275, 8
      %s277 = scalar_lea.vmem %s0, %s276
      %p278 = pneg %p61
      %p279 = pneg %p58
      %s280 = smul.u32 6, %s24
      %p281 = scmp.lt.s32.totalorder %s280, 5
      %s282 = scalar_select %p281, %s280, 5
      %s283 = smul.addr %s282, 4
      %s284 = scalar_lea.vmem %s1, %s283
      %p285 = pneg %p87
      %p286 = pneg %p84
      %p287 = pneg %p108
      %p288 = pneg %p105
      %p289 = scmp.lt.s32.totalorder %s23, 0
      %s290 = scalar_select %p289, %s23, 0
      %s291 = smul.addr %s290, 8
      %s292 = scalar_lea.vmem %s3, %s291
      %p293 = pneg %p134
      %p294 = pneg %p131
      %p295 = pneg %p155
      %p296 = pneg %p152
      %p297 = pneg %p176
      %p298 = pneg %p173
      %p299 = pneg %p204
      %p300 = pneg %p201
      %p301 = scmp.lt.s32.totalorder %s22, 1
      %s302 = scalar_select %p301, %s22, 1
      %p303 = scmp.lt.s32.totalorder %s23, 0
      %s304 = scalar_select %p303, %s23, 0
      %s305 = sadd.s32 %s304, %s302
      %s306 = smul.addr %s305, 4
      %s307 = scalar_lea.vmem %s6, %s306
      %p308 = scmp.lt.s32.totalorder %s22, 1
      %s309 = scalar_select %p308, %s22, 1
      %p310 = scmp.lt.s32.totalorder %s23, 0
      %s311 = scalar_select %p310, %s23, 0
      %p312 = scmp.lt.s32.totalorder %s24, 0
      %s313 = scalar_select %p312, %s24, 0
      %s314 = sadd.s32 %s313, %s311
      %s315 = sadd.s32 %s314, %s309
      %s316 = smul.addr %s315, 8
      %s317 = scalar_lea.vmem %s0, %s316
      %s318 = smul.u32 6, %s24
      %p319 = scmp.lt.s32.totalorder %s318, 5
      %s320 = scalar_select %p319, %s318, 5
      %s321 = smul.addr %s320, 4
      %s322 = scalar_lea.vmem %s1, %s321
      %s323 = smul.u32 6, %s24
      %p324 = scmp.lt.s32.totalorder %s23, 0
      %s325 = scalar_select %p324, %s23, 0
      %s326 = smul.addr %s325, 8
      %s327 = scalar_lea.vmem %s3, %s326
      %p328 = scmp.lt.s32.totalorder %s22, 1
      %s329 = scalar_select %p328, %s22, 1
      %p330 = scmp.lt.s32.totalorder %s23, 0
      %s331 = scalar_select %p330, %s23, 0
      %s332 = sadd.s32 %s331, %s329
      %s333 = smul.addr %s332, 4
      %s334 = scalar_lea.vmem %s6, %s333
      %p336 = scmp.eq.s32.totalorder %s24, 0
      // Predicated region
      $region45: #{disprot_forward.11} parent=43 // pred_check
        %p337 = pneg %p336
      $region46: #{disprot_forward.11} parent=43 // pred_check_branch
        %339 = sbr.rel (%p337) target = $region48
      $region47: #{disprot_forward.11} parent=43 // pred_region
        %vm340 = vcmask 261120
        %341 = vst.msk [vmem:[#allocation2] sm:$0xff] %vm340, 0.0
      $region48: #{disprot_forward.11} parent=43 // pred_fallthru
        _
      %v342 = vld [vmem:[#allocation2] sm:$0xff]
      %v343 = vld [vmem:[%s317] sm:$0xff]
      %v344 = vpack.c.bf16 %v343, %v343
      %v345 = vld [vmem:[%s322] sm:$0xf]
      %v346 = vld [vmem:[%s322 + $0x4] sm:$0xf]
      %v347 = vld [vmem:[%s322 + $0x8] sm:$0xf]
      %v348 = vld [vmem:[%s322 + $0xc] sm:$0xf]
      %v349 = vld [vmem:[%s322 + $0x10] sm:$0xf]
      %v350 = vld [vmem:[%s322 + $0x14] sm:$0xf]
      %v357 = vunpack.c.l.b16 %v345
      %v358 = vunpack.c.l.b16 %v346
      %v359 = vunpack.c.l.b16 %v347
      %v360 = vunpack.c.l.b16 %v348
      %v361 = vunpack.c.l.b16 %v349
      %v362 = vunpack.c.l.b16 %v350
      %v363 = vpack.c.b16 %v358, %v357
      %v364 = vpack.c.b16 %v360, %v359
      %v365 = vpack.c.b16 %v362, %v361
      %vm369 = vcmask 392192
      %v371 = vsel %vm369, %v344, 0
      %373 = vmatpush.bf16.msra.mxu0 0
      %374 = vmatpush.bf16.msra.mxu0 0
      %375 = vmatpush.bf16.msra.mxu0 0
      %376 = vmatpush.bf16.msra.mxu0 0
      %377 = vmatpush.bf16.msra.mxu0 0
      %378 = vmatpush.bf16.msra.mxu0 %v365
      %379 = vmatpush.bf16.msra.mxu0 %v364
      %380 = vmatpush.bf16.msra.mxu0 %v363
      %381 = vmatmul.bf16.gmra.mxu0 %v371
      %v382 = vpop.f32.mrf.mxu0
      %v383 = vadd.f32 0.0, %v382
      %v384 = vpop.f32.mrf.mxu0
      %385 = vdwg.mxu0
      %v386 = vadd.f32 %v342, %v383
      %vm387 = vcmask 261120
      %388 = vst.msk [vmem:[#allocation2] sm:$0xff] %vm387, %v386
      // Predicated region
      $region49: #{disprot_forward.11} parent=43 // pred_check
        %p389 = pneg %p336
      $region50: #{disprot_forward.11} parent=43 // pred_check_branch
        %391 = sbr.rel (%p389) target = $region52
      $region51: #{disprot_forward.11} parent=43 // pred_region
        %v392 = vld [vmem:[#allocation2] sm:$0xff]
        %v393 = vld [vmem:[%s2] sm:$0x1]
        %v395 = vperm.slane %v393, 0
        %v397 = vadd.f32 %v392, %v395
        %v398 = vld [vmem:[%s327] sm:$0xff]
        %v399 = vadd.f32 %v397, %v398
        %v400 = vsel %vm387, %v399, 0.0
        %401 = vadd.xlane.f32.xlu0 %v400
        %v402 = vpop.xlane.xlu0 %401
        %v403 = vrcp.pop 32.0
        %v404 = vmul.f32 32.0, %v403
        %v405 = vsub.f32 1.0, %v404
        %v406 = vmul.f32 %v403, %v405
        %v407 = vadd.f32 %v403, %v406
        %vm408 = vweird.f32 %v403
        %v409 = vsel %vm408, %v403, %v407
        %v410 = vmul.f32 %v402, %v409
        %v411 = vsub.f32 %v399, %v410
        %v412 = vmul.f32 %v411, %v411
        %v413 = vsel %vm387, %v412, 0.0
        %414 = vadd.xlane.f32.xlu0 %v413
        %v415 = vpop.xlane.xlu0 %414
        %v416 = vmul.f32 %v415, %v409
        %v417 = vadd.f32 %v416, 1e-05
        %v418 = vrsqrt.pop %v417
        %v419 = vmul.f32 %v418, %v417
        %v420 = vmul.f32 %v419, %v418
        %v421 = vmul.f32 0.5, %v420
        %v422 = vsub.f32 1.5, %v421
        %v423 = vmul.f32 %v418, %v422
        %vm424 = vweird.f32 %v417
        %vm425 = vweird.f32 %v418
        %vm426 = vmor %vm424, %vm425
        %v427 = vsel %vm426, %v418, %v423
        %v428 = vmul.f32 %v411, %v427
        %v429 = vld [vmem:[%s4] sm:$0x1]
        %v431 = vperm.slane %v429, 0
        %v433 = vmul.f32 %v428, %v431
        %v434 = vld [vmem:[%s5] sm:$0x1]
        %v436 = vperm.slane %v434, 0
        %v438 = vadd.f32 %v433, %v436
        %v439 = vpack.c.bf16 %v438, %v438
        %vm440 = vcmask 257024
        %441 = vst.msk [vmem:[%s334] sm:$0xf] %vm440, %v439
      $region52: #{disprot_forward.11} parent=43 // pred_fallthru
        _
      %p442 = scmp.lt.s32.totalorder %s22, 1
      %s443 = scalar_select %p442, %s22, 1
      %p444 = scmp.lt.s32.totalorder %s23, 0
      %s445 = scalar_select %p444, %s23, 0
      %s446 = sadd.s32 %s445, %s443
      %s447 = smul.addr %s446, 4
      %s448 = scalar_lea.vmem %s6, %s447
      // Predicated region
      $region53: #{disprot_forward.11} parent=43 // pred_check
        %p449 = pneg %p201
      $region54: #{disprot_forward.11} parent=43 // pred_check_branch
        %451 = sbr.rel (%p449) target = $region56
      $region55: #{disprot_forward.11} parent=43 // pred_region
        _
      $region56: #{disprot_forward.11} parent=43 // pred_fallthru
        _
    $region44: #{disprot_forward.11} parent=5 // pred_fallthru
      _
    %p452 = scmp.le.s32.totalorder 2, %s12
    // Predicated region
    $region57: #{disprot_forward.11} parent=5 // pred_check
      %p453 = pneg %p452
    $region58: #{disprot_forward.11} parent=5 // pred_check_branch
      %455 = sbr.rel (%p453) target = $region60
    $region59: #{disprot_forward.11} parent=5 // pred_region
      %s456 = ssub.s32 %s12, 2
      // Predicated region
      $region61: #{disprot_forward.11} parent=59 // pred_check
        %p457 = pneg %p207
      $region62: #{disprot_forward.11} parent=59 // pred_check_branch
        %459 = sbr.rel (%p457) target = $region64
      $region63: #{disprot_forward.11} parent=59 // pred_region
        %p460 = scmp.lt.s32.totalorder %s25, 1
        %s461 = scalar_select %p460, %s25, 1
        %p462 = scmp.lt.s32.totalorder %s26, 0
        %s463 = scalar_select %p462, %s26, 0
        %s464 = sadd.s32 %s463, %s461
        %s465 = smul.addr %s464, 4
        %s466 = scalar_lea.vmem %s6, %s465
      $region64: #{disprot_forward.11} parent=59 // pred_fallthru
        _
    $region60: #{disprot_forward.11} parent=5 // pred_fallthru
      _
  $region6: #{disprot_forward.11} parent=0 // loop_footer
    %s16 = sadd.s32 1, %s12
  $region7: #{disprot_forward.11} parent=0 // loop_footer_branch
    %11 = sbr.rel target = $region3
  $region8: #{disprot_forward.11} parent=0 // loop_exit
    _

// kernel: disprot_forward.12
$region0: #{disprot_forward.12}
  #allocation0 [shape = 'u32[]', space=smem, size = 0x4, offset = 0x4, fixed_abs, tag = 'smem constant byte address 0x4 - core index']
  #allocation1 [shape = 'u32[72,128]{1,0:T(1,128)}', space=vmem, size = 0x9000, scoped, tag = 'internal scratch']
  #allocation2 [shape = 'f32[16,96]{1,0:T(8,128)}', space=vmem, size = 0x2000, scoped, tag = 'scratch operand']
  %s0 = inlined_call_operand.vmem [shape: bf16[16,32], index: 0, kind: input, shape index: {}]
  %s1 = inlined_call_operand.vmem [shape: bf16[32,96], index: 1, kind: input, shape index: {}]
  %s2 = inlined_call_operand.vmem [shape: f32[1,96], index: 2, kind: input, shape index: {}]
  %s3 = inlined_call_operand.vmem [shape: bf16[16,96], index: 3, kind: output, shape index: {}]
  %s4 = sld [smem:[#allocation0]]
  $region30: #{disprot_forward.12} parent=0
    _
  %s6 = ssub.s32 1, %s4
  %s7 = scalar_select 0, %s6, %s4
  // Predicated region
  $region2: #{disprot_forward.12} parent=0 // pred_check
    _
  $region3: #{disprot_forward.12} parent=0 // pred_check_branch
    %9 = sbr.rel (0) target = $region5
  $region4: #{disprot_forward.12} parent=0 // pred_region
    _
  $region5: #{disprot_forward.12} parent=0 // pred_fallthru
    _
  // Predicated region
  $region6: #{disprot_forward.12} parent=0 // pred_check
    _
  $region7: #{disprot_forward.12} parent=0 // pred_check_branch
    %11 = sbr.rel (0) target = $region9
  $region8: #{disprot_forward.12} parent=0 // pred_region
    _
  $region9: #{disprot_forward.12} parent=0 // pred_fallthru
    _
  // Predicated region
  $region10: #{disprot_forward.12} parent=0 // pred_check
    _
  $region11: #{disprot_forward.12} parent=0 // pred_check_branch
    %13 = sbr.rel (0) target = $region13
  $region12: #{disprot_forward.12} parent=0 // pred_region
    _
  $region13: #{disprot_forward.12} parent=0 // pred_fallthru
    _
  %p15 = scmp.eq.s32.totalorder 0, 0
  // Predicated region
  $region14: #{disprot_forward.12} parent=0 // pred_check
    %p16 = pneg %p15
  $region15: #{disprot_forward.12} parent=0 // pred_check_branch
    %18 = sbr.rel (%p16) target = $region17
  $region16: #{disprot_forward.12} parent=0 // pred_region
    %vm19 = vcmask 785408
    %20 = vst.msk [vmem:[#allocation2] sm:$0xff] %vm19, 0.0
    %21 = vst.msk [vmem:[#allocation2 + $0x8] sm:$0xff] %vm19, 0.0
  $region17: #{disprot_forward.12} parent=0 // pred_fallthru
    _
  %v22 = vld [vmem:[#allocation2] sm:$0xff]
  %v23 = vld [vmem:[#allocation2 + $0x8] sm:$0xff]
  %v24 = vld [vmem:[%s0] sm:$0xf]
  %v25 = vld [vmem:[%s0 + $0x4] sm:$0xf]
  %v26 = vld [vmem:[%s1] sm:$0xf]
  %v27 = vld [vmem:[%s1 + $0x4] sm:$0xf]
  %v28 = vld [vmem:[%s1 + $0x8] sm:$0xf]
  %v29 = vld [vmem:[%s1 + $0xc] sm:$0xf]
  %v32 = vunpack.c.l.b16 %v24
  %v33 = vunpack.c.l.b16 %v25
  %v34 = vpack.c.b16 %v33, %v32
  %v39 = vunpack.c.l.b16 %v26
  %v40 = vunpack.c.l.b16 %v27
  %v41 = vunpack.c.l.b16 %v28
  %v42 = vunpack.c.l.b16 %v29
  %v43 = vpack.c.b16 %v40, %v39
  %v44 = vpack.c.b16 %v42, %v41
  %vm47 = vcmask 261120
  %v49 = vsel %vm47, %v34, 0
  %51 = vmatpush.bf16.msra.mxu0 0
  %52 = vmatpush.bf16.msra.mxu0 0
  %53 = vmatpush.bf16.msra.mxu0 0
  %54 = vmatpush.bf16.msra.mxu0 0
  %55 = vmatpush.bf16.msra.mxu0 0
  %56 = vmatpush.bf16.msra.mxu0 0
  %57 = vmatpush.bf16.msra.mxu0 %v44
  %58 = vmatpush.bf16.msra.mxu0 %v43
  %59 = vmatmul.bf16.gmra.mxu0 %v49
  %v60 = vpop.f32.mrf.mxu0
  %v61 = vadd.f32 0.0, %v60
  %v62 = vpop.f32.mrf.mxu0
  %v63 = vadd.f32 0.0, %v62
  %64 = vdwg.mxu0
  %v65 = vadd.f32 %v22, %v61
  %v66 = vadd.f32 %v23, %v63
  %vm67 = vcmask 785408
  %68 = vst.msk [vmem:[#allocation2] sm:$0xff] %vm67, %v65
  %69 = vst.msk [vmem:[#allocation2 + $0x8] sm:$0xff] %vm67, %v66
  // Predicated region
  $region18: #{disprot_forward.12} parent=0 // pred_check
    %p70 = pneg %p15
  $region19: #{disprot_forward.12} parent=0 // pred_check_branch
    %72 = sbr.rel (%p70) target = $region21
  $region20: #{disprot_forward.12} parent=0 // pred_region
    %v73 = vld [vmem:[#allocation2] sm:$0xff]
    %v74 = vld [vmem:[#allocation2 + $0x8] sm:$0xff]
    %v75 = vld [vmem:[%s2] sm:$0x1]
    %v77 = vperm.slane %v75, 0
    %v79 = vadd.f32 %v73, %v77
    %v80 = vadd.f32 %v74, %v77
    %v81 = vpack.c.bf16 %v79, %v79
    %v82 = vpack.c.bf16 %v80, %v80
    %vm83 = vcmask 781312
    %84 = vst.msk [vmem:[%s3] sm:$0xf] %vm83, %v81
    %85 = vst.msk [vmem:[%s3 + $0x4] sm:$0xf] %vm83, %v82
  $region21: #{disprot_forward.12} parent=0 // pred_fallthru
    _
  // Predicated region
  $region22: #{disprot_forward.12} parent=0 // pred_check
    _
  $region23: #{disprot_forward.12} parent=0 // pred_check_branch
    %87 = sbr.rel (0) target = $region25
  $region24: #{disprot_forward.12} parent=0 // pred_region
    _
  $region25: #{disprot_forward.12} parent=0 // pred_fallthru
    _
  // Predicated region
  $region26: #{disprot_forward.12} parent=0 // pred_check
    _
  $region27: #{disprot_forward.12} parent=0 // pred_check_branch
    %89 = sbr.rel (0) target = $region29
  $region28: #{disprot_forward.12} parent=0 // pred_region
    _
  $region29: #{disprot_forward.12} parent=0 // pred_fallthru
    _

// kernel: disprot_forward.14
$region0: #{disprot_forward.14}
  #allocation0 [shape = 'u32[]', space=smem, size = 0x4, offset = 0x4, fixed_abs, tag = 'smem constant byte address 0x4 - core index']
  #allocation1 [shape = 'u32[72,128]{1,0:T(1,128)}', space=vmem, size = 0x9000, scoped, tag = 'internal scratch']
  #allocation2 [shape = 'f32[16,32]{1,0:T(8,128)}', space=vmem, size = 0x2000, scoped, tag = 'scratch operand']
  %s0 = inlined_call_operand.vmem [shape: bf16[16,32], index: 0, kind: input, shape index: {}]
  %s1 = inlined_call_operand.vmem [shape: bf16[32,32], index: 1, kind: input, shape index: {}]
  %s2 = inlined_call_operand.vmem [shape: f32[1,32], index: 2, kind: input, shape index: {}]
  %s3 = inlined_call_operand.vmem [shape: bf16[16,32], index: 3, kind: input, shape index: {}]
  %s4 = inlined_call_operand.vmem [shape: f32[1,32], index: 4, kind: input, shape index: {}]
  %s5 = inlined_call_operand.vmem [shape: f32[1,32], index: 5, kind: input, shape index: {}]
  %s6 = inlined_call_operand.vmem [shape: bf16[16,32], index: 6, kind: output, shape index: {}]
  %s7 = sld [smem:[#allocation0]]
  $region42: #{disprot_forward.14} parent=0
    _
  %s9 = ssub.s32 1, %s7
  %s10 = scalar_select 0, %s9, %s7
  // Predicated region
  $region2: #{disprot_forward.14} parent=0 // pred_check
    _
  $region3: #{disprot_forward.14} parent=0 // pred_check_branch
    %12 = sbr.rel (0) target = $region5
  $region4: #{disprot_forward.14} parent=0 // pred_region
    _
  $region5: #{disprot_forward.14} parent=0 // pred_fallthru
    _
  // Predicated region
  $region6: #{disprot_forward.14} parent=0 // pred_check
    _
  $region7: #{disprot_forward.14} parent=0 // pred_check_branch
    %14 = sbr.rel (0) target = $region9
  $region8: #{disprot_forward.14} parent=0 // pred_region
    _
  $region9: #{disprot_forward.14} parent=0 // pred_fallthru
    _
  // Predicated region
  $region10: #{disprot_forward.14} parent=0 // pred_check
    _
  $region11: #{disprot_forward.14} parent=0 // pred_check_branch
    %16 = sbr.rel (0) target = $region13
  $region12: #{disprot_forward.14} parent=0 // pred_region
    _
  $region13: #{disprot_forward.14} parent=0 // pred_fallthru
    _
  // Predicated region
  $region14: #{disprot_forward.14} parent=0 // pred_check
    _
  $region15: #{disprot_forward.14} parent=0 // pred_check_branch
    %18 = sbr.rel (0) target = $region17
  $region16: #{disprot_forward.14} parent=0 // pred_region
    _
  $region17: #{disprot_forward.14} parent=0 // pred_fallthru
    _
  // Predicated region
  $region18: #{disprot_forward.14} parent=0 // pred_check
    _
  $region19: #{disprot_forward.14} parent=0 // pred_check_branch
    %20 = sbr.rel (0) target = $region21
  $region20: #{disprot_forward.14} parent=0 // pred_region
    _
  $region21: #{disprot_forward.14} parent=0 // pred_fallthru
    _
  // Predicated region
  $region22: #{disprot_forward.14} parent=0 // pred_check
    _
  $region23: #{disprot_forward.14} parent=0 // pred_check_branch
    %22 = sbr.rel (0) target = $region25
  $region24: #{disprot_forward.14} parent=0 // pred_region
    _
  $region25: #{disprot_forward.14} parent=0 // pred_fallthru
    _
  %p24 = scmp.eq.s32.totalorder 0, 0
  // Predicated region
  $region26: #{disprot_forward.14} parent=0 // pred_check
    %p25 = pneg %p24
  $region27: #{disprot_forward.14} parent=0 // pred_check_branch
    %27 = sbr.rel (%p25) target = $region29
  $region28: #{disprot_forward.14} parent=0 // pred_region
    %vm28 = vcmask 261120
    %29 = vst.msk [vmem:[#allocation2] sm:$0xff] %vm28, 0.0
    %30 = vst.msk [vmem:[#allocation2 + $0x8] sm:$0xff] %vm28, 0.0
  $region29: #{disprot_forward.14} parent=0 // pred_fallthru
    _
  %v31 = vld [vmem:[#allocation2] sm:$0xff]
  %v32 = vld [vmem:[#allocation2 + $0x8] sm:$0xff]
  %v33 = vld [vmem:[%s0] sm:$0xf]
  %v34 = vld [vmem:[%s0 + $0x4] sm:$0xf]
  %v35 = vld [vmem:[%s1] sm:$0xf]
  %v36 = vld [vmem:[%s1 + $0x4] sm:$0xf]
  %v37 = vld [vmem:[%s1 + $0x8] sm:$0xf]
  %v38 = vld [vmem:[%s1 + $0xc] sm:$0xf]
  %v41 = vunpack.c.l.b16 %v33
  %v42 = vunpack.c.l.b16 %v34
  %v43 = vpack.c.b16 %v42, %v41
  %v48 = vunpack.c.l.b16 %v35
  %v49 = vunpack.c.l.b16 %v36
  %v50 = vunpack.c.l.b16 %v37
  %v51 = vunpack.c.l.b16 %v38
  %v52 = vpack.c.b16 %v49, %v48
  %v53 = vpack.c.b16 %v51, %v50
  %vm56 = vcmask 261120
  %v58 = vsel %vm56, %v43, 0
  %60 = vmatpush.bf16.msra.mxu0 0
  %61 = vmatpush.bf16.msra.mxu0 0
  %62 = vmatpush.bf16.msra.mxu0 0
  %63 = vmatpush.bf16.msra.mxu0 0
  %64 = vmatpush.bf16.msra.mxu0 0
  %65 = vmatpush.bf16.msra.mxu0 0
  %66 = vmatpush.bf16.msra.mxu0 %v53
  %67 = vmatpush.bf16.msra.mxu0 %v52
  %68 = vmatmul.bf16.gmra.mxu0 %v58
  %v69 = vpop.f32.mrf.mxu0
  %v70 = vadd.f32 0.0, %v69
  %v71 = vpop.f32.mrf.mxu0
  %v72 = vadd.f32 0.0, %v71
  %73 = vdwg.mxu0
  %v74 = vadd.f32 %v31, %v70
  %v75 = vadd.f32 %v32, %v72
  %76 = vst.msk [vmem:[#allocation2] sm:$0xff] %vm56, %v74
  %77 = vst.msk [vmem:[#allocation2 + $0x8] sm:$0xff] %vm56, %v75
  // Predicated region
  $region30: #{disprot_forward.14} parent=0 // pred_check
    %p78 = pneg %p24
  $region31: #{disprot_forward.14} parent=0 // pred_check_branch
    %80 = sbr.rel (%p78) target = $region33
  $region32: #{disprot_forward.14} parent=0 // pred_region
    %v81 = vld [vmem:[#allocation2] sm:$0xff]
    %v82 = vld [vmem:[#allocation2 + $0x8] sm:$0xff]
    %v83 = vld [vmem:[%s2] sm:$0x1]
    %v85 = vperm.slane %v83, 0
    %v87 = vadd.f32 %v81, %v85
    %v88 = vadd.f32 %v82, %v85
    %v89 = vld [vmem:[%s3] sm:$0xf]
    %v90 = vld [vmem:[%s3 + $0x4] sm:$0xf]
    %v91 = vunpack.c.l.bf16 %v89
    %v92 = vunpack.c.l.bf16 %v90
    %v93 = vadd.f32 %v87, %v91
    %v94 = vadd.f32 %v88, %v92
    %v95 = vsel %vm56, %v93, 0.0
    %96 = vadd.xlane.f32.xlu0 %v95
    %v97 = vpop.xlane.xlu0 %96
    %v98 = vsel %vm56, %v94, 0.0
    %99 = vadd.xlane.f32.xlu0 %v98
    %v100 = vpop.xlane.xlu0 %99
    %v101 = vrcp.pop 32.0
    %v102 = vmul.f32 32.0, %v101
    %v103 = vsub.f32 1.0, %v102
    %v104 = vmul.f32 %v101, %v103
    %v105 = vadd.f32 %v101, %v104
    %vm106 = vweird.f32 %v101
    %v107 = vsel %vm106, %v101, %v105
    %v108 = vmul.f32 %v97, %v107
    %v109 = vmul.f32 %v100, %v107
    %v110 = vsub.f32 %v93, %v108
    %v111 = vsub.f32 %v94, %v109
    %v112 = vmul.f32 %v110, %v110
    %v113 = vmul.f32 %v111, %v111
    %v114 = vsel %vm56, %v112, 0.0
    %115 = vadd.xlane.f32.xlu0 %v114
    %v116 = vpop.xlane.xlu0 %115
    %v117 = vsel %vm56, %v113, 0.0
    %118 = vadd.xlane.f32.xlu0 %v117
    %v119 = vpop.xlane.xlu0 %118
    %v120 = vmul.f32 %v116, %v107
    %v121 = vmul.f32 %v119, %v107
    %v122 = vadd.f32 %v120, 1e-05
    %v123 = vadd.f32 %v121, 1e-05
    %v124 = vrsqrt.pop %v122
    %v125 = vmul.f32 %v124, %v122
    %v126 = vmul.f32 %v125, %v124
    %v127 = vmul.f32 0.5, %v126
    %v128 = vsub.f32 1.5, %v127
    %v129 = vmul.f32 %v124, %v128
    %vm130 = vweird.f32 %v122
    %vm131 = vweird.f32 %v124
    %vm132 = vmor %vm130, %vm131
    %v133 = vsel %vm132, %v124, %v129
    %v134 = vrsqrt.pop %v123
    %v135 = vmul.f32 %v134, %v123
    %v136 = vmul.f32 %v135, %v134
    %v137 = vmul.f32 0.5, %v136
    %v138 = vsub.f32 1.5, %v137
    %v139 = vmul.f32 %v134, %v138
    %vm140 = vweird.f32 %v123
    %vm141 = vweird.f32 %v134
    %vm142 = vmor %vm140, %vm141
    %v143 = vsel %vm142, %v134, %v139
    %v144 = vmul.f32 %v110, %v133
    %v145 = vmul.f32 %v111, %v143
    %v146 = vld [vmem:[%s4] sm:$0x1]
    %v148 = vperm.slane %v146, 0
    %v150 = vmul.f32 %v144, %v148
    %v151 = vmul.f32 %v145, %v148
    %v152 = vld [vmem:[%s5] sm:$0x1]
    %v154 = vperm.slane %v152, 0
    %v156 = vadd.f32 %v150, %v154
    %v157 = vadd.f32 %v151, %v154
    %v158 = vpack.c.bf16 %v156, %v156
    %v159 = vpack.c.bf16 %v157, %v157
    %vm160 = vcmask 257024
    %161 = vst.msk [vmem:[%s6] sm:$0xf] %vm160, %v158
    %162 = vst.msk [vmem:[%s6 + $0x4] sm:$0xf] %vm160, %v159
  $region33: #{disprot_forward.14} parent=0 // pred_fallthru
    _
  // Predicated region
  $region34: #{disprot_forward.14} parent=0 // pred_check
    _
  $region35: #{disprot_forward.14} parent=0 // pred_check_branch
    %164 = sbr.rel (0) target = $region37
  $region36: #{disprot_forward.14} parent=0 // pred_region
    _
  $region37: #{disprot_forward.14} parent=0 // pred_fallthru
    _
  // Predicated region
  $region38: #{disprot_forward.14} parent=0 // pred_check
    _
  $region39: #{disprot_forward.14} parent=0 // pred_check_branch
    %166 = sbr.rel (0) target = $region41
  $region40: #{disprot_forward.14} parent=0 // pred_region
    _
  $region41: #{disprot_forward.14} parent=0 // pred_fallthru
    _

// kernel: disprot_forward.13
$region0: #{disprot_forward.13}
  #allocation0 [shape = 'u32[]', space=smem, size = 0x4, offset = 0x4, fixed_abs, tag = 'smem constant byte address 0x4 - core index']
  #allocation1 [shape = 'u32[72,128]{1,0:T(1,128)}', space=vmem, size = 0x9000, scoped, tag = 'internal scratch']
  %s0 = inlined_call_operand.vmem [shape: bf16[2,8,32], index: 0, kind: input, shape index: {}]
  %s1 = inlined_call_operand.vmem [shape: bf16[2,8,32], index: 1, kind: input, shape index: {}]
  %s2 = inlined_call_operand.vmem [shape: bf16[2,8,32], index: 2, kind: input, shape index: {}]
  %s3 = inlined_call_operand.vmem [shape: bf16[2,8,32], index: 3, kind: output, shape index: {}]
  %s4 = sld [smem:[#allocation0]]
  $region45: #{disprot_forward.13} parent=0
    _
  %s6 = ssub.s32 1, %s4
  %s7 = scalar_select 0, %s6, %s4
  loop: start=0, step=1, limit=4
  $region2: #{disprot_forward.13} parent=0 // loop_pre_header
    _
  $region3: #{disprot_forward.13} parent=0 // loop_header
    %s9 = sphi 0, %s13
    %p10 = scmp.ge.s32.totalorder %s9, 4
    %s16 = sphi 0, %s28
    %s17 = sphi 0, %s24
    %s18 = sphi 0, %s16
    %s19 = sphi 0, %s17
    %s20 = sphi 0, %s18
    %s21 = sphi 0, %s19
    %s33 = sphi 0, %s35
    %s36 = sphi 0, %s33
    %s37 = sphi 0, %s36
    %s53 = sphi 0, %s37
    %s59 = sphi 0, %s61
    %s62 = sphi 0, %s59
    %s63 = sphi 0, %s62
    %s79 = sphi 0, %s63
    %s85 = sphi 0, %s87
    %s88 = sphi 0, %s85
    %s89 = sphi 0, %s88
    %s105 = sphi 0, %s89
    %s113 = sphi 0, %s115
    %s116 = sphi 0, %s113
    %s117 = sphi 0, %s116
    %s133 = sphi 0, %s117
  $region4: #{disprot_forward.13} parent=0 // loop_header_branch
    %12 = sbr.rel (%p10) target = $region8
  $region5: #{disprot_forward.13} parent=0 // loop_body
    %s14 = ssub.s32 %s9, 1
    %s15 = ssub.s32 %s9, 2
    %s22 = sadd.s32 1, %s17
    %p23 = scmp.ge.s32.totalorder %s22, 1
    %s24 = scalar_select %p23, 0, %s22
    %s25 = sadd.s32 1, %s16
    %s26 = scalar_select %p23, %s25, %s16
    %p27 = scmp.ge.s32.totalorder %s26, 2
    %s28 = scalar_select %p27, 0, %s26
    %s29 = ssub.s32 %s16, %s28
    %s30 = ssub.s32 %s17, %s24
    %s31 = sor.u32 %s29, %s30
    %p32 = scmp.eq.s32.totalorder %s31, 0
    %s34 = sadd.s32 %s33, 1
    %s35 = scalar_select %p32, %s33, %s34
    %p38 = pneg %p32
    %p39 = scmp.eq.s32.totalorder %s9, 1
    %p40 = por %p38, %p39
    %p41 = scmp.ne.s32.totalorder %s33, %s36
    %p42 = scmp.eq.s32.totalorder %s9, 0
    %p43 = por %p41, %p42
    %p44 = scmp.ne.s32.totalorder %s33, %s36
    %p45 = scmp.eq.s32.totalorder %s14, 1
    %p46 = por %p44, %p45
    %p47 = scmp.ne.s32.totalorder %s36, %s37
    %p48 = scmp.eq.s32.totalorder %s14, 0
    %p49 = por %p47, %p48
    %p50 = scmp.ne.s32.totalorder %s36, %s37
    %p51 = scmp.eq.s32.totalorder %s15, 1
    %p52 = por %p50, %p51
    %p54 = scmp.ne.s32.totalorder %s37, %s53
    %p55 = scmp.eq.s32.totalorder %s15, 0
    %p56 = por %p54, %p55
    %s57 = ssub.s32 %s16, %s28
    %p58 = scmp.eq.s32.totalorder %s57, 0
    %s60 = sadd.s32 %s59, 1
    %s61 = scalar_select %p58, %s59, %s60
    %p64 = pneg %p58
    %p65 = scmp.eq.s32.totalorder %s9, 1
    %p66 = por %p64, %p65
    %p67 = scmp.ne.s32.totalorder %s59, %s62
    %p68 = scmp.eq.s32.totalorder %s9, 0
    %p69 = por %p67, %p68
    %p70 = scmp.ne.s32.totalorder %s59, %s62
    %p71 = scmp.eq.s32.totalorder %s14, 1
    %p72 = por %p70, %p71
    %p73 = scmp.ne.s32.totalorder %s62, %s63
    %p74 = scmp.eq.s32.totalorder %s14, 0
    %p75 = por %p73, %p74
    %p76 = scmp.ne.s32.totalorder %s62, %s63
    %p77 = scmp.eq.s32.totalorder %s15, 1
    %p78 = por %p76, %p77
    %p80 = scmp.ne.s32.totalorder %s63, %s79
    %p81 = scmp.eq.s32.totalorder %s15, 0
    %p82 = por %p80, %p81
    %s83 = ssub.s32 %s16, %s28
    %p84 = scmp.eq.s32.totalorder %s83, 0
    %s86 = sadd.s32 %s85, 1
    %s87 = scalar_select %p84, %s85, %s86
    %p90 = pneg %p84
    %p91 = scmp.eq.s32.totalorder %s9, 1
    %p92 = por %p90, %p91
    %p93 = scmp.ne.s32.totalorder %s85, %s88
    %p94 = scmp.eq.s32.totalorder %s9, 0
    %p95 = por %p93, %p94
    %p96 = scmp.ne.s32.totalorder %s85, %s88
    %p97 = scmp.eq.s32.totalorder %s14, 1
    %p98 = por %p96, %p97
    %p99 = scmp.ne.s32.totalorder %s88, %s89
    %p100 = scmp.eq.s32.totalorder %s14, 0
    %p101 = por %p99, %p100
    %p102 = scmp.ne.s32.totalorder %s88, %s89
    %p103 = scmp.eq.s32.totalorder %s15, 1
    %p104 = por %p102, %p103
    %p106 = scmp.ne.s32.totalorder %s89, %s105
    %p107 = scmp.eq.s32.totalorder %s15, 0
    %p108 = por %p106, %p107
    %s109 = ssub.s32 %s16, %s28
    %s110 = ssub.s32 %s17, %s24
    %s111 = sor.u32 %s109, %s110
    %p112 = scmp.eq.s32.totalorder %s111, 0
    %s114 = sadd.s32 %s113, 1
    %s115 = scalar_select %p112, %s113, %s114
    %p118 = pneg %p112
    %p119 = scmp.eq.s32.totalorder %s9, 1
    %p120 = por %p118, %p119
    %p121 = scmp.ne.s32.totalorder %s113, %s116
    %p122 = scmp.eq.s32.totalorder %s9, 0
    %p123 = por %p121, %p122
    %p124 = scmp.ne.s32.totalorder %s113, %s116
    %p125 = scmp.eq.s32.totalorder %s14, 1
    %p126 = por %p124, %p125
    %p127 = scmp.ne.s32.totalorder %s116, %s117
    %p128 = scmp.eq.s32.totalorder %s14, 0
    %p129 = por %p127, %p128
    %p130 = scmp.ne.s32.totalorder %s116, %s117
    %p131 = scmp.eq.s32.totalorder %s15, 1
    %p132 = por %p130, %p131
    %p134 = scmp.ne.s32.totalorder %s117, %s133
    %p135 = scmp.eq.s32.totalorder %s15, 0
    %p136 = por %p134, %p135
    %p137 = scmp.le.s32.totalorder 1, %s9
    %p138 = scmp.lt.s32.totalorder %s9, 3
    %p139 = pnand %p137, %p138
    %p140 = pneg %p139
    // Predicated region
    $region9: #{disprot_forward.13} parent=5 // pred_check
      _
    $region10: #{disprot_forward.13} parent=5 // pred_check_branch
      %142 = sbr.rel (%p139) target = $region12
    $region11: #{disprot_forward.13} parent=5 // pred_region
      %s143 = ssub.s32 %s9, 1
    $region12: #{disprot_forward.13} parent=5 // pred_fallthru
      _
    %p144 = scmp.lt.s32.totalorder %s9, 2
    // Predicated region
    $region13: #{disprot_forward.13} parent=5 // pred_check
      %p145 = pneg %p144
    $region14: #{disprot_forward.13} parent=5 // pred_check_branch
      %147 = sbr.rel (%p145) target = $region16
    $region15: #{disprot_forward.13} parent=5 // pred_region
      // Predicated region
      $region17: #{disprot_forward.13} parent=15 // pred_check
        %p148 = pneg %p43
      $region18: #{disprot_forward.13} parent=15 // pred_check_branch
        %150 = sbr.rel (%p148) target = $region20
      $region19: #{disprot_forward.13} parent=15 // pred_region
        %p151 = scmp.lt.s32.totalorder %s16, 1
        %s152 = scalar_select %p151, %s16, 1
        %p153 = scmp.lt.s32.totalorder %s17, 0
        %s154 = scalar_select %p153, %s17, 0
        %s155 = sadd.s32 %s154, %s152
        %s156 = smul.addr %s155, 4
        %s157 = scalar_lea.vmem %s0, %s156
      $region20: #{disprot_forward.13} parent=15 // pred_fallthru
        _
      // Predicated region
      $region21: #{disprot_forward.13} parent=15 // pred_check
        %p158 = pneg %p69
      $region22: #{disprot_forward.13} parent=15 // pred_check_branch
        %160 = sbr.rel (%p158) target = $region24
      $region23: #{disprot_forward.13} parent=15 // pred_region
        %p161 = scmp.lt.s32.totalorder %s16, 1
        %s162 = scalar_select %p161, %s16, 1
        %s163 = smul.addr %s162, 4
        %s164 = scalar_lea.vmem %s1, %s163
      $region24: #{disprot_forward.13} parent=15 // pred_fallthru
        _
      // Predicated region
      $region25: #{disprot_forward.13} parent=15 // pred_check
        %p165 = pneg %p95
      $region26: #{disprot_forward.13} parent=15 // pred_check_branch
        %167 = sbr.rel (%p165) target = $region28
      $region27: #{disprot_forward.13} parent=15 // pred_region
        %p168 = scmp.lt.s32.totalorder %s16, 1
        %s169 = scalar_select %p168, %s16, 1
        %s170 = smul.addr %s169, 4
        %s171 = scalar_lea.vmem %s2, %s170
      $region28: #{disprot_forward.13} parent=15 // pred_fallthru
        _
    $region16: #{disprot_forward.13} parent=5 // pred_fallthru
      _
    %p172 = scmp.le.s32.totalorder 1, %s9
    %p173 = scmp.lt.s32.totalorder %s9, 3
    %p174 = pnand %p172, %p173
    %p175 = pneg %p174
    // Predicated region
    $region29: #{disprot_forward.13} parent=5 // pred_check
      _
    $region30: #{disprot_forward.13} parent=5 // pred_check_branch
      %177 = sbr.rel (%p174) target = $region32
    $region31: #{disprot_forward.13} parent=5 // pred_region
      %s178 = ssub.s32 %s9, 1
      %p179 = scmp.lt.s32.totalorder %s18, 1
      %s180 = scalar_select %p179, %s18, 1
      %p181 = scmp.lt.s32.totalorder %s19, 0
      %s182 = scalar_select %p181, %s19, 0
      %s183 = sadd.s32 %s182, %s180
      %s184 = smul.addr %s183, 4
      %s185 = scalar_lea.vmem %s0, %s184
      %p186 = pneg %p49
      %p187 = pneg %p46
      %p188 = scmp.lt.s32.totalorder %s18, 1
      %s189 = scalar_select %p188, %s18, 1
      %s190 = smul.addr %s189, 4
      %s191 = scalar_lea.vmem %s1, %s190
      %p192 = pneg %p75
      %p193 = pneg %p72
      %p194 = scmp.lt.s32.totalorder %s18, 1
      %s195 = scalar_select %p194, %s18, 1
      %s196 = smul.addr %s195, 4
      %s197 = scalar_lea.vmem %s2, %s196
      %p198 = pneg %p101
      %p199 = pneg %p98
      %p200 = pneg %p129
      %p201 = pneg %p126
      %p202 = scmp.lt.s32.totalorder %s18, 1
      %s203 = scalar_select %p202, %s18, 1
      %p204 = scmp.lt.s32.totalorder %s19, 0
      %s205 = scalar_select %p204, %s19, 0
      %s206 = sadd.s32 %s205, %s203
      %s207 = smul.addr %s206, 4
      %s208 = scalar_lea.vmem %s3, %s207
      %p209 = scmp.lt.s32.totalorder %s18, 1
      %s210 = scalar_select %p209, %s18, 1
      %p211 = scmp.lt.s32.totalorder %s19, 0
      %s212 = scalar_select %p211, %s19, 0
      %s213 = sadd.s32 %s212, %s210
      %s214 = smul.addr %s213, 4
      %s215 = scalar_lea.vmem %s0, %s214
      %p216 = scmp.lt.s32.totalorder %s18, 1
      %s217 = scalar_select %p216, %s18, 1
      %s218 = smul.addr %s217, 4
      %s219 = scalar_lea.vmem %s1, %s218
      %p220 = scmp.lt.s32.totalorder %s18, 1
      %s221 = scalar_select %p220, %s18, 1
      %s222 = smul.addr %s221, 4
      %s223 = scalar_lea.vmem %s2, %s222
      %p224 = scmp.lt.s32.totalorder %s18, 1
      %s225 = scalar_select %p224, %s18, 1
      %p226 = scmp.lt.s32.totalorder %s19, 0
      %s227 = scalar_select %p226, %s19, 0
      %s228 = sadd.s32 %s227, %s225
      %s229 = smul.addr %s228, 4
      %s230 = scalar_lea.vmem %s3, %s229
      %v232 = vld [vmem:[%s215] sm:$0xf]
      %v233 = vld [vmem:[%s219] sm:$0xf]
      %v234 = vld [vmem:[%s223] sm:$0xf]
      %vm235 = vcmask 64512
      %v237 = vsel %vm235, %v232, 0
      %v240 = vsel %vm235, %v233, 0
      %242 = vmatpush.bf16.xpose.msra.mxu0 0
      %243 = vmatpush.bf16.xpose.msra.mxu0 0
      %244 = vmatpush.bf16.xpose.msra.mxu0 0
      %245 = vmatpush.bf16.xpose.msra.mxu0 0
      %246 = vmatpush.bf16.xpose.msra.mxu0 0
      %247 = vmatpush.bf16.xpose.msra.mxu0 0
      %248 = vmatpush.bf16.xpose.msra.mxu0 0
      %249 = vmatpush.bf16.xpose.msra.mxu0 %v240
      %250 = vmatmul.bf16.gmra.mxu0 %v237
      %v251 = vpop.f32.mrf.mxu0
      %v252 = vadd.f32 0.0, %v251
      %v253 = vpop.f32.mrf.mxu0
      %254 = vdwg.mxu0
      %v255 = vmul.f32 %v252, 0.35355338
      %v256 = vsel %vm235, %v255, -inf
      %257 = vmax.xlane.f32.xlu0 %v256
      %v258 = vpop.xlane.xlu0 %257
      %v259 = vsub.f32 %v255, %v258
      %v260 = vmul.f32 %v259, 1.442695
      %v261 = vpow.pop %v260
      %v262 = vsel %vm235, %v261, 0.0
      %263 = vadd.xlane.f32.xlu0 %v262
      %v264 = vpop.xlane.xlu0 %263
      %v265 = vrcp.pop %v264
      %v266 = vmul.f32 %v261, %v265
      %v267 = vpack.c.bf16 %v266, %v266
      %v269 = vsel %vm235, %v267, 0
      %vm271 = vcmask 1043456
      %v273 = vsel %vm271, %v234, 0
      %275 = vmatpush.bf16.msra.mxu0 0
      %276 = vmatpush.bf16.msra.mxu0 0
      %277 = vmatpush.bf16.msra.mxu0 0
      %278 = vmatpush.bf16.msra.mxu0 0
      %279 = vmatpush.bf16.msra.mxu0 0
      %280 = vmatpush.bf16.msra.mxu0 0
      %281 = vmatpush.bf16.msra.mxu0 0
      %282 = vmatpush.bf16.msra.mxu0 %v273
      %283 = vmatmul.bf16.gmra.mxu0 %v269
      %v284 = vpop.f32.mrf.mxu0
      %v285 = vadd.f32 0.0, %v284
      %v286 = vpop.f32.mrf.mxu0
      %287 = vdwg.mxu0
      %v289 = vunpack.c.l.b16 %v232
      %v290 = vpack.c.b16 %v289, %v289
      %291 = vrot.lane.b32.xlu0 %v290, 120
      %v292 = vpop.permute.xlu0 %291
      %v294 = vunpack.c.l.b16 %v233
      %v295 = vpack.c.b16 %v294, %v294
      %296 = vrot.lane.b32.xlu0 %v295, 120
      %v297 = vpop.permute.xlu0 %296
      %v299 = vsel %vm235, %v292, 0
      %v302 = vsel %vm235, %v297, 0
      %304 = vmatpush.bf16.xpose.msra.mxu0 0
      %305 = vmatpush.bf16.xpose.msra.mxu0 0
      %306 = vmatpush.bf16.xpose.msra.mxu0 0
      %307 = vmatpush.bf16.xpose.msra.mxu0 0
      %308 = vmatpush.bf16.xpose.msra.mxu0 0
      %309 = vmatpush.bf16.xpose.msra.mxu0 0
      %310 = vmatpush.bf16.xpose.msra.mxu0 0
      %311 = vmatpush.bf16.xpose.msra.mxu0 %v302
      %312 = vmatmul.bf16.gmra.mxu0 %v299
      %v313 = vpop.f32.mrf.mxu0
      %v314 = vadd.f32 0.0, %v313
      %v315 = vpop.f32.mrf.mxu0
      %316 = vdwg.mxu0
      %v317 = vmul.f32 %v314, 0.35355338
      %v318 = vsel %vm235, %v317, -inf
      %319 = vmax.xlane.f32.xlu0 %v318
      %v320 = vpop.xlane.xlu0 %319
      %v321 = vsub.f32 %v317, %v320
      %v322 = vmul.f32 %v321, 1.442695
      %v323 = vpow.pop %v322
      %v324 = vsel %vm235, %v323, 0.0
      %325 = vadd.xlane.f32.xlu0 %v324
      %v326 = vpop.xlane.xlu0 %325
      %v327 = vrcp.pop %v326
      %v328 = vmul.f32 %v323, %v327
      %v329 = vpack.c.bf16 %v328, %v328
      %v331 = vunpack.c.l.b16 %v234
      %v332 = vpack.c.b16 %v331, %v331
      %333 = vrot.lane.b32.xlu0 %v332, 120
      %v334 = vpop.permute.xlu0 %333
      %v336 = vsel %vm235, %v329, 0
      %v339 = vsel %vm271, %v334, 0
      %341 = vmatpush.bf16.msra.mxu0 0
      %342 = vmatpush.bf16.msra.mxu0 0
      %343 = vmatpush.bf16.msra.mxu0 0
      %344 = vmatpush.bf16.msra.mxu0 0
      %345 = vmatpush.bf16.msra.mxu0 0
      %346 = vmatpush.bf16.msra.mxu0 0
      %347 = vmatpush.bf16.msra.mxu0 0
      %348 = vmatpush.bf16.msra.mxu0 %v339
      %349 = vmatmul.bf16.gmra.mxu0 %v336
      %v350 = vpop.f32.mrf.mxu0
      %v351 = vadd.f32 0.0, %v350
      %v352 = vpop.f32.mrf.mxu0
      %353 = vdwg.mxu0
      %354 = vrot.lane.b32.xlu0 %v290, 112
      %v355 = vpop.permute.xlu0 %354
      %356 = vrot.lane.b32.xlu0 %v295, 112
      %v357 = vpop.permute.xlu0 %356
      %v359 = vsel %vm235, %v355, 0
      %v362 = vsel %vm235, %v357, 0
      %364 = vmatpush.bf16.xpose.msra.mxu0 0
      %365 = vmatpush.bf16.xpose.msra.mxu0 0
      %366 = vmatpush.bf16.xpose.msra.mxu0 0
      %367 = vmatpush.bf16.xpose.msra.mxu0 0
      %368 = vmatpush.bf16.xpose.msra.mxu0 0
      %369 = vmatpush.bf16.xpose.msra.mxu0 0
      %370 = vmatpush.bf16.xpose.msra.mxu0 0
      %371 = vmatpush.bf16.xpose.msra.mxu0 %v362
      %372 = vmatmul.bf16.gmra.mxu0 %v359
      %v373 = vpop.f32.mrf.mxu0
      %v374 = vadd.f32 0.0, %v373
      %v375 = vpop.f32.mrf.mxu0
      %376 = vdwg.mxu0
      %v377 = vmul.f32 %v374, 0.35355338
      %v378 = vsel %vm235, %v377, -inf
      %379 = vmax.xlane.f32.xlu0 %v378
      %v380 = vpop.xlane.xlu0 %379
      %v381 = vsub.f32 %v377, %v380
      %v382 = vmul.f32 %v381, 1.442695
      %v383 = vpow.pop %v382
      %v384 = vsel %vm235, %v383, 0.0
      %385 = vadd.xlane.f32.xlu0 %v384
      %v386 = vpop.xlane.xlu0 %385
      %v387 = vrcp.pop %v386
      %v388 = vmul.f32 %v383, %v387
      %v389 = vpack.c.bf16 %v388, %v388
      %390 = vrot.lane.b32.xlu0 %v332, 112
      %v391 = vpop.permute.xlu0 %390
      %v393 = vsel %vm235, %v389, 0
      %v396 = vsel %vm271, %v391, 0
      %398 = vmatpush.bf16.msra.mxu0 0
      %399 = vmatpush.bf16.msra.mxu0 0
      %400 = vmatpush.bf16.msra.mxu0 0
      %401 = vmatpush.bf16.msra.mxu0 0
      %402 = vmatpush.bf16.msra.mxu0 0
      %403 = vmatpush.bf16.msra.mxu0 0
      %404 = vmatpush.bf16.msra.mxu0 0
      %405 = vmatpush.bf16.msra.mxu0 %v396
      %406 = vmatmul.bf16.gmra.mxu0 %v393
      %v407 = vpop.f32.mrf.mxu0
      %v408 = vadd.f32 0.0, %v407
      %v409 = vpop.f32.mrf.mxu0
      %410 = vdwg.mxu0
      %411 = vrot.lane.b32.xlu0 %v290, 104
      %v412 = vpop.permute.xlu0 %411
      %413 = vrot.lane.b32.xlu0 %v295, 104
      %v414 = vpop.permute.xlu0 %413
      %v416 = vsel %vm235, %v412, 0
      %v419 = vsel %vm235, %v414, 0
      %421 = vmatpush.bf16.xpose.msra.mxu0 0
      %422 = vmatpush.bf16.xpose.msra.mxu0 0
      %423 = vmatpush.bf16.xpose.msra.mxu0 0
      %424 = vmatpush.bf16.xpose.msra.mxu0 0
      %425 = vmatpush.bf16.xpose.msra.mxu0 0
      %426 = vmatpush.bf16.xpose.msra.mxu0 0
      %427 = vmatpush.bf16.xpose.msra.mxu0 0
      %428 = vmatpush.bf16.xpose.msra.mxu0 %v419
      %429 = vmatmul.bf16.gmra.mxu0 %v416
      %v430 = vpop.f32.mrf.mxu0
      %v431 = vadd.f32 0.0, %v430
      %v432 = vpop.f32.mrf.mxu0
      %433 = vdwg.mxu0
      %v434 = vmul.f32 %v431, 0.35355338
      %v435 = vsel %vm235, %v434, -inf
      %436 = vmax.xlane.f32.xlu0 %v435
      %v437 = vpop.xlane.xlu0 %436
      %v438 = vsub.f32 %v434, %v437
      %v439 = vmul.f32 %v438, 1.442695
      %v440 = vpow.pop %v439
      %v441 = vsel %vm235, %v440, 0.0
      %442 = vadd.xlane.f32.xlu0 %v441
      %v443 = vpop.xlane.xlu0 %442
      %v444 = vrcp.pop %v443
      %v445 = vmul.f32 %v440, %v444
      %v446 = vpack.c.bf16 %v445, %v445
      %447 = vrot.lane.b32.xlu0 %v332, 104
      %v448 = vpop.permute.xlu0 %447
      %v450 = vsel %vm235, %v446, 0
      %v453 = vsel %vm271, %v448, 0
      %455 = vmatpush.bf16.msra.mxu0 0
      %456 = vmatpush.bf16.msra.mxu0 0
      %457 = vmatpush.bf16.msra.mxu0 0
      %458 = vmatpush.bf16.msra.mxu0 0
      %459 = vmatpush.bf16.msra.mxu0 0
      %460 = vmatpush.bf16.msra.mxu0 0
      %461 = vmatpush.bf16.msra.mxu0 0
      %462 = vmatpush.bf16.msra.mxu0 %v453
      %463 = vmatmul.bf16.gmra.mxu0 %v450
      %v464 = vpop.f32.mrf.mxu0
      %v465 = vadd.f32 0.0, %v464
      %v466 = vpop.f32.mrf.mxu0
      %467 = vdwg.mxu0
      %469 = vrot.lane.b32.xlu0 %v351, 8
      %v470 = vpop.permute.xlu0 %469
      %473 = vrot.lane.b32.xlu0 %v408, 16
      %v474 = vpop.permute.xlu0 %473
      %477 = vrot.lane.b32.xlu0 %v465, 24
      %v478 = vpop.permute.xlu0 %477
      %v480 = vsel %vm235, %v285, %v470
      %vm481 = vcmask 130048
      %v482 = vsel %vm481, %v480, %v474
      %vm483 = vcmask 195584
      %v484 = vsel %vm483, %v482, %v478
      %v485 = vpack.c.bf16 %v484, %v484
      %vm486 = vcmask 257024
      %487 = vst.msk [vmem:[%s230] sm:$0xf] %vm486, %v485
      %p488 = scmp.lt.s32.totalorder %s18, 1
      %s489 = scalar_select %p488, %s18, 1
      %p490 = scmp.lt.s32.totalorder %s19, 0
      %s491 = scalar_select %p490, %s19, 0
      %s492 = sadd.s32 %s491, %s489
      %s493 = smul.addr %s492, 4
      %s494 = scalar_lea.vmem %s3, %s493
      // Predicated region
      $region33: #{disprot_forward.13} parent=31 // pred_check
        %p495 = pneg %p126
      $region34: #{disprot_forward.13} parent=31 // pred_check_branch
        %497 = sbr.rel (%p495) target = $region36
      $region35: #{disprot_forward.13} parent=31 // pred_region
        _
      $region36: #{disprot_forward.13} parent=31 // pred_fallthru
        _
    $region32: #{disprot_forward.13} parent=5 // pred_fallthru
      _
    %p498 = scmp.le.s32.totalorder 2, %s9
    // Predicated region
    $region37: #{disprot_forward.13} parent=5 // pred_check
      %p499 = pneg %p498
    $region38: #{disprot_forward.13} parent=5 // pred_check_branch
      %501 = sbr.rel (%p499) target = $region40
    $region39: #{disprot_forward.13} parent=5 // pred_region
      %s502 = ssub.s32 %s9, 2
      // Predicated region
      $region41: #{disprot_forward.13} parent=39 // pred_check
        %p503 = pneg %p132
      $region42: #{disprot_forward.13} parent=39 // pred_check_branch
        %505 = sbr.rel (%p503) target = $region44
      $region43: #{disprot_forward.13} parent=39 // pred_region
        %p506 = scmp.lt.s32.totalorder %s20, 1
        %s507 = scalar_select %p506, %s20, 1
        %p508 = scmp.lt.s32.totalorder %s21, 0
        %s509 = scalar_select %p508, %s21, 0
        %s510 = sadd.s32 %s509, %s507
        %s511 = smul.addr %s510, 4
        %s512 = scalar_lea.vmem %s3, %s511
      $region44: #{disprot_forward.13} parent=39 // pred_fallthru
        _
    $region40: #{disprot_forward.13} parent=5 // pred_fallthru
      _
  $region6: #{disprot_forward.13} parent=0 // loop_footer
    %s13 = sadd.s32 1, %s9
  $region7: #{disprot_forward.13} parent=0 // loop_footer_branch
    %8 = sbr.rel target = $region3
  $region8: #{disprot_forward.13} parent=0 // loop_exit
    _

// kernel: disprot_forward.21
$region0: #{disprot_forward.21}
  #allocation0 [shape = 'u32[]', space=smem, size = 0x4, offset = 0x4, fixed_abs, tag = 'smem constant byte address 0x4 - core index']
  #allocation1 [shape = 'u32[72,128]{1,0:T(1,128)}', space=vmem, size = 0x9000, scoped, tag = 'internal scratch']
  #allocation2 [shape = 'f32[16,128]{1,0:T(8,128)}', space=vmem, size = 0x2000, scoped, tag = 'scratch operand']
  %s0 = inlined_call_operand.vmem [shape: bf16[16,32], index: 0, kind: input, shape index: {}]
  %s1 = inlined_call_operand.vmem [shape: bf16[32,128], index: 1, kind: input, shape index: {}]
  %s2 = inlined_call_operand.vmem [shape: f32[1,128], index: 2, kind: input, shape index: {}]
  %s3 = inlined_call_operand.vmem [shape: f32[16,128], index: 3, kind: output, shape index: {}]
  %s4 = sld [smem:[#allocation0]]
  $region30: #{disprot_forward.21} parent=0
    _
  %s6 = ssub.s32 1, %s4
  %s7 = scalar_select 0, %s6, %s4
  // Predicated region
  $region2: #{disprot_forward.21} parent=0 // pred_check
    _
  $region3: #{disprot_forward.21} parent=0 // pred_check_branch
    %9 = sbr.rel (0) target = $region5
  $region4: #{disprot_forward.21} parent=0 // pred_region
    _
  $region5: #{disprot_forward.21} parent=0 // pred_fallthru
    _
  // Predicated region
  $region6: #{disprot_forward.21} parent=0 // pred_check
    _
  $region7: #{disprot_forward.21} parent=0 // pred_check_branch
    %11 = sbr.rel (0) target = $region9
  $region8: #{disprot_forward.21} parent=0 // pred_region
    _
  $region9: #{disprot_forward.21} parent=0 // pred_fallthru
    _
  // Predicated region
  $region10: #{disprot_forward.21} parent=0 // pred_check
    _
  $region11: #{disprot_forward.21} parent=0 // pred_check_branch
    %13 = sbr.rel (0) target = $region13
  $region12: #{disprot_forward.21} parent=0 // pred_region
    _
  $region13: #{disprot_forward.21} parent=0 // pred_fallthru
    _
  %p15 = scmp.eq.s32.totalorder 0, 0
  // Predicated region
  $region14: #{disprot_forward.21} parent=0 // pred_check
    %p16 = pneg %p15
  $region15: #{disprot_forward.21} parent=0 // pred_check_branch
    %18 = sbr.rel (%p16) target = $region17
  $region16: #{disprot_forward.21} parent=0 // pred_region
    %19 = vst [vmem:[#allocation2] sm:$0xff] 0.0
    %20 = vst [vmem:[#allocation2 + $0x8] sm:$0xff] 0.0
  $region17: #{disprot_forward.21} parent=0 // pred_fallthru
    _
  %v21 = vld [vmem:[#allocation2] sm:$0xff]
  %v22 = vld [vmem:[#allocation2 + $0x8] sm:$0xff]
  %v23 = vld [vmem:[%s0] sm:$0xf]
  %v24 = vld [vmem:[%s0 + $0x4] sm:$0xf]
  %v25 = vld [vmem:[%s1] sm:$0xf]
  %v26 = vld [vmem:[%s1 + $0x4] sm:$0xf]
  %v27 = vld [vmem:[%s1 + $0x8] sm:$0xf]
  %v28 = vld [vmem:[%s1 + $0xc] sm:$0xf]
  %v31 = vunpack.c.l.b16 %v23
  %v32 = vunpack.c.l.b16 %v24
  %v33 = vpack.c.b16 %v32, %v31
  %v38 = vunpack.c.l.b16 %v25
  %v39 = vunpack.c.l.b16 %v26
  %v40 = vunpack.c.l.b16 %v27
  %v41 = vunpack.c.l.b16 %v28
  %v42 = vpack.c.b16 %v39, %v38
  %v43 = vpack.c.b16 %v41, %v40
  %vm46 = vcmask 261120
  %v48 = vsel %vm46, %v33, 0
  %50 = vmatpush.bf16.msra.mxu0 0
  %51 = vmatpush.bf16.msra.mxu0 0
  %52 = vmatpush.bf16.msra.mxu0 0
  %53 = vmatpush.bf16.msra.mxu0 0
  %54 = vmatpush.bf16.msra.mxu0 0
  %55 = vmatpush.bf16.msra.mxu0 0
  %56 = vmatpush.bf16.msra.mxu0 %v43
  %57 = vmatpush.bf16.msra.mxu0 %v42
  %58 = vmatmul.bf16.gmra.mxu0 %v48
  %v59 = vpop.f32.mrf.mxu0
  %v60 = vadd.f32 0.0, %v59
  %v61 = vpop.f32.mrf.mxu0
  %v62 = vadd.f32 0.0, %v61
  %63 = vdwg.mxu0
  %v64 = vadd.f32 %v21, %v60
  %v65 = vadd.f32 %v22, %v62
  %66 = vst [vmem:[#allocation2] sm:$0xff] %v64
  %67 = vst [vmem:[#allocation2 + $0x8] sm:$0xff] %v65
  // Predicated region
  $region18: #{disprot_forward.21} parent=0 // pred_check
    %p68 = pneg %p15
  $region19: #{disprot_forward.21} parent=0 // pred_check_branch
    %70 = sbr.rel (%p68) target = $region21
  $region20: #{disprot_forward.21} parent=0 // pred_region
    %v71 = vld [vmem:[#allocation2] sm:$0xff]
    %v72 = vld [vmem:[#allocation2 + $0x8] sm:$0xff]
    %v73 = vld [vmem:[%s2] sm:$0x1]
    %v75 = vperm.slane %v73, 0
    %v77 = vadd.f32 %v71, %v75
    %v78 = vadd.f32 %v72, %v75
    %79 = vst [vmem:[%s3] sm:$0xff] %v77
    %80 = vst [vmem:[%s3 + $0x8] sm:$0xff] %v78
  $region21: #{disprot_forward.21} parent=0 // pred_fallthru
    _
  // Predicated region
  $region22: #{disprot_forward.21} parent=0 // pred_check
    _
  $region23: #{disprot_forward.21} parent=0 // pred_check_branch
    %82 = sbr.rel (0) target = $region25
  $region24: #{disprot_forward.21} parent=0 // pred_region
    _
  $region25: #{disprot_forward.21} parent=0 // pred_fallthru
    _
  // Predicated region
  $region26: #{disprot_forward.21} parent=0 // pred_check
    _
  $region27: #{disprot_forward.21} parent=0 // pred_check_branch
    %84 = sbr.rel (0) target = $region29
  $region28: #{disprot_forward.21} parent=0 // pred_region
    _
  $region29: #{disprot_forward.21} parent=0 // pred_fallthru
    _

// kernel: disprot_forward.15
$region0: #{disprot_forward.15}
  #allocation0 [shape = 'u32[]', space=smem, size = 0x4, offset = 0x4, fixed_abs, tag = 'smem constant byte address 0x4 - core index']
  #allocation1 [shape = 'u32[72,128]{1,0:T(1,128)}', space=vmem, size = 0x9000, scoped, tag = 'internal scratch']
  #allocation2 [shape = 'f32[16,32]{1,0:T(8,128)}', space=vmem, size = 0x2000, scoped, tag = 'scratch operand']
  %s0 = inlined_call_operand.vmem [shape: bf16[16,32], index: 0, kind: input, shape index: {}]
  %s1 = inlined_call_operand.vmem [shape: bf16[32,128], index: 1, kind: input, shape index: {}]
  %s2 = inlined_call_operand.vmem [shape: f32[1,128], index: 2, kind: input, shape index: {}]
  %s3 = inlined_call_operand.vmem [shape: bf16[128,32], index: 3, kind: input, shape index: {}]
  %s4 = inlined_call_operand.vmem [shape: f32[1,32], index: 4, kind: input, shape index: {}]
  %s5 = inlined_call_operand.vmem [shape: f32[1,32], index: 5, kind: input, shape index: {}]
  %s6 = inlined_call_operand.vmem [shape: f32[1,32], index: 6, kind: input, shape index: {}]
  %s7 = inlined_call_operand.vmem [shape: bf16[16,32], index: 7, kind: output, shape index: {}]
  %s8 = sld [smem:[#allocation0]]
  $region46: #{disprot_forward.15} parent=0
    _
  %s10 = ssub.s32 1, %s8
  %s11 = scalar_select 0, %s10, %s8
  // Predicated region
  $region2: #{disprot_forward.15} parent=0 // pred_check
    _
  $region3: #{disprot_forward.15} parent=0 // pred_check_branch
    %13 = sbr.rel (0) target = $region5
  $region4: #{disprot_forward.15} parent=0 // pred_region
    _
  $region5: #{disprot_forward.15} parent=0 // pred_fallthru
    _
  // Predicated region
  $region6: #{disprot_forward.15} parent=0 // pred_check
    _
  $region7: #{disprot_forward.15} parent=0 // pred_check_branch
    %15 = sbr.rel (0) target = $region9
  $region8: #{disprot_forward.15} parent=0 // pred_region
    _
  $region9: #{disprot_forward.15} parent=0 // pred_fallthru
    _
  // Predicated region
  $region10: #{disprot_forward.15} parent=0 // pred_check
    _
  $region11: #{disprot_forward.15} parent=0 // pred_check_branch
    %17 = sbr.rel (0) target = $region13
  $region12: #{disprot_forward.15} parent=0 // pred_region
    _
  $region13: #{disprot_forward.15} parent=0 // pred_fallthru
    _
  // Predicated region
  $region14: #{disprot_forward.15} parent=0 // pred_check
    _
  $region15: #{disprot_forward.15} parent=0 // pred_check_branch
    %19 = sbr.rel (0) target = $region17
  $region16: #{disprot_forward.15} parent=0 // pred_region
    _
  $region17: #{disprot_forward.15} parent=0 // pred_fallthru
    _
  // Predicated region
  $region18: #{disprot_forward.15} parent=0 // pred_check
    _
  $region19: #{disprot_forward.15} parent=0 // pred_check_branch
    %21 = sbr.rel (0) target = $region21
  $region20: #{disprot_forward.15} parent=0 // pred_region
    _
  $region21: #{disprot_forward.15} parent=0 // pred_fallthru
    _
  // Predicated region
  $region22: #{disprot_forward.15} parent=0 // pred_check
    _
  $region23: #{disprot_forward.15} parent=0 // pred_check_branch
    %23 = sbr.rel (0) target = $region25
  $region24: #{disprot_forward.15} parent=0 // pred_region
    _
  $region25: #{disprot_forward.15} parent=0 // pred_fallthru
    _
  // Predicated region
  $region26: #{disprot_forward.15} parent=0 // pred_check
    _
  $region27: #{disprot_forward.15} parent=0 // pred_check_branch
    %25 = sbr.rel (0) target = $region29
  $region28: #{disprot_forward.15} parent=0 // pred_region
    _
  $region29: #{disprot_forward.15} parent=0 // pred_fallthru
    _
  %p27 = scmp.eq.s32.totalorder 0, 0
  // Predicated region
  $region30: #{disprot_forward.15} parent=0 // pred_check
    %p28 = pneg %p27
  $region31: #{disprot_forward.15} parent=0 // pred_check_branch
    %30 = sbr.rel (%p28) target = $region33
  $region32: #{disprot_forward.15} parent=0 // pred_region
    %vm31 = vcmask 261120
    %32 = vst.msk [vmem:[#allocation2] sm:$0xff] %vm31, 0.0
    %33 = vst.msk [vmem:[#allocation2 + $0x8] sm:$0xff] %vm31, 0.0
  $region33: #{disprot_forward.15} parent=0 // pred_fallthru
    _
  %v34 = vld [vmem:[%s0] sm:$0xf]
  %v35 = vld [vmem:[%s0 + $0x4] sm:$0xf]
  %v36 = vld [vmem:[%s1] sm:$0xf]
  %v37 = vld [vmem:[%s1 + $0x4] sm:$0xf]
  %v38 = vld [vmem:[%s1 + $0x8] sm:$0xf]
  %v39 = vld [vmem:[%s1 + $0xc] sm:$0xf]
  %v40 = vld [vmem:[%s2] sm:$0x1]
  %v42 = vperm.slane %v40, 0
  %v46 = vunpack.c.l.b16 %v34
  %v47 = vunpack.c.l.b16 %v35
  %v48 = vpack.c.b16 %v47, %v46
  %v53 = vunpack.c.l.b16 %v36
  %v54 = vunpack.c.l.b16 %v37
  %v55 = vunpack.c.l.b16 %v38
  %v56 = vunpack.c.l.b16 %v39
  %v57 = vpack.c.b16 %v54, %v53
  %v58 = vpack.c.b16 %v56, %v55
  %vm61 = vcmask 261120
  %v63 = vsel %vm61, %v48, 0
  %65 = vmatpush.bf16.msra.mxu0 0
  %66 = vmatpush.bf16.msra.mxu0 0
  %67 = vmatpush.bf16.msra.mxu0 0
  %68 = vmatpush.bf16.msra.mxu0 0
  %69 = vmatpush.bf16.msra.mxu0 0
  %70 = vmatpush.bf16.msra.mxu0 0
  %71 = vmatpush.bf16.msra.mxu0 %v58
  %72 = vmatpush.bf16.msra.mxu0 %v57
  %73 = vmatmul.bf16.gmra.mxu0 %v63
  %v74 = vpop.f32.mrf.mxu0
  %v75 = vadd.f32 %v42, %v74
  %v76 = vpop.f32.mrf.mxu0
  %v77 = vadd.f32 %v42, %v76
  %78 = vdwg.mxu0
  %v79 = vmul.f32 %v75, 0.5
  %v80 = vmul.f32 %v77, 0.5
  %v81 = vmul.f32 %v75, 0.70710677
  %v82 = vmul.f32 %v77, 0.70710677
  %v83 = vand.u32 2147483647, %v81
  %v84 = vand.u32 2147483647, %v82
  %v85 = vmul.f32 %v83, 0.3275911
  %v86 = vmul.f32 %v84, 0.3275911
  %v87 = vadd.f32 %v85, 1.0
  %v88 = vadd.f32 %v86, 1.0
  %v89 = vrcp.pop %v87
  %v90 = vmul.f32 %v87, %v89
  %v91 = vsub.f32 1.0, %v90
  %v92 = vmul.f32 %v89, %v91
  %v93 = vadd.f32 %v89, %v92
  %vm94 = vweird.f32 %v87
  %vm95 = vweird.f32 %v89
  %vm96 = vmor %vm94, %vm95
  %v97 = vsel %vm96, %v89, %v93
  %v98 = vand.u32 2147483647, %v87
  %vm99 = vcmp.eq.f32.partialorder %v98, 8.507059e+37
  %v100 = vand.u32 %v87, 2147483648
  %v101 = vor.u32 1.1754944e-38, %v100
  %v102 = vsel %vm99, %v101, %v97
  %v103 = vmul.f32 1.0, %v102
  %v104 = vrcp.pop %v88
  %v105 = vmul.f32 %v88, %v104
  %v106 = vsub.f32 1.0, %v105
  %v107 = vmul.f32 %v104, %v106
  %v108 = vadd.f32 %v104, %v107
  %vm109 = vweird.f32 %v88
  %vm110 = vweird.f32 %v104
  %vm111 = vmor %vm109, %vm110
  %v112 = vsel %vm111, %v104, %v108
  %v113 = vand.u32 2147483647, %v88
  %vm114 = vcmp.eq.f32.partialorder %v113, 8.507059e+37
  %v115 = vand.u32 %v88, 2147483648
  %v116 = vor.u32 1.1754944e-38, %v115
  %v117 = vsel %vm114, %v116, %v112
  %v118 = vmul.f32 1.0, %v117
  %v119 = vmul.f32 %v103, 1.0614054
  %v120 = vmul.f32 %v118, 1.0614054
  %v121 = vadd.f32 %v119, -1.4531521
  %v122 = vadd.f32 %v120, -1.4531521
  %v123 = vmul.f32 %v103, %v121
  %v124 = vmul.f32 %v118, %v122
  %v125 = vadd.f32 %v123, 1.4214138
  %v126 = vadd.f32 %v124, 1.4214138
  %v127 = vmul.f32 %v103, %v125
  %v128 = vmul.f32 %v118, %v126
  %v129 = vadd.f32 %v127, -0.28449672
  %v130 = vadd.f32 %v128, -0.28449672
  %v131 = vmul.f32 %v103, %v129
  %v132 = vmul.f32 %v118, %v130
  %v133 = vadd.f32 %v131, 0.2548296
  %v134 = vadd.f32 %v132, 0.2548296
  %v135 = vmul.f32 %v103, %v133
  %v136 = vmul.f32 %v118, %v134
  %v137 = vsub.f32 0.0, %v83
  %v138 = vsub.f32 0.0, %v84
  %v139 = vmul.f32 %v137, %v83
  %v140 = vmul.f32 %v138, %v84
  %v141 = vmul.f32 %v139, 1.442695
  %v142 = vpow.pop %v141
  %v143 = vmul.f32 %v140, 1.442695
  %v144 = vpow.pop %v143
  %v145 = vmul.f32 %v135, %v142
  %v146 = vmul.f32 %v136, %v144
  %v147 = vsub.f32 1.0, %v145
  %v148 = vsub.f32 1.0, %v146
  %vm149 = vcmp.ge.f32.partialorder %v81, 0.0
  %vm150 = vcmp.ge.f32.partialorder %v82, 0.0
  %v151 = vsub.f32 0.0, %v147
  %v152 = vsub.f32 0.0, %v148
  %v153 = vsel %vm149, %v147, %v151
  %v154 = vsel %vm150, %v148, %v152
  %v155 = vadd.f32 %v153, 1.0
  %v156 = vadd.f32 %v154, 1.0
  %v157 = vmul.f32 %v79, %v155
  %v158 = vmul.f32 %v80, %v156
  %v159 = vld [vmem:[#allocation2] sm:$0xff]
  %v160 = vld [vmem:[#allocation2 + $0x8] sm:$0xff]
  %v161 = vpack.c.bf16 %v158, %v157
  %v162 = vld [vmem:[%s3] sm:$0xf]
  %v163 = vld [vmem:[%s3 + $0x4] sm:$0xf]
  %v164 = vld [vmem:[%s3 + $0x8] sm:$0xf]
  %v165 = vld [vmem:[%s3 + $0xc] sm:$0xf]
  %v166 = vld [vmem:[%s3 + $0x10] sm:$0xf]
  %v167 = vld [vmem:[%s3 + $0x14] sm:$0xf]
  %v168 = vld [vmem:[%s3 + $0x18] sm:$0xf]
  %v169 = vld [vmem:[%s3 + $0x1c] sm:$0xf]
  %v170 = vld [vmem:[%s3 + $0x20] sm:$0xf]
  %v171 = vld [vmem:[%s3 + $0x24] sm:$0xf]
  %v172 = vld [vmem:[%s3 + $0x28] sm:$0xf]
  %v173 = vld [vmem:[%s3 + $0x2c] sm:$0xf]
  %v174 = vld [vmem:[%s3 + $0x30] sm:$0xf]
  %v175 = vld [vmem:[%s3 + $0x34] sm:$0xf]
  %v176 = vld [vmem:[%s3 + $0x38] sm:$0xf]
  %v177 = vld [vmem:[%s3 + $0x3c] sm:$0xf]
  %v194 = vunpack.c.l.b16 %v162
  %v195 = vunpack.c.l.b16 %v163
  %v196 = vunpack.c.l.b16 %v164
  %v197 = vunpack.c.l.b16 %v165
  %v198 = vunpack.c.l.b16 %v166
  %v199 = vunpack.c.l.b16 %v167
  %v200 = vunpack.c.l.b16 %v168
  %v201 = vunpack.c.l.b16 %v169
  %v202 = vunpack.c.l.b16 %v170
  %v203 = vunpack.c.l.b16 %v171
  %v204 = vunpack.c.l.b16 %v172
  %v205 = vunpack.c.l.b16 %v173
  %v206 = vunpack.c.l.b16 %v174
  %v207 = vunpack.c.l.b16 %v175
  %v208 = vunpack.c.l.b16 %v176
  %v209 = vunpack.c.l.b16 %v177
  %v210 = vpack.c.b16 %v195, %v194
  %v211 = vpack.c.b16 %v197, %v196
  %v212 = vpack.c.b16 %v199, %v198
  %v213 = vpack.c.b16 %v201, %v200
  %v214 = vpack.c.b16 %v203, %v202
  %v215 = vpack.c.b16 %v205, %v204
  %v216 = vpack.c.b16 %v207, %v206
  %v217 = vpack.c.b16 %v209, %v208
  %226 = vmatpush.bf16.msra.mxu0 %v217
  %227 = vmatpush.bf16.msra.mxu0 %v216
  %228 = vmatpush.bf16.msra.mxu0 %v215
  %229 = vmatpush.bf16.msra.mxu0 %v214
  %230 = vmatpush.bf16.msra.mxu0 %v213
  %231 = vmatpush.bf16.msra.mxu0 %v212
  %232 = vmatpush.bf16.msra.mxu0 %v211
  %233 = vmatpush.bf16.msra.mxu0 %v210
  %234 = vmatmul.bf16.gmra.mxu0 %v161
  %v235 = vpop.f32.mrf.mxu0
  %v236 = vadd.f32 0.0, %v235
  %v237 = vpop.f32.mrf.mxu0
  %v238 = vadd.f32 0.0, %v237
  %239 = vdwg.mxu0
  %v240 = vadd.f32 %v159, %v236
  %v241 = vadd.f32 %v160, %v238
  %242 = vst.msk [vmem:[#allocation2] sm:$0xff] %vm61, %v240
  %243 = vst.msk [vmem:[#allocation2 + $0x8] sm:$0xff] %vm61, %v241
  // Predicated region
  $region34: #{disprot_forward.15} parent=0 // pred_check
    %p244 = pneg %p27
  $region35: #{disprot_forward.15} parent=0 // pred_check_branch
    %246 = sbr.rel (%p244) target = $region37
  $region36: #{disprot_forward.15} parent=0 // pred_region
    %v247 = vld [vmem:[#allocation2] sm:$0xff]
    %v248 = vld [vmem:[#allocation2 + $0x8] sm:$0xff]
    %v249 = vld [vmem:[%s4] sm:$0x1]
    %v251 = vperm.slane %v249, 0
    %v253 = vadd.f32 %v247, %v251
    %v254 = vadd.f32 %v248, %v251
    %v255 = vld [vmem:[%s0] sm:$0xf]
    %v256 = vld [vmem:[%s0 + $0x4] sm:$0xf]
    %v257 = vunpack.c.l.bf16 %v255
    %v258 = vunpack.c.l.bf16 %v256
    %v259 = vadd.f32 %v253, %v257
    %v260 = vadd.f32 %v254, %v258
    %v261 = vsel %vm61, %v259, 0.0
    %262 = vadd.xlane.f32.xlu0 %v261
    %v263 = vpop.xlane.xlu0 %262
    %v264 = vsel %vm61, %v260, 0.0
    %265 = vadd.xlane.f32.xlu0 %v264
    %v266 = vpop.xlane.xlu0 %265
    %v267 = vrcp.pop 32.0
    %v268 = vmul.f32 32.0, %v267
    %v269 = vsub.f32 1.0, %v268
    %v270 = vmul.f32 %v267, %v269
    %v271 = vadd.f32 %v267, %v270
    %vm272 = vweird.f32 %v267
    %v273 = vsel %vm272, %v267, %v271
    %v274 = vmul.f32 %v263, %v273
    %v275 = vmul.f32 %v266, %v273
    %v276 = vsub.f32 %v259, %v274
    %v277 = vsub.f32 %v260, %v275
    %v278 = vmul.f32 %v276, %v276
    %v279 = vmul.f32 %v277, %v277
    %v280 = vsel %vm61, %v278, 0.0
    %281 = vadd.xlane.f32.xlu0 %v280
    %v282 = vpop.xlane.xlu0 %281
    %v283 = vsel %vm61, %v279, 0.0
    %284 = vadd.xlane.f32.xlu0 %v283
    %v285 = vpop.xlane.xlu0 %284
    %v286 = vmul.f32 %v282, %v273
    %v287 = vmul.f32 %v285, %v273
    %v288 = vadd.f32 %v286, 1e-05
    %v289 = vadd.f32 %v287, 1e-05
    %v290 = vrsqrt.pop %v288
    %v291 = vmul.f32 %v290, %v288
    %v292 = vmul.f32 %v291, %v290
    %v293 = vmul.f32 0.5, %v292
    %v294 = vsub.f32 1.5, %v293
    %v295 = vmul.f32 %v290, %v294
    %vm296 = vweird.f32 %v288
    %vm297 = vweird.f32 %v290
    %vm298 = vmor %vm296, %vm297
    %v299 = vsel %vm298, %v290, %v295
    %v300 = vrsqrt.pop %v289
    %v301 = vmul.f32 %v300, %v289
    %v302 = vmul.f32 %v301, %v300
    %v303 = vmul.f32 0.5, %v302
    %v304 = vsub.f32 1.5, %v303
    %v305 = vmul.f32 %v300, %v304
    %vm306 = vweird.f32 %v289
    %vm307 = vweird.f32 %v300
    %vm308 = vmor %vm306, %vm307
    %v309 = vsel %vm308, %v300, %v305
    %v310 = vmul.f32 %v276, %v299
    %v311 = vmul.f32 %v277, %v309
    %v312 = vld [vmem:[%s5] sm:$0x1]
    %v314 = vperm.slane %v312, 0
    %v316 = vmul.f32 %v310, %v314
    %v317 = vmul.f32 %v311, %v314
    %v318 = vld [vmem:[%s6] sm:$0x1]
    %v320 = vperm.slane %v318, 0
    %v322 = vadd.f32 %v316, %v320
    %v323 = vadd.f32 %v317, %v320
    %v324 = vpack.c.bf16 %v322, %v322
    %v325 = vpack.c.bf16 %v323, %v323
    %vm326 = vcmask 257024
    %327 = vst.msk [vmem:[%s7] sm:$0xf] %vm326, %v324
    %328 = vst.msk [vmem:[%s7 + $0x4] sm:$0xf] %vm326, %v325
  $region37: #{disprot_forward.15} parent=0 // pred_fallthru
    _
  // Predicated region
  $region38: #{disprot_forward.15} parent=0 // pred_check
    _
  $region39: #{disprot_forward.15} parent=0 // pred_check_branch
    %330 = sbr.rel (0) target = $region41
  $region40: #{disprot_forward.15} parent=0 // pred_region
    _
  $region41: #{disprot_forward.15} parent=0 // pred_fallthru
    _
  // Predicated region
  $region42: #{disprot_forward.15} parent=0 // pred_check
    _
  $region43: #{disprot_forward.15} parent=0 // pred_check_branch
    %332 = sbr.rel (0) target = $region45
  $region44: #{disprot_forward.15} parent=0 // pred_region
    _
  $region45: #{disprot_forward.15} parent=0 // pred_fallthru
    _

// kernel: disprot_forward.20
$region0: #{disprot_forward.20}
  #allocation0 [shape = 'u32[]', space=smem, size = 0x4, offset = 0x4, fixed_abs, tag = 'smem constant byte address 0x4 - core index']
  #allocation1 [shape = 'u32[72,128]{1,0:T(1,128)}', space=vmem, size = 0x9000, scoped, tag = 'internal scratch']
  #allocation2 [shape = 'f32[16,32]{1,0:T(8,128)}', space=vmem, size = 0x2000, scoped, tag = 'scratch operand']
  %s0 = inlined_call_operand.vmem [shape: bf16[16,32], index: 0, kind: input, shape index: {}]
  %s1 = inlined_call_operand.vmem [shape: bf16[32,32], index: 1, kind: input, shape index: {}]
  %s2 = inlined_call_operand.vmem [shape: f32[1,32], index: 2, kind: input, shape index: {}]
  %s3 = inlined_call_operand.vmem [shape: bf16[16,32], index: 3, kind: output, shape index: {}]
  %s4 = sld [smem:[#allocation0]]
  $region30: #{disprot_forward.20} parent=0
    _
  %s6 = ssub.s32 1, %s4
  %s7 = scalar_select 0, %s6, %s4
  // Predicated region
  $region2: #{disprot_forward.20} parent=0 // pred_check
    _
  $region3: #{disprot_forward.20} parent=0 // pred_check_branch
    %9 = sbr.rel (0) target = $region5
  $region4: #{disprot_forward.20} parent=0 // pred_region
    _
  $region5: #{disprot_forward.20} parent=0 // pred_fallthru
    _
  // Predicated region
  $region6: #{disprot_forward.20} parent=0 // pred_check
    _
  $region7: #{disprot_forward.20} parent=0 // pred_check_branch
    %11 = sbr.rel (0) target = $region9
  $region8: #{disprot_forward.20} parent=0 // pred_region
    _
  $region9: #{disprot_forward.20} parent=0 // pred_fallthru
    _
  // Predicated region
  $region10: #{disprot_forward.20} parent=0 // pred_check
    _
  $region11: #{disprot_forward.20} parent=0 // pred_check_branch
    %13 = sbr.rel (0) target = $region13
  $region12: #{disprot_forward.20} parent=0 // pred_region
    _
  $region13: #{disprot_forward.20} parent=0 // pred_fallthru
    _
  %p15 = scmp.eq.s32.totalorder 0, 0
  // Predicated region
  $region14: #{disprot_forward.20} parent=0 // pred_check
    %p16 = pneg %p15
  $region15: #{disprot_forward.20} parent=0 // pred_check_branch
    %18 = sbr.rel (%p16) target = $region17
  $region16: #{disprot_forward.20} parent=0 // pred_region
    %vm19 = vcmask 261120
    %20 = vst.msk [vmem:[#allocation2] sm:$0xff] %vm19, 0.0
    %21 = vst.msk [vmem:[#allocation2 + $0x8] sm:$0xff] %vm19, 0.0
  $region17: #{disprot_forward.20} parent=0 // pred_fallthru
    _
  %v22 = vld [vmem:[#allocation2] sm:$0xff]
  %v23 = vld [vmem:[#allocation2 + $0x8] sm:$0xff]
  %v24 = vld [vmem:[%s0] sm:$0xf]
  %v25 = vld [vmem:[%s0 + $0x4] sm:$0xf]
  %v26 = vld [vmem:[%s1] sm:$0xf]
  %v27 = vld [vmem:[%s1 + $0x4] sm:$0xf]
  %v28 = vld [vmem:[%s1 + $0x8] sm:$0xf]
  %v29 = vld [vmem:[%s1 + $0xc] sm:$0xf]
  %v32 = vunpack.c.l.b16 %v24
  %v33 = vunpack.c.l.b16 %v25
  %v34 = vpack.c.b16 %v33, %v32
  %v39 = vunpack.c.l.b16 %v26
  %v40 = vunpack.c.l.b16 %v27
  %v41 = vunpack.c.l.b16 %v28
  %v42 = vunpack.c.l.b16 %v29
  %v43 = vpack.c.b16 %v40, %v39
  %v44 = vpack.c.b16 %v42, %v41
  %vm47 = vcmask 261120
  %v49 = vsel %vm47, %v34, 0
  %51 = vmatpush.bf16.msra.mxu0 0
  %52 = vmatpush.bf16.msra.mxu0 0
  %53 = vmatpush.bf16.msra.mxu0 0
  %54 = vmatpush.bf16.msra.mxu0 0
  %55 = vmatpush.bf16.msra.mxu0 0
  %56 = vmatpush.bf16.msra.mxu0 0
  %57 = vmatpush.bf16.msra.mxu0 %v44
  %58 = vmatpush.bf16.msra.mxu0 %v43
  %59 = vmatmul.bf16.gmra.mxu0 %v49
  %v60 = vpop.f32.mrf.mxu0
  %v61 = vadd.f32 0.0, %v60
  %v62 = vpop.f32.mrf.mxu0
  %v63 = vadd.f32 0.0, %v62
  %64 = vdwg.mxu0
  %v65 = vadd.f32 %v22, %v61
  %v66 = vadd.f32 %v23, %v63
  %67 = vst.msk [vmem:[#allocation2] sm:$0xff] %vm47, %v65
  %68 = vst.msk [vmem:[#allocation2 + $0x8] sm:$0xff] %vm47, %v66
  // Predicated region
  $region18: #{disprot_forward.20} parent=0 // pred_check
    %p69 = pneg %p15
  $region19: #{disprot_forward.20} parent=0 // pred_check_branch
    %71 = sbr.rel (%p69) target = $region21
  $region20: #{disprot_forward.20} parent=0 // pred_region
    %v72 = vld [vmem:[#allocation2] sm:$0xff]
    %v73 = vld [vmem:[#allocation2 + $0x8] sm:$0xff]
    %v74 = vld [vmem:[%s2] sm:$0x1]
    %v76 = vperm.slane %v74, 0
    %v78 = vadd.f32 %v72, %v76
    %v79 = vadd.f32 %v73, %v76
    %v80 = vmul.f32 %v78, 0.5
    %v81 = vmul.f32 %v79, 0.5
    %v82 = vmul.f32 %v78, 0.70710677
    %v83 = vmul.f32 %v79, 0.70710677
    %v84 = vand.u32 2147483647, %v82
    %v85 = vand.u32 2147483647, %v83
    %v86 = vmul.f32 %v84, 0.3275911
    %v87 = vmul.f32 %v85, 0.3275911
    %v88 = vadd.f32 %v86, 1.0
    %v89 = vadd.f32 %v87, 1.0
    %v90 = vrcp.pop %v88
    %v91 = vmul.f32 %v88, %v90
    %v92 = vsub.f32 1.0, %v91
    %v93 = vmul.f32 %v90, %v92
    %v94 = vadd.f32 %v90, %v93
    %vm95 = vweird.f32 %v88
    %vm96 = vweird.f32 %v90
    %vm97 = vmor %vm95, %vm96
    %v98 = vsel %vm97, %v90, %v94
    %v99 = vand.u32 2147483647, %v88
    %vm100 = vcmp.eq.f32.partialorder %v99, 8.507059e+37
    %v101 = vand.u32 %v88, 2147483648
    %v102 = vor.u32 1.1754944e-38, %v101
    %v103 = vsel %vm100, %v102, %v98
    %v104 = vmul.f32 1.0, %v103
    %v105 = vrcp.pop %v89
    %v106 = vmul.f32 %v89, %v105
    %v107 = vsub.f32 1.0, %v106
    %v108 = vmul.f32 %v105, %v107
    %v109 = vadd.f32 %v105, %v108
    %vm110 = vweird.f32 %v89
    %vm111 = vweird.f32 %v105
    %vm112 = vmor %vm110, %vm111
    %v113 = vsel %vm112, %v105, %v109
    %v114 = vand.u32 2147483647, %v89
    %vm115 = vcmp.eq.f32.partialorder %v114, 8.507059e+37
    %v116 = vand.u32 %v89, 2147483648
    %v117 = vor.u32 1.1754944e-38, %v116
    %v118 = vsel %vm115, %v117, %v113
    %v119 = vmul.f32 1.0, %v118
    %v120 = vmul.f32 %v104, 1.0614054
    %v121 = vmul.f32 %v119, 1.0614054
    %v122 = vadd.f32 %v120, -1.4531521
    %v123 = vadd.f32 %v121, -1.4531521
    %v124 = vmul.f32 %v104, %v122
    %v125 = vmul.f32 %v119, %v123
    %v126 = vadd.f32 %v124, 1.4214138
    %v127 = vadd.f32 %v125, 1.4214138
    %v128 = vmul.f32 %v104, %v126
    %v129 = vmul.f32 %v119, %v127
    %v130 = vadd.f32 %v128, -0.28449672
    %v131 = vadd.f32 %v129, -0.28449672
    %v132 = vmul.f32 %v104, %v130
    %v133 = vmul.f32 %v119, %v131
    %v134 = vadd.f32 %v132, 0.2548296
    %v135 = vadd.f32 %v133, 0.2548296
    %v136 = vmul.f32 %v104, %v134
    %v137 = vmul.f32 %v119, %v135
    %v138 = vsub.f32 0.0, %v84
    %v139 = vsub.f32 0.0, %v85
    %v140 = vmul.f32 %v138, %v84
    %v141 = vmul.f32 %v139, %v85
    %v142 = vmul.f32 %v140, 1.442695
    %v143 = vpow.pop %v142
    %v144 = vmul.f32 %v141, 1.442695
    %v145 = vpow.pop %v144
    %v146 = vmul.f32 %v136, %v143
    %v147 = vmul.f32 %v137, %v145
    %v148 = vsub.f32 1.0, %v146
    %v149 = vsub.f32 1.0, %v147
    %vm150 = vcmp.ge.f32.partialorder %v82, 0.0
    %vm151 = vcmp.ge.f32.partialorder %v83, 0.0
    %v152 = vsub.f32 0.0, %v148
    %v153 = vsub.f32 0.0, %v149
    %v154 = vsel %vm150, %v148, %v152
    %v155 = vsel %vm151, %v149, %v153
    %v156 = vadd.f32 %v154, 1.0
    %v157 = vadd.f32 %v155, 1.0
    %v158 = vmul.f32 %v80, %v156
    %v159 = vmul.f32 %v81, %v157
    %v160 = vpack.c.bf16 %v158, %v158
    %v161 = vpack.c.bf16 %v159, %v159
    %vm162 = vcmask 257024
    %163 = vst.msk [vmem:[%s3] sm:$0xf] %vm162, %v160
    %164 = vst.msk [vmem:[%s3 + $0x4] sm:$0xf] %vm162, %v161
  $region21: #{disprot_forward.20} parent=0 // pred_fallthru
    _
  // Predicated region
  $region22: #{disprot_forward.20} parent=0 // pred_check
    _
  $region23: #{disprot_forward.20} parent=0 // pred_check_branch
    %166 = sbr.rel (0) target = $region25
  $region24: #{disprot_forward.20} parent=0 // pred_region
    _
  $region25: #{disprot_forward.20} parent=0 // pred_fallthru
    _
  // Predicated region
  $region26: #{disprot_forward.20} parent=0 // pred_check
    _
  $region27: #{disprot_forward.20} parent=0 // pred_check_branch
    %168 = sbr.rel (0) target = $region29
  $region28: #{disprot_forward.20} parent=0 // pred_region
    _
  $region29: #{disprot_forward.20} parent=0 // pred_fallthru
    _

</llo_original>
